<compile_context>
chip_gen: v6e
topology: v6e:2x2x1
jax: 0.10.0
libtpu: 0.0.40
codegen_flags: <defaults>
</compile_context>

<pallas_src>
import functools
import math

import jax
import jax.numpy as jnp
from jax.experimental import pallas as pl


# --------------------------- model configuration ----------------------------

VOCAB = 100
HIDDEN = 32
LAYERS = 2
HEADS = 2
INTER = 64
MAX_POS = 64
TYPE_VOCAB = 2
LN_EPS = 1e-12


# ------------------------------ Pallas kernel -------------------------------

def _bert_kernel(x_ref,
                 qw_ref, qb_ref, kw_ref, kb_ref, vw_ref, vb_ref,
                 ow_ref, ob_ref, ln1_g_ref, ln1_b_ref,
                 iw_ref, ib_ref, fw_ref, fb_ref, ln2_g_ref, ln2_b_ref,
                 embg_ref, embb_ref, pw_ref, pb_ref,
                 out_ref, *, batch, seq, hidden, heads, layers, eps):
    """Full BERT forward (embedding LN -> L encoder layers -> pooler) for the
    whole flattened batch in a single grid step.  Everything stays in VMEM."""
    f32 = jnp.float32
    bf16 = jnp.bfloat16

    def layernorm(y, g, b):
        mean = jnp.mean(y, axis=-1, keepdims=True)
        yc = y - mean
        var = jnp.mean(yc * yc, axis=-1, keepdims=True)
        return yc * jax.lax.rsqrt(var + eps) * g + b

    def erf_approx(z):
        # Abramowitz & Stegun 7.1.26 rational approximation, |err| < 1.5e-7.
        # exp on EUP, polynomial on VPU, divide -> EUP approx reciprocal.
        a1, a2, a3, a4, a5 = (0.254829592, -0.284496736, 1.421413741,
                              -1.453152027, 1.061405429)
        pc = 0.3275911
        sgn = jnp.where(z >= 0.0, 1.0, -1.0)
        za = jnp.abs(z)
        t = pl.reciprocal(1.0 + pc * za, approx=True)
        poly = ((((a5 * t + a4) * t + a3) * t + a2) * t + a1) * t
        return sgn * (1.0 - poly * jnp.exp(-za * za))

    def gelu_exact(y):
        return 0.5 * y * (1.0 + erf_approx(y * 0.7071067811865476))

    def softmax_rows(s):
        s = s - jnp.max(s, axis=-1, keepdims=True)
        p = jnp.exp(s)
        return p * pl.reciprocal(jnp.sum(p, axis=-1, keepdims=True), approx=True)

    def attention(q_rows, kv_rows, l, q_per_batch):
        """q_rows: (batch*q_per_batch, H) f32 query rows; kv_rows: (batch*seq, H) f32."""
        qsrc = q_rows.astype(bf16)
        kvsrc = kv_rows.astype(bf16)
        # Per-head Q/K/V projections over the whole flattened batch (2-D MXU
        # matmuls; weights pre-split per head, so no in-kernel lane slicing;
        # 1/sqrt(dh) already folded into the Q weights/bias).
        per_head = []
        for h in range(heads):
            qh = jnp.dot(qsrc, qw_ref[l, h], preferred_element_type=f32) + qb_ref[l, h]
            kh = jnp.dot(kvsrc, kw_ref[l, h], preferred_element_type=f32) + kb_ref[l, h]
            vh = jnp.dot(kvsrc, vw_ref[l, h], preferred_element_type=f32) + vb_ref[l, h]
            per_head.append((qh.astype(bf16), kh.astype(bf16), vh.astype(bf16)))
        # Per-sequence attention + accumulated output projection (static unroll
        # over the tiny batch; only cheap static sublane slices).
        outs = []
        for b in range(batch):
            acc = jnp.zeros((q_per_batch, hidden), f32)
            for h in range(heads):
                qh, kh, vh = per_head[h]
                qhb = qh[b * q_per_batch:(b + 1) * q_per_batch, :]
                khb = kh[b * seq:(b + 1) * seq, :]
                vhb = vh[b * seq:(b + 1) * seq, :]
                s = jnp.einsum('qf,kf->qk', qhb, khb, preferred_element_type=f32)
                p = softmax_rows(s)
                ctx = jnp.dot(p.astype(bf16), vhb, preferred_element_type=f32)
                acc = acc + jnp.dot(ctx.astype(bf16), ow_ref[l, h],
                                    preferred_element_type=f32)
            outs.append(acc)
        ctx_proj = outs[0] if batch == 1 else jnp.concatenate(outs, axis=0)
        return ctx_proj + ob_ref[l]

    def ffn(y, l):
        yb = y.astype(bf16)
        inter = jnp.dot(yb, iw_ref[l], preferred_element_type=f32) + ib_ref[l]
        inter = gelu_exact(inter)
        return jnp.dot(inter.astype(bf16), fw_ref[l],
                       preferred_element_type=f32) + fb_ref[l]

    # Embedding LayerNorm (embedding gathers + sum are done in XLA glue).
    x = layernorm(x_ref[...], embg_ref[...], embb_ref[...])          # (B*S, H)

    # All-but-last encoder layers run on every token row.
    for l in range(layers - 1):
        x = layernorm(attention(x, x, l, seq) + x, ln1_g_ref[l], ln1_b_ref[l])
        x = layernorm(ffn(x, l) + x, ln2_g_ref[l], ln2_b_ref[l])

    # Final layer: only the CLS rows feed the pooler, so restrict the query /
    # residual / FFN path to them (K/V still need every row).
    l = layers - 1
    if batch > 1:
        x_cls = jnp.concatenate([x[b * seq:b * seq + 1, :] for b in range(batch)],
                                axis=0)                               # (B, H)
    else:
        x_cls = x[0:1, :]
    xc = layernorm(attention(x_cls, x, l, 1) + x_cls, ln1_g_ref[l], ln1_b_ref[l])
    xc = layernorm(ffn(xc, l) + xc, ln2_g_ref[l], ln2_b_ref[l])

    # Pooler: dense + tanh on the CLS activations; single (B, H) store.
    pooled = jnp.tanh(jnp.dot(xc.astype(bf16), pw_ref[...],
                              preferred_element_type=f32) + pb_ref[...])
    out_ref[...] = pooled


# --------------------------- parameters / prep -------------------------------

def _nrm(key, shape):
    return (jax.random.normal(key, shape, jnp.float32) * 0.02).astype(jnp.float32)


def init_bert_params(key):
    keys = jax.random.split(key, 4 + LAYERS)
    params = {
        "word_emb": _nrm(keys[0], (VOCAB, HIDDEN)),
        "pos_emb": _nrm(keys[1], (MAX_POS, HIDDEN)),
        "type_emb": _nrm(keys[2], (TYPE_VOCAB, HIDDEN)),
        "emb_ln_g": jnp.ones((HIDDEN,), jnp.float32),
        "emb_ln_b": jnp.zeros((HIDDEN,), jnp.float32),
        "layers": [],
    }
    for l in range(LAYERS):
        lk = jax.random.split(keys[3 + l], 6)
        params["layers"].append({
            "q_w": _nrm(lk[0], (HIDDEN, HIDDEN)), "q_b": jnp.zeros((HIDDEN,), jnp.float32),
            "k_w": _nrm(lk[1], (HIDDEN, HIDDEN)), "k_b": jnp.zeros((HIDDEN,), jnp.float32),
            "v_w": _nrm(lk[2], (HIDDEN, HIDDEN)), "v_b": jnp.zeros((HIDDEN,), jnp.float32),
            "ao_w": _nrm(lk[3], (HIDDEN, HIDDEN)), "ao_b": jnp.zeros((HIDDEN,), jnp.float32),
            "attn_ln_g": jnp.ones((HIDDEN,), jnp.float32),
            "attn_ln_b": jnp.zeros((HIDDEN,), jnp.float32),
            "i_w": _nrm(lk[4], (HIDDEN, INTER)), "i_b": jnp.zeros((INTER,), jnp.float32),
            "o_w": _nrm(lk[5], (INTER, HIDDEN)), "o_b": jnp.zeros((HIDDEN,), jnp.float32),
            "out_ln_g": jnp.ones((HIDDEN,), jnp.float32),
            "out_ln_b": jnp.zeros((HIDDEN,), jnp.float32),
        })
    params["pooler_w"] = _nrm(keys[3 + LAYERS], (HIDDEN, HIDDEN))
    params["pooler_b"] = jnp.zeros((HIDDEN,), jnp.float32)
    return params


def prepare_bert_weights(params):
    """One-time weight fusion/layout/dtype prep, hoisted off the forward path:
    per-head split Q/K/V and output-projection weights, 1/sqrt(dh) folded into
    Q, matmul weights cast to bf16 (MXU fast path), biases / LN / embeddings
    kept in f32."""
    f32, bf16 = jnp.float32, jnp.bfloat16
    dh = HIDDEN // HEADS
    scale = 1.0 / math.sqrt(dh)
    ls = params["layers"]

    def cols(w):      # (H, H) -> (heads, H, dh): split output columns per head
        return jnp.stack([w[:, h * dh:(h + 1) * dh] for h in range(HEADS)])

    def cols_b(b):    # (H,) -> (heads, 1, dh)
        return jnp.stack([b[h * dh:(h + 1) * dh][None, :] for h in range(HEADS)])

    def rows(w):      # (H, H) -> (heads, dh, H): split input rows per head
        return jnp.stack([w[h * dh:(h + 1) * dh, :] for h in range(HEADS)])

    weights = (
        jnp.stack([cols(lp["q_w"]) * scale for lp in ls]).astype(bf16),   # q_w (L,h,H,dh)
        jnp.stack([cols_b(lp["q_b"]) * scale for lp in ls]).astype(f32),  # q_b (L,h,1,dh)
        jnp.stack([cols(lp["k_w"]) for lp in ls]).astype(bf16),           # k_w
        jnp.stack([cols_b(lp["k_b"]) for lp in ls]).astype(f32),          # k_b
        jnp.stack([cols(lp["v_w"]) for lp in ls]).astype(bf16),           # v_w
        jnp.stack([cols_b(lp["v_b"]) for lp in ls]).astype(f32),          # v_b
        jnp.stack([rows(lp["ao_w"]) for lp in ls]).astype(bf16),          # ao_w (L,h,dh,H)
        jnp.stack([lp["ao_b"][None, :] for lp in ls]).astype(f32),        # ao_b (L,1,H)
        jnp.stack([lp["attn_ln_g"][None, :] for lp in ls]).astype(f32),
        jnp.stack([lp["attn_ln_b"][None, :] for lp in ls]).astype(f32),
        jnp.stack([lp["i_w"] for lp in ls]).astype(bf16),                 # (L,H,I)
        jnp.stack([lp["i_b"][None, :] for lp in ls]).astype(f32),         # (L,1,I)
        jnp.stack([lp["o_w"] for lp in ls]).astype(bf16),                 # (L,I,H)
        jnp.stack([lp["o_b"][None, :] for lp in ls]).astype(f32),
        jnp.stack([lp["out_ln_g"][None, :] for lp in ls]).astype(f32),
        jnp.stack([lp["out_ln_b"][None, :] for lp in ls]).astype(f32),
        params["emb_ln_g"][None, :].astype(f32),
        params["emb_ln_b"][None, :].astype(f32),
        params["pooler_w"].astype(bf16),
        params["pooler_b"][None, :].astype(f32),
    )
    prepped = {
        "word_emb": params["word_emb"],
        "pos_emb": params["pos_emb"],
        "type_emb": params["type_emb"],
        "kernel_weights": weights,
    }
    # Materialize now so the fusion cost is paid once, not per forward call.
    return jax.block_until_ready(prepped)


# --------------------------------- forward -----------------------------------

@jax.jit
def bert_forward(prepped, ids):
    """Equivalent of BertModel(input_ids=ids).pooler_output (eval mode, no
    attention mask, token_type_ids = 0)."""
    B, S = ids.shape
    H = HIDDEN
    # Embedding table gathers stay in XLA glue; everything else is one fused
    # Pallas kernel over the whole (flattened) batch.
    x = (prepped["word_emb"][ids]
         + prepped["pos_emb"][:S][None, :, :]
         + prepped["type_emb"][0][None, None, :]).astype(jnp.float32)    # (B,S,H)
    x2 = x.reshape(B * S, H)                                             # (B*S,H)

    kernel = functools.partial(_bert_kernel, batch=B, seq=S, hidden=H,
                               heads=HEADS, layers=LAYERS, eps=LN_EPS)
    # Single grid step (no grid): B=2, S=8 is far too small to amortize
    # per-step overhead or a megacore split; all operands fit in VMEM.
    pooled = pl.pallas_call(
        kernel,
        out_shape=jax.ShapeDtypeStruct((B, H), jnp.float32),
    )(x2, *prepped["kernel_weights"])
    return pooled


if __name__ == "__main__":
    key = jax.random.PRNGKey(0)
    pkey, ikey = jax.random.split(key)
    params = init_bert_params(pkey)
    prepped = prepare_bert_weights(params)          # one-time prep, off hot path
    ids = jax.random.randint(ikey, (2, 8), 0, VOCAB, dtype=jnp.int32)

    pooled = jax.block_until_ready(bert_forward(prepped, ids))
    assert pooled.shape == (2, HIDDEN)
    assert bool(jnp.all(jnp.isfinite(pooled)))
    print("KERNEL_OK")
</pallas_src>

<mosaic_0001>
module attributes {stable_mosaic.version = 11 : i64} {
  func.func @_bert_kernel(%arg0: memref<16x32xf32, #tpu.memory_space<vmem>>, %arg1: memref<2x2x32x16xbf16, #tpu.memory_space<vmem>>, %arg2: memref<2x2x1x16xf32, #tpu.memory_space<vmem>>, %arg3: memref<2x2x32x16xbf16, #tpu.memory_space<vmem>>, %arg4: memref<2x2x1x16xf32, #tpu.memory_space<vmem>>, %arg5: memref<2x2x32x16xbf16, #tpu.memory_space<vmem>>, %arg6: memref<2x2x1x16xf32, #tpu.memory_space<vmem>>, %arg7: memref<2x2x16x32xbf16, #tpu.memory_space<vmem>>, %arg8: memref<2x1x32xf32, #tpu.memory_space<vmem>>, %arg9: memref<2x1x32xf32, #tpu.memory_space<vmem>>, %arg10: memref<2x1x32xf32, #tpu.memory_space<vmem>>, %arg11: memref<2x32x64xbf16, #tpu.memory_space<vmem>>, %arg12: memref<2x1x64xf32, #tpu.memory_space<vmem>>, %arg13: memref<2x64x32xbf16, #tpu.memory_space<vmem>>, %arg14: memref<2x1x32xf32, #tpu.memory_space<vmem>>, %arg15: memref<2x1x32xf32, #tpu.memory_space<vmem>>, %arg16: memref<2x1x32xf32, #tpu.memory_space<vmem>>, %arg17: memref<1x32xf32, #tpu.memory_space<vmem>>, %arg18: memref<1x32xf32, #tpu.memory_space<vmem>>, %arg19: memref<32x32xbf16, #tpu.memory_space<vmem>>, %arg20: memref<1x32xf32, #tpu.memory_space<vmem>>, %arg21: memref<2x32xf32, #tpu.memory_space<vmem>>) attributes {dimension_semantics = [], scalar_prefetch = 0 : i64, scratch_operands = 0 : i64, tpu.core_type = #tpu.core_type<tc>} {
    %c0 = arith.constant 0 : index
    %c0_0 = arith.constant 0 : index
    %0 = vector.load %arg0[%c0, %c0_0] : memref<16x32xf32, #tpu.memory_space<vmem>>, vector<16x32xf32>
    %c0_1 = arith.constant 0 : index
    %c0_2 = arith.constant 0 : index
    %1 = vector.load %arg17[%c0_1, %c0_2] : memref<1x32xf32, #tpu.memory_space<vmem>>, vector<1x32xf32>
    %c0_3 = arith.constant 0 : index
    %c0_4 = arith.constant 0 : index
    %2 = vector.load %arg18[%c0_3, %c0_4] : memref<1x32xf32, #tpu.memory_space<vmem>>, vector<1x32xf32>
    %cst = arith.constant dense<0.000000e+00> : vector<16xf32>
    %3 = vector.multi_reduction <add>, %0, %cst [1] : vector<16x32xf32> to vector<16xf32>
    %4 = vector.shape_cast %3 : vector<16xf32> to vector<16x1xf32>
    %cst_5 = arith.constant 3.200000e+01 : f32
    %5 = vector.broadcast %cst_5 : f32 to vector<16x1xf32>
    %6 = arith.divf %4, %5 : vector<16x1xf32>
    %7 = vector.broadcast %6 : vector<16x1xf32> to vector<16x32xf32>
    %8 = arith.subf %0, %7 : vector<16x32xf32>
    %9 = arith.mulf %8, %8 : vector<16x32xf32>
    %cst_6 = arith.constant dense<0.000000e+00> : vector<16xf32>
    %10 = vector.multi_reduction <add>, %9, %cst_6 [1] : vector<16x32xf32> to vector<16xf32>
    %11 = vector.shape_cast %10 : vector<16xf32> to vector<16x1xf32>
    %cst_7 = arith.constant 3.200000e+01 : f32
    %12 = vector.broadcast %cst_7 : f32 to vector<16x1xf32>
    %13 = arith.divf %11, %12 : vector<16x1xf32>
    %cst_8 = arith.constant 9.99999996E-13 : f32
    %14 = vector.broadcast %cst_8 : f32 to vector<16x1xf32>
    %15 = arith.addf %13, %14 : vector<16x1xf32>
    %16 = math.rsqrt %15 : vector<16x1xf32>
    %17 = vector.broadcast %16 : vector<16x1xf32> to vector<16x32xf32>
    %18 = arith.mulf %8, %17 : vector<16x32xf32>
    %19 = vector.broadcast %1 : vector<1x32xf32> to vector<16x32xf32>
    %20 = arith.mulf %18, %19 : vector<16x32xf32>
    %21 = vector.broadcast %2 : vector<1x32xf32> to vector<16x32xf32>
    %22 = arith.addf %20, %21 : vector<16x32xf32>
    %23 = arith.truncf %22 : vector<16x32xf32> to vector<16x32xbf16>
    %24 = arith.truncf %22 : vector<16x32xf32> to vector<16x32xbf16>
    %c0_9 = arith.constant 0 : index
    %c0_10 = arith.constant 0 : index
    %c0_11 = arith.constant 0 : index
    %c0_12 = arith.constant 0 : index
    %25 = vector.load %arg1[%c0_9, %c0_10, %c0_11, %c0_12] : memref<2x2x32x16xbf16, #tpu.memory_space<vmem>>, vector<1x1x32x16xbf16>
    %26 = vector.shape_cast %25 : vector<1x1x32x16xbf16> to vector<32x16xbf16>
    %cst_13 = arith.constant dense<0.000000e+00> : vector<16x16xf32>
    %27 = tpu.matmul %23, %26, %cst_13 {dimension_numbers = #tpu.dot_dimension_numbers<[1], [0], [0], [1], [0, 0, 1, 1], [], []>} : vector<16x32xbf16>, vector<32x16xbf16>, vector<16x16xf32> -> vector<16x16xf32>
    %c0_14 = arith.constant 0 : index
    %c0_15 = arith.constant 0 : index
    %c0_16 = arith.constant 0 : index
    %c0_17 = arith.constant 0 : index
    %28 = vector.load %arg2[%c0_14, %c0_15, %c0_16, %c0_17] : memref<2x2x1x16xf32, #tpu.memory_space<vmem>>, vector<1x1x1x16xf32>
    %29 = vector.shape_cast %28 : vector<1x1x1x16xf32> to vector<1x16xf32>
    %30 = vector.broadcast %29 : vector<1x16xf32> to vector<16x16xf32>
    %31 = arith.addf %27, %30 : vector<16x16xf32>
    %c0_18 = arith.constant 0 : index
    %c0_19 = arith.constant 0 : index
    %c0_20 = arith.constant 0 : index
    %c0_21 = arith.constant 0 : index
    %32 = vector.load %arg3[%c0_18, %c0_19, %c0_20, %c0_21] : memref<2x2x32x16xbf16, #tpu.memory_space<vmem>>, vector<1x1x32x16xbf16>
    %33 = vector.shape_cast %32 : vector<1x1x32x16xbf16> to vector<32x16xbf16>
    %cst_22 = arith.constant dense<0.000000e+00> : vector<16x16xf32>
    %34 = tpu.matmul %24, %33, %cst_22 {dimension_numbers = #tpu.dot_dimension_numbers<[1], [0], [0], [1], [0, 0, 1, 1], [], []>} : vector<16x32xbf16>, vector<32x16xbf16>, vector<16x16xf32> -> vector<16x16xf32>
    %c0_23 = arith.constant 0 : index
    %c0_24 = arith.constant 0 : index
    %c0_25 = arith.constant 0 : index
    %c0_26 = arith.constant 0 : index
    %35 = vector.load %arg4[%c0_23, %c0_24, %c0_25, %c0_26] : memref<2x2x1x16xf32, #tpu.memory_space<vmem>>, vector<1x1x1x16xf32>
    %36 = vector.shape_cast %35 : vector<1x1x1x16xf32> to vector<1x16xf32>
    %37 = vector.broadcast %36 : vector<1x16xf32> to vector<16x16xf32>
    %38 = arith.addf %34, %37 : vector<16x16xf32>
    %c0_27 = arith.constant 0 : index
    %c0_28 = arith.constant 0 : index
    %c0_29 = arith.constant 0 : index
    %c0_30 = arith.constant 0 : index
    %39 = vector.load %arg5[%c0_27, %c0_28, %c0_29, %c0_30] : memref<2x2x32x16xbf16, #tpu.memory_space<vmem>>, vector<1x1x32x16xbf16>
    %40 = vector.shape_cast %39 : vector<1x1x32x16xbf16> to vector<32x16xbf16>
    %cst_31 = arith.constant dense<0.000000e+00> : vector<16x16xf32>
    %41 = tpu.matmul %24, %40, %cst_31 {dimension_numbers = #tpu.dot_dimension_numbers<[1], [0], [0], [1], [0, 0, 1, 1], [], []>} : vector<16x32xbf16>, vector<32x16xbf16>, vector<16x16xf32> -> vector<16x16xf32>
    %c0_32 = arith.constant 0 : index
    %c0_33 = arith.constant 0 : index
    %c0_34 = arith.constant 0 : index
    %c0_35 = arith.constant 0 : index
    %42 = vector.load %arg6[%c0_32, %c0_33, %c0_34, %c0_35] : memref<2x2x1x16xf32, #tpu.memory_space<vmem>>, vector<1x1x1x16xf32>
    %43 = vector.shape_cast %42 : vector<1x1x1x16xf32> to vector<1x16xf32>
    %44 = vector.broadcast %43 : vector<1x16xf32> to vector<16x16xf32>
    %45 = arith.addf %41, %44 : vector<16x16xf32>
    %46 = arith.truncf %31 : vector<16x16xf32> to vector<16x16xbf16>
    %47 = arith.truncf %38 : vector<16x16xf32> to vector<16x16xbf16>
    %48 = arith.truncf %45 : vector<16x16xf32> to vector<16x16xbf16>
    %c0_36 = arith.constant 0 : index
    %c1 = arith.constant 1 : index
    %c0_37 = arith.constant 0 : index
    %c0_38 = arith.constant 0 : index
    %49 = vector.load %arg1[%c0_36, %c1, %c0_37, %c0_38] : memref<2x2x32x16xbf16, #tpu.memory_space<vmem>>, vector<1x1x32x16xbf16>
    %50 = vector.shape_cast %49 : vector<1x1x32x16xbf16> to vector<32x16xbf16>
    %cst_39 = arith.constant dense<0.000000e+00> : vector<16x16xf32>
    %51 = tpu.matmul %23, %50, %cst_39 {dimension_numbers = #tpu.dot_dimension_numbers<[1], [0], [0], [1], [0, 0, 1, 1], [], []>} : vector<16x32xbf16>, vector<32x16xbf16>, vector<16x16xf32> -> vector<16x16xf32>
    %c0_40 = arith.constant 0 : index
    %c1_41 = arith.constant 1 : index
    %c0_42 = arith.constant 0 : index
    %c0_43 = arith.constant 0 : index
    %52 = vector.load %arg2[%c0_40, %c1_41, %c0_42, %c0_43] : memref<2x2x1x16xf32, #tpu.memory_space<vmem>>, vector<1x1x1x16xf32>
    %53 = vector.shape_cast %52 : vector<1x1x1x16xf32> to vector<1x16xf32>
    %54 = vector.broadcast %53 : vector<1x16xf32> to vector<16x16xf32>
    %55 = arith.addf %51, %54 : vector<16x16xf32>
    %c0_44 = arith.constant 0 : index
    %c1_45 = arith.constant 1 : index
    %c0_46 = arith.constant 0 : index
    %c0_47 = arith.constant 0 : index
    %56 = vector.load %arg3[%c0_44, %c1_45, %c0_46, %c0_47] : memref<2x2x32x16xbf16, #tpu.memory_space<vmem>>, vector<1x1x32x16xbf16>
    %57 = vector.shape_cast %56 : vector<1x1x32x16xbf16> to vector<32x16xbf16>
    %cst_48 = arith.constant dense<0.000000e+00> : vector<16x16xf32>
    %58 = tpu.matmul %24, %57, %cst_48 {dimension_numbers = #tpu.dot_dimension_numbers<[1], [0], [0], [1], [0, 0, 1, 1], [], []>} : vector<16x32xbf16>, vector<32x16xbf16>, vector<16x16xf32> -> vector<16x16xf32>
    %c0_49 = arith.constant 0 : index
    %c1_50 = arith.constant 1 : index
    %c0_51 = arith.constant 0 : index
    %c0_52 = arith.constant 0 : index
    %59 = vector.load %arg4[%c0_49, %c1_50, %c0_51, %c0_52] : memref<2x2x1x16xf32, #tpu.memory_space<vmem>>, vector<1x1x1x16xf32>
    %60 = vector.shape_cast %59 : vector<1x1x1x16xf32> to vector<1x16xf32>
    %61 = vector.broadcast %60 : vector<1x16xf32> to vector<16x16xf32>
    %62 = arith.addf %58, %61 : vector<16x16xf32>
    %c0_53 = arith.constant 0 : index
    %c1_54 = arith.constant 1 : index
    %c0_55 = arith.constant 0 : index
    %c0_56 = arith.constant 0 : index
    %63 = vector.load %arg5[%c0_53, %c1_54, %c0_55, %c0_56] : memref<2x2x32x16xbf16, #tpu.memory_space<vmem>>, vector<1x1x32x16xbf16>
    %64 = vector.shape_cast %63 : vector<1x1x32x16xbf16> to vector<32x16xbf16>
    %cst_57 = arith.constant dense<0.000000e+00> : vector<16x16xf32>
    %65 = tpu.matmul %24, %64, %cst_57 {dimension_numbers = #tpu.dot_dimension_numbers<[1], [0], [0], [1], [0, 0, 1, 1], [], []>} : vector<16x32xbf16>, vector<32x16xbf16>, vector<16x16xf32> -> vector<16x16xf32>
    %c0_58 = arith.constant 0 : index
    %c1_59 = arith.constant 1 : index
    %c0_60 = arith.constant 0 : index
    %c0_61 = arith.constant 0 : index
    %66 = vector.load %arg6[%c0_58, %c1_59, %c0_60, %c0_61] : memref<2x2x1x16xf32, #tpu.memory_space<vmem>>, vector<1x1x1x16xf32>
    %67 = vector.shape_cast %66 : vector<1x1x1x16xf32> to vector<1x16xf32>
    %68 = vector.broadcast %67 : vector<1x16xf32> to vector<16x16xf32>
    %69 = arith.addf %65, %68 : vector<16x16xf32>
    %70 = arith.truncf %55 : vector<16x16xf32> to vector<16x16xbf16>
    %71 = arith.truncf %62 : vector<16x16xf32> to vector<16x16xbf16>
    %72 = arith.truncf %69 : vector<16x16xf32> to vector<16x16xbf16>
    %cst_62 = arith.constant 0.000000e+00 : f32
    %73 = vector.broadcast %cst_62 : f32 to vector<8x32xf32>
    %74 = vector.extract_strided_slice %46 {offsets = [0, 0], sizes = [8, 16], strides = [1, 1]} : vector<16x16xbf16> to vector<8x16xbf16>
    %75 = vector.extract_strided_slice %47 {offsets = [0, 0], sizes = [8, 16], strides = [1, 1]} : vector<16x16xbf16> to vector<8x16xbf16>
    %76 = vector.extract_strided_slice %48 {offsets = [0, 0], sizes = [8, 16], strides = [1, 1]} : vector<16x16xbf16> to vector<8x16xbf16>
    "tpu.trace_start"() <{level = 10 : i32, message = "qf,kf->qk"}> : () -> ()
    %cst_63 = arith.constant dense<0.000000e+00> : vector<8x8xf32>
    %77 = tpu.matmul %74, %75, %cst_63 {dimension_numbers = #tpu.dot_dimension_numbers<[1], [1], [0], [0], [0, 0, 1, 0], [], []>} : vector<8x16xbf16>, vector<8x16xbf16>, vector<8x8xf32> -> vector<8x8xf32>
    "tpu.trace_stop"() : () -> ()
    %cst_64 = arith.constant dense<0xFF800000> : vector<8xf32>
    %78 = vector.multi_reduction <maximumf>, %77, %cst_64 [1] : vector<8x8xf32> to vector<8xf32>
    %79 = vector.shape_cast %78 : vector<8xf32> to vector<8x1xf32>
    %80 = vector.broadcast %79 : vector<8x1xf32> to vector<8x8xf32>
    %81 = arith.subf %77, %80 : vector<8x8xf32>
    %82 = math.exp %81 : vector<8x8xf32>
    %cst_65 = arith.constant dense<0.000000e+00> : vector<8xf32>
    %83 = vector.multi_reduction <add>, %82, %cst_65 [1] : vector<8x8xf32> to vector<8xf32>
    %84 = vector.shape_cast %83 : vector<8xf32> to vector<8x1xf32>
    %85 = tpu.reciprocal %84 {approx = true} : vector<8x1xf32> -> vector<8x1xf32>
    %86 = vector.broadcast %85 : vector<8x1xf32> to vector<8x8xf32>
    %87 = arith.mulf %82, %86 : vector<8x8xf32>
    %88 = arith.truncf %87 : vector<8x8xf32> to vector<8x8xbf16>
    %cst_66 = arith.constant dense<0.000000e+00> : vector<8x16xf32>
    %89 = tpu.matmul %88, %76, %cst_66 {dimension_numbers = #tpu.dot_dimension_numbers<[1], [0], [0], [1], [0, 0, 1, 1], [], []>} : vector<8x8xbf16>, vector<8x16xbf16>, vector<8x16xf32> -> vector<8x16xf32>
    %90 = arith.truncf %89 : vector<8x16xf32> to vector<8x16xbf16>
    %c0_67 = arith.constant 0 : index
    %c0_68 = arith.constant 0 : index
    %c0_69 = arith.constant 0 : index
    %c0_70 = arith.constant 0 : index
    %91 = vector.load %arg7[%c0_67, %c0_68, %c0_69, %c0_70] : memref<2x2x16x32xbf16, #tpu.memory_space<vmem>>, vector<1x1x16x32xbf16>
    %92 = vector.shape_cast %91 : vector<1x1x16x32xbf16> to vector<16x32xbf16>
    %cst_71 = arith.constant dense<0.000000e+00> : vector<8x32xf32>
    %93 = tpu.matmul %90, %92, %cst_71 {dimension_numbers = #tpu.dot_dimension_numbers<[1], [0], [0], [1], [0, 0, 1, 1], [], []>} : vector<8x16xbf16>, vector<16x32xbf16>, vector<8x32xf32> -> vector<8x32xf32>
    %94 = arith.addf %73, %93 : vector<8x32xf32>
    %95 = vector.extract_strided_slice %70 {offsets = [0, 0], sizes = [8, 16], strides = [1, 1]} : vector<16x16xbf16> to vector<8x16xbf16>
    %96 = vector.extract_strided_slice %71 {offsets = [0, 0], sizes = [8, 16], strides = [1, 1]} : vector<16x16xbf16> to vector<8x16xbf16>
    %97 = vector.extract_strided_slice %72 {offsets = [0, 0], sizes = [8, 16], strides = [1, 1]} : vector<16x16xbf16> to vector<8x16xbf16>
    "tpu.trace_start"() <{level = 10 : i32, message = "qf,kf->qk"}> : () -> ()
    %cst_72 = arith.constant dense<0.000000e+00> : vector<8x8xf32>
    %98 = tpu.matmul %95, %96, %cst_72 {dimension_numbers = #tpu.dot_dimension_numbers<[1], [1], [0], [0], [0, 0, 1, 0], [], []>} : vector<8x16xbf16>, vector<8x16xbf16>, vector<8x8xf32> -> vector<8x8xf32>
    "tpu.trace_stop"() : () -> ()
    %cst_73 = arith.constant dense<0xFF800000> : vector<8xf32>
    %99 = vector.multi_reduction <maximumf>, %98, %cst_73 [1] : vector<8x8xf32> to vector<8xf32>
    %100 = vector.shape_cast %99 : vector<8xf32> to vector<8x1xf32>
    %101 = vector.broadcast %100 : vector<8x1xf32> to vector<8x8xf32>
    %102 = arith.subf %98, %101 : vector<8x8xf32>
    %103 = math.exp %102 : vector<8x8xf32>
    %cst_74 = arith.constant dense<0.000000e+00> : vector<8xf32>
    %104 = vector.multi_reduction <add>, %103, %cst_74 [1] : vector<8x8xf32> to vector<8xf32>
    %105 = vector.shape_cast %104 : vector<8xf32> to vector<8x1xf32>
    %106 = tpu.reciprocal %105 {approx = true} : vector<8x1xf32> -> vector<8x1xf32>
    %107 = vector.broadcast %106 : vector<8x1xf32> to vector<8x8xf32>
    %108 = arith.mulf %103, %107 : vector<8x8xf32>
    %109 = arith.truncf %108 : vector<8x8xf32> to vector<8x8xbf16>
    %cst_75 = arith.constant dense<0.000000e+00> : vector<8x16xf32>
    %110 = tpu.matmul %109, %97, %cst_75 {dimension_numbers = #tpu.dot_dimension_numbers<[1], [0], [0], [1], [0, 0, 1, 1], [], []>} : vector<8x8xbf16>, vector<8x16xbf16>, vector<8x16xf32> -> vector<8x16xf32>
    %111 = arith.truncf %110 : vector<8x16xf32> to vector<8x16xbf16>
    %c0_76 = arith.constant 0 : index
    %c1_77 = arith.constant 1 : index
    %c0_78 = arith.constant 0 : index
    %c0_79 = arith.constant 0 : index
    %112 = vector.load %arg7[%c0_76, %c1_77, %c0_78, %c0_79] : memref<2x2x16x32xbf16, #tpu.memory_space<vmem>>, vector<1x1x16x32xbf16>
    %113 = vector.shape_cast %112 : vector<1x1x16x32xbf16> to vector<16x32xbf16>
    %cst_80 = arith.constant dense<0.000000e+00> : vector<8x32xf32>
    %114 = tpu.matmul %111, %113, %cst_80 {dimension_numbers = #tpu.dot_dimension_numbers<[1], [0], [0], [1], [0, 0, 1, 1], [], []>} : vector<8x16xbf16>, vector<16x32xbf16>, vector<8x32xf32> -> vector<8x32xf32>
    %115 = arith.addf %94, %114 : vector<8x32xf32>
    %cst_81 = arith.constant 0.000000e+00 : f32
    %116 = vector.broadcast %cst_81 : f32 to vector<8x32xf32>
    %117 = vector.extract_strided_slice %46 {offsets = [8, 0], sizes = [8, 16], strides = [1, 1]} : vector<16x16xbf16> to vector<8x16xbf16>
    %118 = vector.extract_strided_slice %47 {offsets = [8, 0], sizes = [8, 16], strides = [1, 1]} : vector<16x16xbf16> to vector<8x16xbf16>
    %119 = vector.extract_strided_slice %48 {offsets = [8, 0], sizes = [8, 16], strides = [1, 1]} : vector<16x16xbf16> to vector<8x16xbf16>
    "tpu.trace_start"() <{level = 10 : i32, message = "qf,kf->qk"}> : () -> ()
    %cst_82 = arith.constant dense<0.000000e+00> : vector<8x8xf32>
    %120 = tpu.matmul %117, %118, %cst_82 {dimension_numbers = #tpu.dot_dimension_numbers<[1], [1], [0], [0], [0, 0, 1, 0], [], []>} : vector<8x16xbf16>, vector<8x16xbf16>, vector<8x8xf32> -> vector<8x8xf32>
    "tpu.trace_stop"() : () -> ()
    %cst_83 = arith.constant dense<0xFF800000> : vector<8xf32>
    %121 = vector.multi_reduction <maximumf>, %120, %cst_83 [1] : vector<8x8xf32> to vector<8xf32>
    %122 = vector.shape_cast %121 : vector<8xf32> to vector<8x1xf32>
    %123 = vector.broadcast %122 : vector<8x1xf32> to vector<8x8xf32>
    %124 = arith.subf %120, %123 : vector<8x8xf32>
    %125 = math.exp %124 : vector<8x8xf32>
    %cst_84 = arith.constant dense<0.000000e+00> : vector<8xf32>
    %126 = vector.multi_reduction <add>, %125, %cst_84 [1] : vector<8x8xf32> to vector<8xf32>
    %127 = vector.shape_cast %126 : vector<8xf32> to vector<8x1xf32>
    %128 = tpu.reciprocal %127 {approx = true} : vector<8x1xf32> -> vector<8x1xf32>
    %129 = vector.broadcast %128 : vector<8x1xf32> to vector<8x8xf32>
    %130 = arith.mulf %125, %129 : vector<8x8xf32>
    %131 = arith.truncf %130 : vector<8x8xf32> to vector<8x8xbf16>
    %cst_85 = arith.constant dense<0.000000e+00> : vector<8x16xf32>
    %132 = tpu.matmul %131, %119, %cst_85 {dimension_numbers = #tpu.dot_dimension_numbers<[1], [0], [0], [1], [0, 0, 1, 1], [], []>} : vector<8x8xbf16>, vector<8x16xbf16>, vector<8x16xf32> -> vector<8x16xf32>
    %133 = arith.truncf %132 : vector<8x16xf32> to vector<8x16xbf16>
    %c0_86 = arith.constant 0 : index
    %c0_87 = arith.constant 0 : index
    %c0_88 = arith.constant 0 : index
    %c0_89 = arith.constant 0 : index
    %134 = vector.load %arg7[%c0_86, %c0_87, %c0_88, %c0_89] : memref<2x2x16x32xbf16, #tpu.memory_space<vmem>>, vector<1x1x16x32xbf16>
    %135 = vector.shape_cast %134 : vector<1x1x16x32xbf16> to vector<16x32xbf16>
    %cst_90 = arith.constant dense<0.000000e+00> : vector<8x32xf32>
    %136 = tpu.matmul %133, %135, %cst_90 {dimension_numbers = #tpu.dot_dimension_numbers<[1], [0], [0], [1], [0, 0, 1, 1], [], []>} : vector<8x16xbf16>, vector<16x32xbf16>, vector<8x32xf32> -> vector<8x32xf32>
    %137 = arith.addf %116, %136 : vector<8x32xf32>
    %138 = vector.extract_strided_slice %70 {offsets = [8, 0], sizes = [8, 16], strides = [1, 1]} : vector<16x16xbf16> to vector<8x16xbf16>
    %139 = vector.extract_strided_slice %71 {offsets = [8, 0], sizes = [8, 16], strides = [1, 1]} : vector<16x16xbf16> to vector<8x16xbf16>
    %140 = vector.extract_strided_slice %72 {offsets = [8, 0], sizes = [8, 16], strides = [1, 1]} : vector<16x16xbf16> to vector<8x16xbf16>
    "tpu.trace_start"() <{level = 10 : i32, message = "qf,kf->qk"}> : () -> ()
    %cst_91 = arith.constant dense<0.000000e+00> : vector<8x8xf32>
    %141 = tpu.matmul %138, %139, %cst_91 {dimension_numbers = #tpu.dot_dimension_numbers<[1], [1], [0], [0], [0, 0, 1, 0], [], []>} : vector<8x16xbf16>, vector<8x16xbf16>, vector<8x8xf32> -> vector<8x8xf32>
    "tpu.trace_stop"() : () -> ()
    %cst_92 = arith.constant dense<0xFF800000> : vector<8xf32>
    %142 = vector.multi_reduction <maximumf>, %141, %cst_92 [1] : vector<8x8xf32> to vector<8xf32>
    %143 = vector.shape_cast %142 : vector<8xf32> to vector<8x1xf32>
    %144 = vector.broadcast %143 : vector<8x1xf32> to vector<8x8xf32>
    %145 = arith.subf %141, %144 : vector<8x8xf32>
    %146 = math.exp %145 : vector<8x8xf32>
    %cst_93 = arith.constant dense<0.000000e+00> : vector<8xf32>
    %147 = vector.multi_reduction <add>, %146, %cst_93 [1] : vector<8x8xf32> to vector<8xf32>
    %148 = vector.shape_cast %147 : vector<8xf32> to vector<8x1xf32>
    %149 = tpu.reciprocal %148 {approx = true} : vector<8x1xf32> -> vector<8x1xf32>
    %150 = vector.broadcast %149 : vector<8x1xf32> to vector<8x8xf32>
    %151 = arith.mulf %146, %150 : vector<8x8xf32>
    %152 = arith.truncf %151 : vector<8x8xf32> to vector<8x8xbf16>
    %cst_94 = arith.constant dense<0.000000e+00> : vector<8x16xf32>
    %153 = tpu.matmul %152, %140, %cst_94 {dimension_numbers = #tpu.dot_dimension_numbers<[1], [0], [0], [1], [0, 0, 1, 1], [], []>} : vector<8x8xbf16>, vector<8x16xbf16>, vector<8x16xf32> -> vector<8x16xf32>
    %154 = arith.truncf %153 : vector<8x16xf32> to vector<8x16xbf16>
    %c0_95 = arith.constant 0 : index
    %c1_96 = arith.constant 1 : index
    %c0_97 = arith.constant 0 : index
    %c0_98 = arith.constant 0 : index
    %155 = vector.load %arg7[%c0_95, %c1_96, %c0_97, %c0_98] : memref<2x2x16x32xbf16, #tpu.memory_space<vmem>>, vector<1x1x16x32xbf16>
    %156 = vector.shape_cast %155 : vector<1x1x16x32xbf16> to vector<16x32xbf16>
    %cst_99 = arith.constant dense<0.000000e+00> : vector<8x32xf32>
    %157 = tpu.matmul %154, %156, %cst_99 {dimension_numbers = #tpu.dot_dimension_numbers<[1], [0], [0], [1], [0, 0, 1, 1], [], []>} : vector<8x16xbf16>, vector<16x32xbf16>, vector<8x32xf32> -> vector<8x32xf32>
    %158 = arith.addf %137, %157 : vector<8x32xf32>
    %159 = tpu.concatenate %115, %158 in 0 : vector<8x32xf32>, vector<8x32xf32> -> vector<16x32xf32>
    %c0_100 = arith.constant 0 : index
    %c0_101 = arith.constant 0 : index
    %c0_102 = arith.constant 0 : index
    %160 = vector.load %arg8[%c0_100, %c0_101, %c0_102] : memref<2x1x32xf32, #tpu.memory_space<vmem>>, vector<1x1x32xf32>
    %161 = vector.shape_cast %160 : vector<1x1x32xf32> to vector<1x32xf32>
    %162 = vector.broadcast %161 : vector<1x32xf32> to vector<16x32xf32>
    %163 = arith.addf %159, %162 : vector<16x32xf32>
    %164 = arith.addf %163, %22 : vector<16x32xf32>
    %c0_103 = arith.constant 0 : index
    %c0_104 = arith.constant 0 : index
    %c0_105 = arith.constant 0 : index
    %165 = vector.load %arg9[%c0_103, %c0_104, %c0_105] : memref<2x1x32xf32, #tpu.memory_space<vmem>>, vector<1x1x32xf32>
    %166 = vector.shape_cast %165 : vector<1x1x32xf32> to vector<1x32xf32>
    %c0_106 = arith.constant 0 : index
    %c0_107 = arith.constant 0 : index
    %c0_108 = arith.constant 0 : index
    %167 = vector.load %arg10[%c0_106, %c0_107, %c0_108] : memref<2x1x32xf32, #tpu.memory_space<vmem>>, vector<1x1x32xf32>
    %168 = vector.shape_cast %167 : vector<1x1x32xf32> to vector<1x32xf32>
    %cst_109 = arith.constant dense<0.000000e+00> : vector<16xf32>
    %169 = vector.multi_reduction <add>, %164, %cst_109 [1] : vector<16x32xf32> to vector<16xf32>
    %170 = vector.shape_cast %169 : vector<16xf32> to vector<16x1xf32>
    %cst_110 = arith.constant 3.200000e+01 : f32
    %171 = vector.broadcast %cst_110 : f32 to vector<16x1xf32>
    %172 = arith.divf %170, %171 : vector<16x1xf32>
    %173 = vector.broadcast %172 : vector<16x1xf32> to vector<16x32xf32>
    %174 = arith.subf %164, %173 : vector<16x32xf32>
    %175 = arith.mulf %174, %174 : vector<16x32xf32>
    %cst_111 = arith.constant dense<0.000000e+00> : vector<16xf32>
    %176 = vector.multi_reduction <add>, %175, %cst_111 [1] : vector<16x32xf32> to vector<16xf32>
    %177 = vector.shape_cast %176 : vector<16xf32> to vector<16x1xf32>
    %cst_112 = arith.constant 3.200000e+01 : f32
    %178 = vector.broadcast %cst_112 : f32 to vector<16x1xf32>
    %179 = arith.divf %177, %178 : vector<16x1xf32>
    %cst_113 = arith.constant 9.99999996E-13 : f32
    %180 = vector.broadcast %cst_113 : f32 to vector<16x1xf32>
    %181 = arith.addf %179, %180 : vector<16x1xf32>
    %182 = math.rsqrt %181 : vector<16x1xf32>
    %183 = vector.broadcast %182 : vector<16x1xf32> to vector<16x32xf32>
    %184 = arith.mulf %174, %183 : vector<16x32xf32>
    %185 = vector.broadcast %166 : vector<1x32xf32> to vector<16x32xf32>
    %186 = arith.mulf %184, %185 : vector<16x32xf32>
    %187 = vector.broadcast %168 : vector<1x32xf32> to vector<16x32xf32>
    %188 = arith.addf %186, %187 : vector<16x32xf32>
    %189 = arith.truncf %188 : vector<16x32xf32> to vector<16x32xbf16>
    %c0_114 = arith.constant 0 : index
    %c0_115 = arith.constant 0 : index
    %c0_116 = arith.constant 0 : index
    %190 = vector.load %arg11[%c0_114, %c0_115, %c0_116] : memref<2x32x64xbf16, #tpu.memory_space<vmem>>, vector<1x32x64xbf16>
    %191 = vector.shape_cast %190 : vector<1x32x64xbf16> to vector<32x64xbf16>
    %cst_117 = arith.constant dense<0.000000e+00> : vector<16x64xf32>
    %192 = tpu.matmul %189, %191, %cst_117 {dimension_numbers = #tpu.dot_dimension_numbers<[1], [0], [0], [1], [0, 0, 1, 1], [], []>} : vector<16x32xbf16>, vector<32x64xbf16>, vector<16x64xf32> -> vector<16x64xf32>
    %c0_118 = arith.constant 0 : index
    %c0_119 = arith.constant 0 : index
    %c0_120 = arith.constant 0 : index
    %193 = vector.load %arg12[%c0_118, %c0_119, %c0_120] : memref<2x1x64xf32, #tpu.memory_space<vmem>>, vector<1x1x64xf32>
    %194 = vector.shape_cast %193 : vector<1x1x64xf32> to vector<1x64xf32>
    %195 = vector.broadcast %194 : vector<1x64xf32> to vector<16x64xf32>
    %196 = arith.addf %192, %195 : vector<16x64xf32>
    %cst_121 = arith.constant 5.000000e-01 : f32
    %197 = vector.broadcast %cst_121 : f32 to vector<16x64xf32>
    %198 = arith.mulf %197, %196 : vector<16x64xf32>
    %cst_122 = arith.constant 0.707106769 : f32
    %199 = vector.broadcast %cst_122 : f32 to vector<16x64xf32>
    %200 = arith.mulf %196, %199 : vector<16x64xf32>
    %cst_123 = arith.constant 0.000000e+00 : f32
    %201 = vector.broadcast %cst_123 : f32 to vector<16x64xf32>
    %202 = arith.cmpf oge, %200, %201 : vector<16x64xf32>
    %cst_124 = arith.constant 1.000000e+00 : f32
    %cst_125 = arith.constant -1.000000e+00 : f32
    %203 = vector.broadcast %cst_124 : f32 to vector<16x64xf32>
    %204 = vector.broadcast %cst_125 : f32 to vector<16x64xf32>
    %205 = arith.select %202, %203, %204 : vector<16x64xi1>, vector<16x64xf32>
    %206 = math.absf %200 : vector<16x64xf32>
    %cst_126 = arith.constant 0.327591091 : f32
    %207 = vector.broadcast %cst_126 : f32 to vector<16x64xf32>
    %208 = arith.mulf %207, %206 : vector<16x64xf32>
    %cst_127 = arith.constant 1.000000e+00 : f32
    %209 = vector.broadcast %cst_127 : f32 to vector<16x64xf32>
    %210 = arith.addf %209, %208 : vector<16x64xf32>
    %211 = tpu.reciprocal %210 {approx = true} : vector<16x64xf32> -> vector<16x64xf32>
    %cst_128 = arith.constant 1.06140542 : f32
    %212 = vector.broadcast %cst_128 : f32 to vector<16x64xf32>
    %213 = arith.mulf %212, %211 : vector<16x64xf32>
    %cst_129 = arith.constant -1.45315206 : f32
    %214 = vector.broadcast %cst_129 : f32 to vector<16x64xf32>
    %215 = arith.addf %213, %214 : vector<16x64xf32>
    %216 = arith.mulf %215, %211 : vector<16x64xf32>
    %cst_130 = arith.constant 1.42141378 : f32
    %217 = vector.broadcast %cst_130 : f32 to vector<16x64xf32>
    %218 = arith.addf %216, %217 : vector<16x64xf32>
    %219 = arith.mulf %218, %211 : vector<16x64xf32>
    %cst_131 = arith.constant -0.284496725 : f32
    %220 = vector.broadcast %cst_131 : f32 to vector<16x64xf32>
    %221 = arith.addf %219, %220 : vector<16x64xf32>
    %222 = arith.mulf %221, %211 : vector<16x64xf32>
    %cst_132 = arith.constant 0.254829586 : f32
    %223 = vector.broadcast %cst_132 : f32 to vector<16x64xf32>
    %224 = arith.addf %222, %223 : vector<16x64xf32>
    %225 = arith.mulf %224, %211 : vector<16x64xf32>
    %cst_133 = arith.constant 0.000000e+00 : f32
    %226 = vector.broadcast %cst_133 : f32 to vector<16x64xf32>
    %227 = arith.subf %226, %206 : vector<16x64xf32>
    %228 = arith.mulf %227, %206 : vector<16x64xf32>
    %229 = math.exp %228 : vector<16x64xf32>
    %230 = arith.mulf %225, %229 : vector<16x64xf32>
    %cst_134 = arith.constant 1.000000e+00 : f32
    %231 = vector.broadcast %cst_134 : f32 to vector<16x64xf32>
    %232 = arith.subf %231, %230 : vector<16x64xf32>
    %233 = arith.mulf %205, %232 : vector<16x64xf32>
    %cst_135 = arith.constant 1.000000e+00 : f32
    %234 = vector.broadcast %cst_135 : f32 to vector<16x64xf32>
    %235 = arith.addf %234, %233 : vector<16x64xf32>
    %236 = arith.mulf %198, %235 : vector<16x64xf32>
    %237 = arith.truncf %236 : vector<16x64xf32> to vector<16x64xbf16>
    %c0_136 = arith.constant 0 : index
    %c0_137 = arith.constant 0 : index
    %c0_138 = arith.constant 0 : index
    %238 = vector.load %arg13[%c0_136, %c0_137, %c0_138] : memref<2x64x32xbf16, #tpu.memory_space<vmem>>, vector<1x64x32xbf16>
    %239 = vector.shape_cast %238 : vector<1x64x32xbf16> to vector<64x32xbf16>
    %cst_139 = arith.constant dense<0.000000e+00> : vector<16x32xf32>
    %240 = tpu.matmul %237, %239, %cst_139 {dimension_numbers = #tpu.dot_dimension_numbers<[1], [0], [0], [1], [0, 0, 1, 1], [], []>} : vector<16x64xbf16>, vector<64x32xbf16>, vector<16x32xf32> -> vector<16x32xf32>
    %c0_140 = arith.constant 0 : index
    %c0_141 = arith.constant 0 : index
    %c0_142 = arith.constant 0 : index
    %241 = vector.load %arg14[%c0_140, %c0_141, %c0_142] : memref<2x1x32xf32, #tpu.memory_space<vmem>>, vector<1x1x32xf32>
    %242 = vector.shape_cast %241 : vector<1x1x32xf32> to vector<1x32xf32>
    %243 = vector.broadcast %242 : vector<1x32xf32> to vector<16x32xf32>
    %244 = arith.addf %240, %243 : vector<16x32xf32>
    %245 = arith.addf %244, %188 : vector<16x32xf32>
    %c0_143 = arith.constant 0 : index
    %c0_144 = arith.constant 0 : index
    %c0_145 = arith.constant 0 : index
    %246 = vector.load %arg15[%c0_143, %c0_144, %c0_145] : memref<2x1x32xf32, #tpu.memory_space<vmem>>, vector<1x1x32xf32>
    %247 = vector.shape_cast %246 : vector<1x1x32xf32> to vector<1x32xf32>
    %c0_146 = arith.constant 0 : index
    %c0_147 = arith.constant 0 : index
    %c0_148 = arith.constant 0 : index
    %248 = vector.load %arg16[%c0_146, %c0_147, %c0_148] : memref<2x1x32xf32, #tpu.memory_space<vmem>>, vector<1x1x32xf32>
    %249 = vector.shape_cast %248 : vector<1x1x32xf32> to vector<1x32xf32>
    %cst_149 = arith.constant dense<0.000000e+00> : vector<16xf32>
    %250 = vector.multi_reduction <add>, %245, %cst_149 [1] : vector<16x32xf32> to vector<16xf32>
    %251 = vector.shape_cast %250 : vector<16xf32> to vector<16x1xf32>
    %cst_150 = arith.constant 3.200000e+01 : f32
    %252 = vector.broadcast %cst_150 : f32 to vector<16x1xf32>
    %253 = arith.divf %251, %252 : vector<16x1xf32>
    %254 = vector.broadcast %253 : vector<16x1xf32> to vector<16x32xf32>
    %255 = arith.subf %245, %254 : vector<16x32xf32>
    %256 = arith.mulf %255, %255 : vector<16x32xf32>
    %cst_151 = arith.constant dense<0.000000e+00> : vector<16xf32>
    %257 = vector.multi_reduction <add>, %256, %cst_151 [1] : vector<16x32xf32> to vector<16xf32>
    %258 = vector.shape_cast %257 : vector<16xf32> to vector<16x1xf32>
    %cst_152 = arith.constant 3.200000e+01 : f32
    %259 = vector.broadcast %cst_152 : f32 to vector<16x1xf32>
    %260 = arith.divf %258, %259 : vector<16x1xf32>
    %cst_153 = arith.constant 9.99999996E-13 : f32
    %261 = vector.broadcast %cst_153 : f32 to vector<16x1xf32>
    %262 = arith.addf %260, %261 : vector<16x1xf32>
    %263 = math.rsqrt %262 : vector<16x1xf32>
    %264 = vector.broadcast %263 : vector<16x1xf32> to vector<16x32xf32>
    %265 = arith.mulf %255, %264 : vector<16x32xf32>
    %266 = vector.broadcast %247 : vector<1x32xf32> to vector<16x32xf32>
    %267 = arith.mulf %265, %266 : vector<16x32xf32>
    %268 = vector.broadcast %249 : vector<1x32xf32> to vector<16x32xf32>
    %269 = arith.addf %267, %268 : vector<16x32xf32>
    %270 = vector.extract_strided_slice %269 {offsets = [0, 0], sizes = [1, 32], strides = [1, 1]} : vector<16x32xf32> to vector<1x32xf32>
    %271 = vector.extract_strided_slice %269 {offsets = [8, 0], sizes = [1, 32], strides = [1, 1]} : vector<16x32xf32> to vector<1x32xf32>
    %272 = tpu.concatenate %270, %271 in 0 : vector<1x32xf32>, vector<1x32xf32> -> vector<2x32xf32>
    %273 = arith.truncf %272 : vector<2x32xf32> to vector<2x32xbf16>
    %274 = arith.truncf %269 : vector<16x32xf32> to vector<16x32xbf16>
    %c1_154 = arith.constant 1 : index
    %c0_155 = arith.constant 0 : index
    %c0_156 = arith.constant 0 : index
    %c0_157 = arith.constant 0 : index
    %275 = vector.load %arg1[%c1_154, %c0_155, %c0_156, %c0_157] : memref<2x2x32x16xbf16, #tpu.memory_space<vmem>>, vector<1x1x32x16xbf16>
    %276 = vector.shape_cast %275 : vector<1x1x32x16xbf16> to vector<32x16xbf16>
    %cst_158 = arith.constant dense<0.000000e+00> : vector<2x16xf32>
    %277 = tpu.matmul %273, %276, %cst_158 {dimension_numbers = #tpu.dot_dimension_numbers<[1], [0], [0], [1], [0, 0, 1, 1], [], []>} : vector<2x32xbf16>, vector<32x16xbf16>, vector<2x16xf32> -> vector<2x16xf32>
    %c1_159 = arith.constant 1 : index
    %c0_160 = arith.constant 0 : index
    %c0_161 = arith.constant 0 : index
    %c0_162 = arith.constant 0 : index
    %278 = vector.load %arg2[%c1_159, %c0_160, %c0_161, %c0_162] : memref<2x2x1x16xf32, #tpu.memory_space<vmem>>, vector<1x1x1x16xf32>
    %279 = vector.shape_cast %278 : vector<1x1x1x16xf32> to vector<1x16xf32>
    %280 = vector.broadcast %279 : vector<1x16xf32> to vector<2x16xf32>
    %281 = arith.addf %277, %280 : vector<2x16xf32>
    %c1_163 = arith.constant 1 : index
    %c0_164 = arith.constant 0 : index
    %c0_165 = arith.constant 0 : index
    %c0_166 = arith.constant 0 : index
    %282 = vector.load %arg3[%c1_163, %c0_164, %c0_165, %c0_166] : memref<2x2x32x16xbf16, #tpu.memory_space<vmem>>, vector<1x1x32x16xbf16>
    %283 = vector.shape_cast %282 : vector<1x1x32x16xbf16> to vector<32x16xbf16>
    %cst_167 = arith.constant dense<0.000000e+00> : vector<16x16xf32>
    %284 = tpu.matmul %274, %283, %cst_167 {dimension_numbers = #tpu.dot_dimension_numbers<[1], [0], [0], [1], [0, 0, 1, 1], [], []>} : vector<16x32xbf16>, vector<32x16xbf16>, vector<16x16xf32> -> vector<16x16xf32>
    %c1_168 = arith.constant 1 : index
    %c0_169 = arith.constant 0 : index
    %c0_170 = arith.constant 0 : index
    %c0_171 = arith.constant 0 : index
    %285 = vector.load %arg4[%c1_168, %c0_169, %c0_170, %c0_171] : memref<2x2x1x16xf32, #tpu.memory_space<vmem>>, vector<1x1x1x16xf32>
    %286 = vector.shape_cast %285 : vector<1x1x1x16xf32> to vector<1x16xf32>
    %287 = vector.broadcast %286 : vector<1x16xf32> to vector<16x16xf32>
    %288 = arith.addf %284, %287 : vector<16x16xf32>
    %c1_172 = arith.constant 1 : index
    %c0_173 = arith.constant 0 : index
    %c0_174 = arith.constant 0 : index
    %c0_175 = arith.constant 0 : index
    %289 = vector.load %arg5[%c1_172, %c0_173, %c0_174, %c0_175] : memref<2x2x32x16xbf16, #tpu.memory_space<vmem>>, vector<1x1x32x16xbf16>
    %290 = vector.shape_cast %289 : vector<1x1x32x16xbf16> to vector<32x16xbf16>
    %cst_176 = arith.constant dense<0.000000e+00> : vector<16x16xf32>
    %291 = tpu.matmul %274, %290, %cst_176 {dimension_numbers = #tpu.dot_dimension_numbers<[1], [0], [0], [1], [0, 0, 1, 1], [], []>} : vector<16x32xbf16>, vector<32x16xbf16>, vector<16x16xf32> -> vector<16x16xf32>
    %c1_177 = arith.constant 1 : index
    %c0_178 = arith.constant 0 : index
    %c0_179 = arith.constant 0 : index
    %c0_180 = arith.constant 0 : index
    %292 = vector.load %arg6[%c1_177, %c0_178, %c0_179, %c0_180] : memref<2x2x1x16xf32, #tpu.memory_space<vmem>>, vector<1x1x1x16xf32>
    %293 = vector.shape_cast %292 : vector<1x1x1x16xf32> to vector<1x16xf32>
    %294 = vector.broadcast %293 : vector<1x16xf32> to vector<16x16xf32>
    %295 = arith.addf %291, %294 : vector<16x16xf32>
    %296 = arith.truncf %281 : vector<2x16xf32> to vector<2x16xbf16>
    %297 = arith.truncf %288 : vector<16x16xf32> to vector<16x16xbf16>
    %298 = arith.truncf %295 : vector<16x16xf32> to vector<16x16xbf16>
    %c1_181 = arith.constant 1 : index
    %c1_182 = arith.constant 1 : index
    %c0_183 = arith.constant 0 : index
    %c0_184 = arith.constant 0 : index
    %299 = vector.load %arg1[%c1_181, %c1_182, %c0_183, %c0_184] : memref<2x2x32x16xbf16, #tpu.memory_space<vmem>>, vector<1x1x32x16xbf16>
    %300 = vector.shape_cast %299 : vector<1x1x32x16xbf16> to vector<32x16xbf16>
    %cst_185 = arith.constant dense<0.000000e+00> : vector<2x16xf32>
    %301 = tpu.matmul %273, %300, %cst_185 {dimension_numbers = #tpu.dot_dimension_numbers<[1], [0], [0], [1], [0, 0, 1, 1], [], []>} : vector<2x32xbf16>, vector<32x16xbf16>, vector<2x16xf32> -> vector<2x16xf32>
    %c1_186 = arith.constant 1 : index
    %c1_187 = arith.constant 1 : index
    %c0_188 = arith.constant 0 : index
    %c0_189 = arith.constant 0 : index
    %302 = vector.load %arg2[%c1_186, %c1_187, %c0_188, %c0_189] : memref<2x2x1x16xf32, #tpu.memory_space<vmem>>, vector<1x1x1x16xf32>
    %303 = vector.shape_cast %302 : vector<1x1x1x16xf32> to vector<1x16xf32>
    %304 = vector.broadcast %303 : vector<1x16xf32> to vector<2x16xf32>
    %305 = arith.addf %301, %304 : vector<2x16xf32>
    %c1_190 = arith.constant 1 : index
    %c1_191 = arith.constant 1 : index
    %c0_192 = arith.constant 0 : index
    %c0_193 = arith.constant 0 : index
    %306 = vector.load %arg3[%c1_190, %c1_191, %c0_192, %c0_193] : memref<2x2x32x16xbf16, #tpu.memory_space<vmem>>, vector<1x1x32x16xbf16>
    %307 = vector.shape_cast %306 : vector<1x1x32x16xbf16> to vector<32x16xbf16>
    %cst_194 = arith.constant dense<0.000000e+00> : vector<16x16xf32>
    %308 = tpu.matmul %274, %307, %cst_194 {dimension_numbers = #tpu.dot_dimension_numbers<[1], [0], [0], [1], [0, 0, 1, 1], [], []>} : vector<16x32xbf16>, vector<32x16xbf16>, vector<16x16xf32> -> vector<16x16xf32>
    %c1_195 = arith.constant 1 : index
    %c1_196 = arith.constant 1 : index
    %c0_197 = arith.constant 0 : index
    %c0_198 = arith.constant 0 : index
    %309 = vector.load %arg4[%c1_195, %c1_196, %c0_197, %c0_198] : memref<2x2x1x16xf32, #tpu.memory_space<vmem>>, vector<1x1x1x16xf32>
    %310 = vector.shape_cast %309 : vector<1x1x1x16xf32> to vector<1x16xf32>
    %311 = vector.broadcast %310 : vector<1x16xf32> to vector<16x16xf32>
    %312 = arith.addf %308, %311 : vector<16x16xf32>
    %c1_199 = arith.constant 1 : index
    %c1_200 = arith.constant 1 : index
    %c0_201 = arith.constant 0 : index
    %c0_202 = arith.constant 0 : index
    %313 = vector.load %arg5[%c1_199, %c1_200, %c0_201, %c0_202] : memref<2x2x32x16xbf16, #tpu.memory_space<vmem>>, vector<1x1x32x16xbf16>
    %314 = vector.shape_cast %313 : vector<1x1x32x16xbf16> to vector<32x16xbf16>
    %cst_203 = arith.constant dense<0.000000e+00> : vector<16x16xf32>
    %315 = tpu.matmul %274, %314, %cst_203 {dimension_numbers = #tpu.dot_dimension_numbers<[1], [0], [0], [1], [0, 0, 1, 1], [], []>} : vector<16x32xbf16>, vector<32x16xbf16>, vector<16x16xf32> -> vector<16x16xf32>
    %c1_204 = arith.constant 1 : index
    %c1_205 = arith.constant 1 : index
    %c0_206 = arith.constant 0 : index
    %c0_207 = arith.constant 0 : index
    %316 = vector.load %arg6[%c1_204, %c1_205, %c0_206, %c0_207] : memref<2x2x1x16xf32, #tpu.memory_space<vmem>>, vector<1x1x1x16xf32>
    %317 = vector.shape_cast %316 : vector<1x1x1x16xf32> to vector<1x16xf32>
    %318 = vector.broadcast %317 : vector<1x16xf32> to vector<16x16xf32>
    %319 = arith.addf %315, %318 : vector<16x16xf32>
    %320 = arith.truncf %305 : vector<2x16xf32> to vector<2x16xbf16>
    %321 = arith.truncf %312 : vector<16x16xf32> to vector<16x16xbf16>
    %322 = arith.truncf %319 : vector<16x16xf32> to vector<16x16xbf16>
    %cst_208 = arith.constant 0.000000e+00 : f32
    %323 = vector.broadcast %cst_208 : f32 to vector<1x32xf32>
    %324 = vector.extract_strided_slice %296 {offsets = [0, 0], sizes = [1, 16], strides = [1, 1]} : vector<2x16xbf16> to vector<1x16xbf16>
    %325 = vector.extract_strided_slice %297 {offsets = [0, 0], sizes = [8, 16], strides = [1, 1]} : vector<16x16xbf16> to vector<8x16xbf16>
    %326 = vector.extract_strided_slice %298 {offsets = [0, 0], sizes = [8, 16], strides = [1, 1]} : vector<16x16xbf16> to vector<8x16xbf16>
    "tpu.trace_start"() <{level = 10 : i32, message = "qf,kf->qk"}> : () -> ()
    %cst_209 = arith.constant dense<0.000000e+00> : vector<1x8xf32>
    %327 = tpu.matmul %324, %325, %cst_209 {dimension_numbers = #tpu.dot_dimension_numbers<[1], [1], [0], [0], [0, 0, 1, 0], [], []>} : vector<1x16xbf16>, vector<8x16xbf16>, vector<1x8xf32> -> vector<1x8xf32>
    "tpu.trace_stop"() : () -> ()
    %cst_210 = arith.constant dense<0xFF800000> : vector<1xf32>
    %328 = vector.multi_reduction <maximumf>, %327, %cst_210 [1] : vector<1x8xf32> to vector<1xf32>
    %329 = vector.shape_cast %328 : vector<1xf32> to vector<1x1xf32>
    %330 = vector.broadcast %329 : vector<1x1xf32> to vector<1x8xf32>
    %331 = arith.subf %327, %330 : vector<1x8xf32>
    %332 = math.exp %331 : vector<1x8xf32>
    %cst_211 = arith.constant dense<0.000000e+00> : vector<1xf32>
    %333 = vector.multi_reduction <add>, %332, %cst_211 [1] : vector<1x8xf32> to vector<1xf32>
    %334 = vector.shape_cast %333 : vector<1xf32> to vector<1x1xf32>
    %335 = tpu.reciprocal %334 {approx = true} : vector<1x1xf32> -> vector<1x1xf32>
    %336 = vector.broadcast %335 : vector<1x1xf32> to vector<1x8xf32>
    %337 = arith.mulf %332, %336 : vector<1x8xf32>
    %338 = arith.truncf %337 : vector<1x8xf32> to vector<1x8xbf16>
    %cst_212 = arith.constant dense<0.000000e+00> : vector<1x16xf32>
    %339 = tpu.matmul %338, %326, %cst_212 {dimension_numbers = #tpu.dot_dimension_numbers<[1], [0], [0], [1], [0, 0, 1, 1], [], []>} : vector<1x8xbf16>, vector<8x16xbf16>, vector<1x16xf32> -> vector<1x16xf32>
    %340 = arith.truncf %339 : vector<1x16xf32> to vector<1x16xbf16>
    %c1_213 = arith.constant 1 : index
    %c0_214 = arith.constant 0 : index
    %c0_215 = arith.constant 0 : index
    %c0_216 = arith.constant 0 : index
    %341 = vector.load %arg7[%c1_213, %c0_214, %c0_215, %c0_216] : memref<2x2x16x32xbf16, #tpu.memory_space<vmem>>, vector<1x1x16x32xbf16>
    %342 = vector.shape_cast %341 : vector<1x1x16x32xbf16> to vector<16x32xbf16>
    %cst_217 = arith.constant dense<0.000000e+00> : vector<1x32xf32>
    %343 = tpu.matmul %340, %342, %cst_217 {dimension_numbers = #tpu.dot_dimension_numbers<[1], [0], [0], [1], [0, 0, 1, 1], [], []>} : vector<1x16xbf16>, vector<16x32xbf16>, vector<1x32xf32> -> vector<1x32xf32>
    %344 = arith.addf %323, %343 : vector<1x32xf32>
    %345 = vector.extract_strided_slice %320 {offsets = [0, 0], sizes = [1, 16], strides = [1, 1]} : vector<2x16xbf16> to vector<1x16xbf16>
    %346 = vector.extract_strided_slice %321 {offsets = [0, 0], sizes = [8, 16], strides = [1, 1]} : vector<16x16xbf16> to vector<8x16xbf16>
    %347 = vector.extract_strided_slice %322 {offsets = [0, 0], sizes = [8, 16], strides = [1, 1]} : vector<16x16xbf16> to vector<8x16xbf16>
    "tpu.trace_start"() <{level = 10 : i32, message = "qf,kf->qk"}> : () -> ()
    %cst_218 = arith.constant dense<0.000000e+00> : vector<1x8xf32>
    %348 = tpu.matmul %345, %346, %cst_218 {dimension_numbers = #tpu.dot_dimension_numbers<[1], [1], [0], [0], [0, 0, 1, 0], [], []>} : vector<1x16xbf16>, vector<8x16xbf16>, vector<1x8xf32> -> vector<1x8xf32>
    "tpu.trace_stop"() : () -> ()
    %cst_219 = arith.constant dense<0xFF800000> : vector<1xf32>
    %349 = vector.multi_reduction <maximumf>, %348, %cst_219 [1] : vector<1x8xf32> to vector<1xf32>
    %350 = vector.shape_cast %349 : vector<1xf32> to vector<1x1xf32>
    %351 = vector.broadcast %350 : vector<1x1xf32> to vector<1x8xf32>
    %352 = arith.subf %348, %351 : vector<1x8xf32>
    %353 = math.exp %352 : vector<1x8xf32>
    %cst_220 = arith.constant dense<0.000000e+00> : vector<1xf32>
    %354 = vector.multi_reduction <add>, %353, %cst_220 [1] : vector<1x8xf32> to vector<1xf32>
    %355 = vector.shape_cast %354 : vector<1xf32> to vector<1x1xf32>
    %356 = tpu.reciprocal %355 {approx = true} : vector<1x1xf32> -> vector<1x1xf32>
    %357 = vector.broadcast %356 : vector<1x1xf32> to vector<1x8xf32>
    %358 = arith.mulf %353, %357 : vector<1x8xf32>
    %359 = arith.truncf %358 : vector<1x8xf32> to vector<1x8xbf16>
    %cst_221 = arith.constant dense<0.000000e+00> : vector<1x16xf32>
    %360 = tpu.matmul %359, %347, %cst_221 {dimension_numbers = #tpu.dot_dimension_numbers<[1], [0], [0], [1], [0, 0, 1, 1], [], []>} : vector<1x8xbf16>, vector<8x16xbf16>, vector<1x16xf32> -> vector<1x16xf32>
    %361 = arith.truncf %360 : vector<1x16xf32> to vector<1x16xbf16>
    %c1_222 = arith.constant 1 : index
    %c1_223 = arith.constant 1 : index
    %c0_224 = arith.constant 0 : index
    %c0_225 = arith.constant 0 : index
    %362 = vector.load %arg7[%c1_222, %c1_223, %c0_224, %c0_225] : memref<2x2x16x32xbf16, #tpu.memory_space<vmem>>, vector<1x1x16x32xbf16>
    %363 = vector.shape_cast %362 : vector<1x1x16x32xbf16> to vector<16x32xbf16>
    %cst_226 = arith.constant dense<0.000000e+00> : vector<1x32xf32>
    %364 = tpu.matmul %361, %363, %cst_226 {dimension_numbers = #tpu.dot_dimension_numbers<[1], [0], [0], [1], [0, 0, 1, 1], [], []>} : vector<1x16xbf16>, vector<16x32xbf16>, vector<1x32xf32> -> vector<1x32xf32>
    %365 = arith.addf %344, %364 : vector<1x32xf32>
    %cst_227 = arith.constant 0.000000e+00 : f32
    %366 = vector.broadcast %cst_227 : f32 to vector<1x32xf32>
    %367 = vector.extract_strided_slice %296 {offsets = [1, 0], sizes = [1, 16], strides = [1, 1]} : vector<2x16xbf16> to vector<1x16xbf16>
    %368 = vector.extract_strided_slice %297 {offsets = [8, 0], sizes = [8, 16], strides = [1, 1]} : vector<16x16xbf16> to vector<8x16xbf16>
    %369 = vector.extract_strided_slice %298 {offsets = [8, 0], sizes = [8, 16], strides = [1, 1]} : vector<16x16xbf16> to vector<8x16xbf16>
    "tpu.trace_start"() <{level = 10 : i32, message = "qf,kf->qk"}> : () -> ()
    %cst_228 = arith.constant dense<0.000000e+00> : vector<1x8xf32>
    %370 = tpu.matmul %367, %368, %cst_228 {dimension_numbers = #tpu.dot_dimension_numbers<[1], [1], [0], [0], [0, 0, 1, 0], [], []>} : vector<1x16xbf16>, vector<8x16xbf16>, vector<1x8xf32> -> vector<1x8xf32>
    "tpu.trace_stop"() : () -> ()
    %cst_229 = arith.constant dense<0xFF800000> : vector<1xf32>
    %371 = vector.multi_reduction <maximumf>, %370, %cst_229 [1] : vector<1x8xf32> to vector<1xf32>
    %372 = vector.shape_cast %371 : vector<1xf32> to vector<1x1xf32>
    %373 = vector.broadcast %372 : vector<1x1xf32> to vector<1x8xf32>
    %374 = arith.subf %370, %373 : vector<1x8xf32>
    %375 = math.exp %374 : vector<1x8xf32>
    %cst_230 = arith.constant dense<0.000000e+00> : vector<1xf32>
    %376 = vector.multi_reduction <add>, %375, %cst_230 [1] : vector<1x8xf32> to vector<1xf32>
    %377 = vector.shape_cast %376 : vector<1xf32> to vector<1x1xf32>
    %378 = tpu.reciprocal %377 {approx = true} : vector<1x1xf32> -> vector<1x1xf32>
    %379 = vector.broadcast %378 : vector<1x1xf32> to vector<1x8xf32>
    %380 = arith.mulf %375, %379 : vector<1x8xf32>
    %381 = arith.truncf %380 : vector<1x8xf32> to vector<1x8xbf16>
    %cst_231 = arith.constant dense<0.000000e+00> : vector<1x16xf32>
    %382 = tpu.matmul %381, %369, %cst_231 {dimension_numbers = #tpu.dot_dimension_numbers<[1], [0], [0], [1], [0, 0, 1, 1], [], []>} : vector<1x8xbf16>, vector<8x16xbf16>, vector<1x16xf32> -> vector<1x16xf32>
    %383 = arith.truncf %382 : vector<1x16xf32> to vector<1x16xbf16>
    %c1_232 = arith.constant 1 : index
    %c0_233 = arith.constant 0 : index
    %c0_234 = arith.constant 0 : index
    %c0_235 = arith.constant 0 : index
    %384 = vector.load %arg7[%c1_232, %c0_233, %c0_234, %c0_235] : memref<2x2x16x32xbf16, #tpu.memory_space<vmem>>, vector<1x1x16x32xbf16>
    %385 = vector.shape_cast %384 : vector<1x1x16x32xbf16> to vector<16x32xbf16>
    %cst_236 = arith.constant dense<0.000000e+00> : vector<1x32xf32>
    %386 = tpu.matmul %383, %385, %cst_236 {dimension_numbers = #tpu.dot_dimension_numbers<[1], [0], [0], [1], [0, 0, 1, 1], [], []>} : vector<1x16xbf16>, vector<16x32xbf16>, vector<1x32xf32> -> vector<1x32xf32>
    %387 = arith.addf %366, %386 : vector<1x32xf32>
    %388 = vector.extract_strided_slice %320 {offsets = [1, 0], sizes = [1, 16], strides = [1, 1]} : vector<2x16xbf16> to vector<1x16xbf16>
    %389 = vector.extract_strided_slice %321 {offsets = [8, 0], sizes = [8, 16], strides = [1, 1]} : vector<16x16xbf16> to vector<8x16xbf16>
    %390 = vector.extract_strided_slice %322 {offsets = [8, 0], sizes = [8, 16], strides = [1, 1]} : vector<16x16xbf16> to vector<8x16xbf16>
    "tpu.trace_start"() <{level = 10 : i32, message = "qf,kf->qk"}> : () -> ()
    %cst_237 = arith.constant dense<0.000000e+00> : vector<1x8xf32>
    %391 = tpu.matmul %388, %389, %cst_237 {dimension_numbers = #tpu.dot_dimension_numbers<[1], [1], [0], [0], [0, 0, 1, 0], [], []>} : vector<1x16xbf16>, vector<8x16xbf16>, vector<1x8xf32> -> vector<1x8xf32>
    "tpu.trace_stop"() : () -> ()
    %cst_238 = arith.constant dense<0xFF800000> : vector<1xf32>
    %392 = vector.multi_reduction <maximumf>, %391, %cst_238 [1] : vector<1x8xf32> to vector<1xf32>
    %393 = vector.shape_cast %392 : vector<1xf32> to vector<1x1xf32>
    %394 = vector.broadcast %393 : vector<1x1xf32> to vector<1x8xf32>
    %395 = arith.subf %391, %394 : vector<1x8xf32>
    %396 = math.exp %395 : vector<1x8xf32>
    %cst_239 = arith.constant dense<0.000000e+00> : vector<1xf32>
    %397 = vector.multi_reduction <add>, %396, %cst_239 [1] : vector<1x8xf32> to vector<1xf32>
    %398 = vector.shape_cast %397 : vector<1xf32> to vector<1x1xf32>
    %399 = tpu.reciprocal %398 {approx = true} : vector<1x1xf32> -> vector<1x1xf32>
    %400 = vector.broadcast %399 : vector<1x1xf32> to vector<1x8xf32>
    %401 = arith.mulf %396, %400 : vector<1x8xf32>
    %402 = arith.truncf %401 : vector<1x8xf32> to vector<1x8xbf16>
    %cst_240 = arith.constant dense<0.000000e+00> : vector<1x16xf32>
    %403 = tpu.matmul %402, %390, %cst_240 {dimension_numbers = #tpu.dot_dimension_numbers<[1], [0], [0], [1], [0, 0, 1, 1], [], []>} : vector<1x8xbf16>, vector<8x16xbf16>, vector<1x16xf32> -> vector<1x16xf32>
    %404 = arith.truncf %403 : vector<1x16xf32> to vector<1x16xbf16>
    %c1_241 = arith.constant 1 : index
    %c1_242 = arith.constant 1 : index
    %c0_243 = arith.constant 0 : index
    %c0_244 = arith.constant 0 : index
    %405 = vector.load %arg7[%c1_241, %c1_242, %c0_243, %c0_244] : memref<2x2x16x32xbf16, #tpu.memory_space<vmem>>, vector<1x1x16x32xbf16>
    %406 = vector.shape_cast %405 : vector<1x1x16x32xbf16> to vector<16x32xbf16>
    %cst_245 = arith.constant dense<0.000000e+00> : vector<1x32xf32>
    %407 = tpu.matmul %404, %406, %cst_245 {dimension_numbers = #tpu.dot_dimension_numbers<[1], [0], [0], [1], [0, 0, 1, 1], [], []>} : vector<1x16xbf16>, vector<16x32xbf16>, vector<1x32xf32> -> vector<1x32xf32>
    %408 = arith.addf %387, %407 : vector<1x32xf32>
    %409 = tpu.concatenate %365, %408 in 0 : vector<1x32xf32>, vector<1x32xf32> -> vector<2x32xf32>
    %c1_246 = arith.constant 1 : index
    %c0_247 = arith.constant 0 : index
    %c0_248 = arith.constant 0 : index
    %410 = vector.load %arg8[%c1_246, %c0_247, %c0_248] : memref<2x1x32xf32, #tpu.memory_space<vmem>>, vector<1x1x32xf32>
    %411 = vector.shape_cast %410 : vector<1x1x32xf32> to vector<1x32xf32>
    %412 = vector.broadcast %411 : vector<1x32xf32> to vector<2x32xf32>
    %413 = arith.addf %409, %412 : vector<2x32xf32>
    %414 = arith.addf %413, %272 : vector<2x32xf32>
    %c1_249 = arith.constant 1 : index
    %c0_250 = arith.constant 0 : index
    %c0_251 = arith.constant 0 : index
    %415 = vector.load %arg9[%c1_249, %c0_250, %c0_251] : memref<2x1x32xf32, #tpu.memory_space<vmem>>, vector<1x1x32xf32>
    %416 = vector.shape_cast %415 : vector<1x1x32xf32> to vector<1x32xf32>
    %c1_252 = arith.constant 1 : index
    %c0_253 = arith.constant 0 : index
    %c0_254 = arith.constant 0 : index
    %417 = vector.load %arg10[%c1_252, %c0_253, %c0_254] : memref<2x1x32xf32, #tpu.memory_space<vmem>>, vector<1x1x32xf32>
    %418 = vector.shape_cast %417 : vector<1x1x32xf32> to vector<1x32xf32>
    %cst_255 = arith.constant dense<0.000000e+00> : vector<2xf32>
    %419 = vector.multi_reduction <add>, %414, %cst_255 [1] : vector<2x32xf32> to vector<2xf32>
    %420 = vector.shape_cast %419 : vector<2xf32> to vector<2x1xf32>
    %cst_256 = arith.constant 3.200000e+01 : f32
    %421 = vector.broadcast %cst_256 : f32 to vector<2x1xf32>
    %422 = arith.divf %420, %421 : vector<2x1xf32>
    %423 = vector.broadcast %422 : vector<2x1xf32> to vector<2x32xf32>
    %424 = arith.subf %414, %423 : vector<2x32xf32>
    %425 = arith.mulf %424, %424 : vector<2x32xf32>
    %cst_257 = arith.constant dense<0.000000e+00> : vector<2xf32>
    %426 = vector.multi_reduction <add>, %425, %cst_257 [1] : vector<2x32xf32> to vector<2xf32>
    %427 = vector.shape_cast %426 : vector<2xf32> to vector<2x1xf32>
    %cst_258 = arith.constant 3.200000e+01 : f32
    %428 = vector.broadcast %cst_258 : f32 to vector<2x1xf32>
    %429 = arith.divf %427, %428 : vector<2x1xf32>
    %cst_259 = arith.constant 9.99999996E-13 : f32
    %430 = vector.broadcast %cst_259 : f32 to vector<2x1xf32>
    %431 = arith.addf %429, %430 : vector<2x1xf32>
    %432 = math.rsqrt %431 : vector<2x1xf32>
    %433 = vector.broadcast %432 : vector<2x1xf32> to vector<2x32xf32>
    %434 = arith.mulf %424, %433 : vector<2x32xf32>
    %435 = vector.broadcast %416 : vector<1x32xf32> to vector<2x32xf32>
    %436 = arith.mulf %434, %435 : vector<2x32xf32>
    %437 = vector.broadcast %418 : vector<1x32xf32> to vector<2x32xf32>
    %438 = arith.addf %436, %437 : vector<2x32xf32>
    %439 = arith.truncf %438 : vector<2x32xf32> to vector<2x32xbf16>
    %c1_260 = arith.constant 1 : index
    %c0_261 = arith.constant 0 : index
    %c0_262 = arith.constant 0 : index
    %440 = vector.load %arg11[%c1_260, %c0_261, %c0_262] : memref<2x32x64xbf16, #tpu.memory_space<vmem>>, vector<1x32x64xbf16>
    %441 = vector.shape_cast %440 : vector<1x32x64xbf16> to vector<32x64xbf16>
    %cst_263 = arith.constant dense<0.000000e+00> : vector<2x64xf32>
    %442 = tpu.matmul %439, %441, %cst_263 {dimension_numbers = #tpu.dot_dimension_numbers<[1], [0], [0], [1], [0, 0, 1, 1], [], []>} : vector<2x32xbf16>, vector<32x64xbf16>, vector<2x64xf32> -> vector<2x64xf32>
    %c1_264 = arith.constant 1 : index
    %c0_265 = arith.constant 0 : index
    %c0_266 = arith.constant 0 : index
    %443 = vector.load %arg12[%c1_264, %c0_265, %c0_266] : memref<2x1x64xf32, #tpu.memory_space<vmem>>, vector<1x1x64xf32>
    %444 = vector.shape_cast %443 : vector<1x1x64xf32> to vector<1x64xf32>
    %445 = vector.broadcast %444 : vector<1x64xf32> to vector<2x64xf32>
    %446 = arith.addf %442, %445 : vector<2x64xf32>
    %cst_267 = arith.constant 5.000000e-01 : f32
    %447 = vector.broadcast %cst_267 : f32 to vector<2x64xf32>
    %448 = arith.mulf %447, %446 : vector<2x64xf32>
    %cst_268 = arith.constant 0.707106769 : f32
    %449 = vector.broadcast %cst_268 : f32 to vector<2x64xf32>
    %450 = arith.mulf %446, %449 : vector<2x64xf32>
    %cst_269 = arith.constant 0.000000e+00 : f32
    %451 = vector.broadcast %cst_269 : f32 to vector<2x64xf32>
    %452 = arith.cmpf oge, %450, %451 : vector<2x64xf32>
    %cst_270 = arith.constant 1.000000e+00 : f32
    %cst_271 = arith.constant -1.000000e+00 : f32
    %453 = vector.broadcast %cst_270 : f32 to vector<2x64xf32>
    %454 = vector.broadcast %cst_271 : f32 to vector<2x64xf32>
    %455 = arith.select %452, %453, %454 : vector<2x64xi1>, vector<2x64xf32>
    %456 = math.absf %450 : vector<2x64xf32>
    %cst_272 = arith.constant 0.327591091 : f32
    %457 = vector.broadcast %cst_272 : f32 to vector<2x64xf32>
    %458 = arith.mulf %457, %456 : vector<2x64xf32>
    %cst_273 = arith.constant 1.000000e+00 : f32
    %459 = vector.broadcast %cst_273 : f32 to vector<2x64xf32>
    %460 = arith.addf %459, %458 : vector<2x64xf32>
    %461 = tpu.reciprocal %460 {approx = true} : vector<2x64xf32> -> vector<2x64xf32>
    %cst_274 = arith.constant 1.06140542 : f32
    %462 = vector.broadcast %cst_274 : f32 to vector<2x64xf32>
    %463 = arith.mulf %462, %461 : vector<2x64xf32>
    %cst_275 = arith.constant -1.45315206 : f32
    %464 = vector.broadcast %cst_275 : f32 to vector<2x64xf32>
    %465 = arith.addf %463, %464 : vector<2x64xf32>
    %466 = arith.mulf %465, %461 : vector<2x64xf32>
    %cst_276 = arith.constant 1.42141378 : f32
    %467 = vector.broadcast %cst_276 : f32 to vector<2x64xf32>
    %468 = arith.addf %466, %467 : vector<2x64xf32>
    %469 = arith.mulf %468, %461 : vector<2x64xf32>
    %cst_277 = arith.constant -0.284496725 : f32
    %470 = vector.broadcast %cst_277 : f32 to vector<2x64xf32>
    %471 = arith.addf %469, %470 : vector<2x64xf32>
    %472 = arith.mulf %471, %461 : vector<2x64xf32>
    %cst_278 = arith.constant 0.254829586 : f32
    %473 = vector.broadcast %cst_278 : f32 to vector<2x64xf32>
    %474 = arith.addf %472, %473 : vector<2x64xf32>
    %475 = arith.mulf %474, %461 : vector<2x64xf32>
    %cst_279 = arith.constant 0.000000e+00 : f32
    %476 = vector.broadcast %cst_279 : f32 to vector<2x64xf32>
    %477 = arith.subf %476, %456 : vector<2x64xf32>
    %478 = arith.mulf %477, %456 : vector<2x64xf32>
    %479 = math.exp %478 : vector<2x64xf32>
    %480 = arith.mulf %475, %479 : vector<2x64xf32>
    %cst_280 = arith.constant 1.000000e+00 : f32
    %481 = vector.broadcast %cst_280 : f32 to vector<2x64xf32>
    %482 = arith.subf %481, %480 : vector<2x64xf32>
    %483 = arith.mulf %455, %482 : vector<2x64xf32>
    %cst_281 = arith.constant 1.000000e+00 : f32
    %484 = vector.broadcast %cst_281 : f32 to vector<2x64xf32>
    %485 = arith.addf %484, %483 : vector<2x64xf32>
    %486 = arith.mulf %448, %485 : vector<2x64xf32>
    %487 = arith.truncf %486 : vector<2x64xf32> to vector<2x64xbf16>
    %c1_282 = arith.constant 1 : index
    %c0_283 = arith.constant 0 : index
    %c0_284 = arith.constant 0 : index
    %488 = vector.load %arg13[%c1_282, %c0_283, %c0_284] : memref<2x64x32xbf16, #tpu.memory_space<vmem>>, vector<1x64x32xbf16>
    %489 = vector.shape_cast %488 : vector<1x64x32xbf16> to vector<64x32xbf16>
    %cst_285 = arith.constant dense<0.000000e+00> : vector<2x32xf32>
    %490 = tpu.matmul %487, %489, %cst_285 {dimension_numbers = #tpu.dot_dimension_numbers<[1], [0], [0], [1], [0, 0, 1, 1], [], []>} : vector<2x64xbf16>, vector<64x32xbf16>, vector<2x32xf32> -> vector<2x32xf32>
    %c1_286 = arith.constant 1 : index
    %c0_287 = arith.constant 0 : index
    %c0_288 = arith.constant 0 : index
    %491 = vector.load %arg14[%c1_286, %c0_287, %c0_288] : memref<2x1x32xf32, #tpu.memory_space<vmem>>, vector<1x1x32xf32>
    %492 = vector.shape_cast %491 : vector<1x1x32xf32> to vector<1x32xf32>
    %493 = vector.broadcast %492 : vector<1x32xf32> to vector<2x32xf32>
    %494 = arith.addf %490, %493 : vector<2x32xf32>
    %495 = arith.addf %494, %438 : vector<2x32xf32>
    %c1_289 = arith.constant 1 : index
    %c0_290 = arith.constant 0 : index
    %c0_291 = arith.constant 0 : index
    %496 = vector.load %arg15[%c1_289, %c0_290, %c0_291] : memref<2x1x32xf32, #tpu.memory_space<vmem>>, vector<1x1x32xf32>
    %497 = vector.shape_cast %496 : vector<1x1x32xf32> to vector<1x32xf32>
    %c1_292 = arith.constant 1 : index
    %c0_293 = arith.constant 0 : index
    %c0_294 = arith.constant 0 : index
    %498 = vector.load %arg16[%c1_292, %c0_293, %c0_294] : memref<2x1x32xf32, #tpu.memory_space<vmem>>, vector<1x1x32xf32>
    %499 = vector.shape_cast %498 : vector<1x1x32xf32> to vector<1x32xf32>
    %cst_295 = arith.constant dense<0.000000e+00> : vector<2xf32>
    %500 = vector.multi_reduction <add>, %495, %cst_295 [1] : vector<2x32xf32> to vector<2xf32>
    %501 = vector.shape_cast %500 : vector<2xf32> to vector<2x1xf32>
    %cst_296 = arith.constant 3.200000e+01 : f32
    %502 = vector.broadcast %cst_296 : f32 to vector<2x1xf32>
    %503 = arith.divf %501, %502 : vector<2x1xf32>
    %504 = vector.broadcast %503 : vector<2x1xf32> to vector<2x32xf32>
    %505 = arith.subf %495, %504 : vector<2x32xf32>
    %506 = arith.mulf %505, %505 : vector<2x32xf32>
    %cst_297 = arith.constant dense<0.000000e+00> : vector<2xf32>
    %507 = vector.multi_reduction <add>, %506, %cst_297 [1] : vector<2x32xf32> to vector<2xf32>
    %508 = vector.shape_cast %507 : vector<2xf32> to vector<2x1xf32>
    %cst_298 = arith.constant 3.200000e+01 : f32
    %509 = vector.broadcast %cst_298 : f32 to vector<2x1xf32>
    %510 = arith.divf %508, %509 : vector<2x1xf32>
    %cst_299 = arith.constant 9.99999996E-13 : f32
    %511 = vector.broadcast %cst_299 : f32 to vector<2x1xf32>
    %512 = arith.addf %510, %511 : vector<2x1xf32>
    %513 = math.rsqrt %512 : vector<2x1xf32>
    %514 = vector.broadcast %513 : vector<2x1xf32> to vector<2x32xf32>
    %515 = arith.mulf %505, %514 : vector<2x32xf32>
    %516 = vector.broadcast %497 : vector<1x32xf32> to vector<2x32xf32>
    %517 = arith.mulf %515, %516 : vector<2x32xf32>
    %518 = vector.broadcast %499 : vector<1x32xf32> to vector<2x32xf32>
    %519 = arith.addf %517, %518 : vector<2x32xf32>
    %520 = arith.truncf %519 : vector<2x32xf32> to vector<2x32xbf16>
    %c0_300 = arith.constant 0 : index
    %c0_301 = arith.constant 0 : index
    %521 = vector.load %arg19[%c0_300, %c0_301] : memref<32x32xbf16, #tpu.memory_space<vmem>>, vector<32x32xbf16>
    %cst_302 = arith.constant dense<0.000000e+00> : vector<2x32xf32>
    %522 = tpu.matmul %520, %521, %cst_302 {dimension_numbers = #tpu.dot_dimension_numbers<[1], [0], [0], [1], [0, 0, 1, 1], [], []>} : vector<2x32xbf16>, vector<32x32xbf16>, vector<2x32xf32> -> vector<2x32xf32>
    %c0_303 = arith.constant 0 : index
    %c0_304 = arith.constant 0 : index
    %523 = vector.load %arg20[%c0_303, %c0_304] : memref<1x32xf32, #tpu.memory_space<vmem>>, vector<1x32xf32>
    %524 = vector.broadcast %523 : vector<1x32xf32> to vector<2x32xf32>
    %525 = arith.addf %522, %524 : vector<2x32xf32>
    %526 = math.tanh %525 : vector<2x32xf32>
    %c0_305 = arith.constant 0 : index
    %c0_306 = arith.constant 0 : index
    %527 = vector.load %arg21[%c0_305, %c0_306] : memref<2x32xf32, #tpu.memory_space<vmem>>, vector<2x32xf32>
    tpu.vector_store %arg21[%c0_305, %c0_306], %526 {strides = array<i32>} : memref<2x32xf32, #tpu.memory_space<vmem>>, vector<2x32xf32>,
    return
  }
}

</mosaic_0001>

<llo_original>
// kernel: bert_forward.1
$region0: #{bert_forward.1}
  #allocation0 [shape = 'u32[]', space=smem, size = 0x4, offset = 0x4, fixed_abs, tag = 'smem constant byte address 0x4 - core index']
  #allocation1 [shape = 'u32[144,128]{1,0:T(1,128)}', space=vmem, size = 0x12000, scoped, tag = 'internal scratch']
  %s0 = inlined_call_operand.vmem [shape: f32[16,32], index: 0, kind: input, shape index: {}]
  %s1 = inlined_call_operand.vmem [shape: bf16[2,2,32,16], index: 1, kind: input, shape index: {}]
  %s2 = inlined_call_operand.vmem [shape: f32[2,2,1,16], index: 2, kind: input, shape index: {}]
  %s3 = inlined_call_operand.vmem [shape: bf16[2,2,32,16], index: 3, kind: input, shape index: {}]
  %s4 = inlined_call_operand.vmem [shape: f32[2,2,1,16], index: 4, kind: input, shape index: {}]
  %s5 = inlined_call_operand.vmem [shape: bf16[2,2,32,16], index: 5, kind: input, shape index: {}]
  %s6 = inlined_call_operand.vmem [shape: f32[2,2,1,16], index: 6, kind: input, shape index: {}]
  %s7 = inlined_call_operand.vmem [shape: bf16[2,2,16,32], index: 7, kind: input, shape index: {}]
  %s8 = inlined_call_operand.vmem [shape: f32[2,1,32], index: 8, kind: input, shape index: {}]
  %s9 = inlined_call_operand.vmem [shape: f32[2,1,32], index: 9, kind: input, shape index: {}]
  %s10 = inlined_call_operand.vmem [shape: f32[2,1,32], index: 10, kind: input, shape index: {}]
  %s11 = inlined_call_operand.vmem [shape: bf16[2,32,64], index: 11, kind: input, shape index: {}]
  %s12 = inlined_call_operand.vmem [shape: f32[2,1,64], index: 12, kind: input, shape index: {}]
  %s13 = inlined_call_operand.vmem [shape: bf16[2,64,32], index: 13, kind: input, shape index: {}]
  %s14 = inlined_call_operand.vmem [shape: f32[2,1,32], index: 14, kind: input, shape index: {}]
  %s15 = inlined_call_operand.vmem [shape: f32[2,1,32], index: 15, kind: input, shape index: {}]
  %s16 = inlined_call_operand.vmem [shape: f32[2,1,32], index: 16, kind: input, shape index: {}]
  %s17 = inlined_call_operand.vmem [shape: f32[1,32], index: 17, kind: input, shape index: {}]
  %s18 = inlined_call_operand.vmem [shape: f32[1,32], index: 18, kind: input, shape index: {}]
  %s19 = inlined_call_operand.vmem [shape: bf16[32,32], index: 19, kind: input, shape index: {}]
  %s20 = inlined_call_operand.vmem [shape: f32[1,32], index: 20, kind: input, shape index: {}]
  %s21 = inlined_call_operand.hbm [shape: f32[2,32], index: 21, kind: output, shape index: {}]
  %s22 = sld [smem:[#allocation0]]
  $region94: #{bert_forward.1} parent=0
    _
  %s24 = ssub.s32 1, %s22
  %s25 = scalar_select 0, %s24, %s22
  $region1: #{bert_forward.1} parent=0
    #allocation2 [shape = 'u8[1024]{0}', space=vmem, size = 0x400, scoped, tag = 'output window, operand 0, single buffered']
    #allocation3 [shape = 's32[1]{0}', space=sflag, size = 0x4, scoped, tag = 'scoped memory for bert_forward.1']
    %26 = vsyncpa [#allocation3], 0
    // Predicated region
    $region2: #{bert_forward.1} parent=1 // pred_check
      _
    $region3: #{bert_forward.1} parent=1 // pred_check_branch
      %28 = sbr.rel (0) target = $region5
    $region4: #{bert_forward.1} parent=1 // pred_region
      _
    $region5: #{bert_forward.1} parent=1 // pred_fallthru
      _
    // Predicated region
    $region6: #{bert_forward.1} parent=1 // pred_check
      _
    $region7: #{bert_forward.1} parent=1 // pred_check_branch
      %30 = sbr.rel (0) target = $region9
    $region8: #{bert_forward.1} parent=1 // pred_region
      _
    $region9: #{bert_forward.1} parent=1 // pred_fallthru
      _
    // Predicated region
    $region10: #{bert_forward.1} parent=1 // pred_check
      _
    $region11: #{bert_forward.1} parent=1 // pred_check_branch
      %32 = sbr.rel (0) target = $region13
    $region12: #{bert_forward.1} parent=1 // pred_region
      _
    $region13: #{bert_forward.1} parent=1 // pred_fallthru
      _
    // Predicated region
    $region14: #{bert_forward.1} parent=1 // pred_check
      _
    $region15: #{bert_forward.1} parent=1 // pred_check_branch
      %34 = sbr.rel (0) target = $region17
    $region16: #{bert_forward.1} parent=1 // pred_region
      _
    $region17: #{bert_forward.1} parent=1 // pred_fallthru
      _
    // Predicated region
    $region18: #{bert_forward.1} parent=1 // pred_check
      _
    $region19: #{bert_forward.1} parent=1 // pred_check_branch
      %36 = sbr.rel (0) target = $region21
    $region20: #{bert_forward.1} parent=1 // pred_region
      _
    $region21: #{bert_forward.1} parent=1 // pred_fallthru
      _
    // Predicated region
    $region22: #{bert_forward.1} parent=1 // pred_check
      _
    $region23: #{bert_forward.1} parent=1 // pred_check_branch
      %38 = sbr.rel (0) target = $region25
    $region24: #{bert_forward.1} parent=1 // pred_region
      _
    $region25: #{bert_forward.1} parent=1 // pred_fallthru
      _
    // Predicated region
    $region26: #{bert_forward.1} parent=1 // pred_check
      _
    $region27: #{bert_forward.1} parent=1 // pred_check_branch
      %40 = sbr.rel (0) target = $region29
    $region28: #{bert_forward.1} parent=1 // pred_region
      _
    $region29: #{bert_forward.1} parent=1 // pred_fallthru
      _
    // Predicated region
    $region30: #{bert_forward.1} parent=1 // pred_check
      _
    $region31: #{bert_forward.1} parent=1 // pred_check_branch
      %42 = sbr.rel (0) target = $region33
    $region32: #{bert_forward.1} parent=1 // pred_region
      _
    $region33: #{bert_forward.1} parent=1 // pred_fallthru
      _
    // Predicated region
    $region34: #{bert_forward.1} parent=1 // pred_check
      _
    $region35: #{bert_forward.1} parent=1 // pred_check_branch
      %44 = sbr.rel (0) target = $region37
    $region36: #{bert_forward.1} parent=1 // pred_region
      _
    $region37: #{bert_forward.1} parent=1 // pred_fallthru
      _
    // Predicated region
    $region38: #{bert_forward.1} parent=1 // pred_check
      _
    $region39: #{bert_forward.1} parent=1 // pred_check_branch
      %46 = sbr.rel (0) target = $region41
    $region40: #{bert_forward.1} parent=1 // pred_region
      _
    $region41: #{bert_forward.1} parent=1 // pred_fallthru
      _
    // Predicated region
    $region42: #{bert_forward.1} parent=1 // pred_check
      _
    $region43: #{bert_forward.1} parent=1 // pred_check_branch
      %48 = sbr.rel (0) target = $region45
    $region44: #{bert_forward.1} parent=1 // pred_region
      _
    $region45: #{bert_forward.1} parent=1 // pred_fallthru
      _
    // Predicated region
    $region46: #{bert_forward.1} parent=1 // pred_check
      _
    $region47: #{bert_forward.1} parent=1 // pred_check_branch
      %50 = sbr.rel (0) target = $region49
    $region48: #{bert_forward.1} parent=1 // pred_region
      _
    $region49: #{bert_forward.1} parent=1 // pred_fallthru
      _
    // Predicated region
    $region50: #{bert_forward.1} parent=1 // pred_check
      _
    $region51: #{bert_forward.1} parent=1 // pred_check_branch
      %52 = sbr.rel (0) target = $region53
    $region52: #{bert_forward.1} parent=1 // pred_region
      _
    $region53: #{bert_forward.1} parent=1 // pred_fallthru
      _
    // Predicated region
    $region54: #{bert_forward.1} parent=1 // pred_check
      _
    $region55: #{bert_forward.1} parent=1 // pred_check_branch
      %54 = sbr.rel (0) target = $region57
    $region56: #{bert_forward.1} parent=1 // pred_region
      _
    $region57: #{bert_forward.1} parent=1 // pred_fallthru
      _
    // Predicated region
    $region58: #{bert_forward.1} parent=1 // pred_check
      _
    $region59: #{bert_forward.1} parent=1 // pred_check_branch
      %56 = sbr.rel (0) target = $region61
    $region60: #{bert_forward.1} parent=1 // pred_region
      _
    $region61: #{bert_forward.1} parent=1 // pred_fallthru
      _
    // Predicated region
    $region62: #{bert_forward.1} parent=1 // pred_check
      _
    $region63: #{bert_forward.1} parent=1 // pred_check_branch
      %58 = sbr.rel (0) target = $region65
    $region64: #{bert_forward.1} parent=1 // pred_region
      _
    $region65: #{bert_forward.1} parent=1 // pred_fallthru
      _
    // Predicated region
    $region66: #{bert_forward.1} parent=1 // pred_check
      _
    $region67: #{bert_forward.1} parent=1 // pred_check_branch
      %60 = sbr.rel (0) target = $region69
    $region68: #{bert_forward.1} parent=1 // pred_region
      _
    $region69: #{bert_forward.1} parent=1 // pred_fallthru
      _
    // Predicated region
    $region70: #{bert_forward.1} parent=1 // pred_check
      _
    $region71: #{bert_forward.1} parent=1 // pred_check_branch
      %62 = sbr.rel (0) target = $region73
    $region72: #{bert_forward.1} parent=1 // pred_region
      _
    $region73: #{bert_forward.1} parent=1 // pred_fallthru
      _
    // Predicated region
    $region74: #{bert_forward.1} parent=1 // pred_check
      _
    $region75: #{bert_forward.1} parent=1 // pred_check_branch
      %64 = sbr.rel (0) target = $region77
    $region76: #{bert_forward.1} parent=1 // pred_region
      _
    $region77: #{bert_forward.1} parent=1 // pred_fallthru
      _
    // Predicated region
    $region78: #{bert_forward.1} parent=1 // pred_check
      _
    $region79: #{bert_forward.1} parent=1 // pred_check_branch
      %66 = sbr.rel (0) target = $region81
    $region80: #{bert_forward.1} parent=1 // pred_region
      _
    $region81: #{bert_forward.1} parent=1 // pred_fallthru
      _
    // Predicated region
    $region82: #{bert_forward.1} parent=1 // pred_check
      _
    $region83: #{bert_forward.1} parent=1 // pred_check_branch
      %68 = sbr.rel (0) target = $region85
    $region84: #{bert_forward.1} parent=1 // pred_region
      _
    $region85: #{bert_forward.1} parent=1 // pred_fallthru
      _
    %v70 = vld [vmem:[%s0] sm:$0xff]
    %v71 = vld [vmem:[%s0 + $0x8] sm:$0xff]
    %v72 = vld [vmem:[%s17] sm:$0x1]
    %v73 = vld [vmem:[%s18] sm:$0x1]
    %vm74 = vcmask 261120
    %v75 = vsel %vm74, %v70, 0.0
    %76 = vadd.xlane.f32.xlu0 %v75
    %v77 = vpop.xlane.xlu0 %76
    %v78 = vsel %vm74, %v71, 0.0
    %79 = vadd.xlane.f32.xlu0 %v78
    %v80 = vpop.xlane.xlu0 %79
    %v81 = vrcp.pop 32.0
    %v82 = vmul.f32 %v77, %v81
    %v83 = vmul.f32 %v80, %v81
    %v84 = vsub.f32 %v70, %v82
    %v85 = vsub.f32 %v71, %v83
    %v86 = vmul.f32 %v84, %v84
    %v87 = vmul.f32 %v85, %v85
    %v88 = vsel %vm74, %v86, 0.0
    %89 = vadd.xlane.f32.xlu0 %v88
    %v90 = vpop.xlane.xlu0 %89
    %v91 = vsel %vm74, %v87, 0.0
    %92 = vadd.xlane.f32.xlu0 %v91
    %v93 = vpop.xlane.xlu0 %92
    %v94 = vmul.f32 %v90, %v81
    %v95 = vmul.f32 %v93, %v81
    %v96 = vadd.f32 %v94, 1e-12
    %v97 = vadd.f32 %v95, 1e-12
    %v98 = vrsqrt.pop %v96
    %v99 = vrsqrt.pop %v97
    %v100 = vmul.f32 %v84, %v98
    %v101 = vmul.f32 %v85, %v99
    %v103 = vlaneseq
    %v104 = vshrl.u32 %v103, 7
    %v105 = vsub.s32 0, %v104
    %v106 = vrot.slane %v72, %v105
    %v108 = vmul.f32 %v100, %v106
    %v109 = vmul.f32 %v101, %v106
    %v111 = vlaneseq
    %v112 = vshrl.u32 %v111, 7
    %v113 = vsub.s32 0, %v112
    %v114 = vrot.slane %v73, %v113
    %v116 = vadd.f32 %v108, %v114
    %v117 = vadd.f32 %v109, %v114
    %v118 = vpack.c.bf16 %v117, %v116
    %v119 = vld [vmem:[%s1] sm:$0xf]
    %v120 = vld [vmem:[%s1 + $0x4] sm:$0xf]
    %v121 = vld [vmem:[%s1 + $0x8] sm:$0xf]
    %v122 = vld [vmem:[%s1 + $0xc] sm:$0xf]
    %v123 = vld [vmem:[%s2] sm:$0x1]
    %v125 = vlaneseq
    %v126 = vshrl.u32 %v125, 7
    %v127 = vsub.s32 0, %v126
    %v128 = vrot.slane %v123, %v127
    %v134 = vunpack.c.l.b16 %v119
    %v135 = vunpack.c.l.b16 %v120
    %v136 = vunpack.c.l.b16 %v121
    %v137 = vunpack.c.l.b16 %v122
    %v138 = vpack.c.b16 %v135, %v134
    %v139 = vpack.c.b16 %v137, %v136
    %v143 = vsel %vm74, %v118, 0
    %145 = vmatprep.subr.bf16.mxu0 0
    %146 = vmatpush1.bf16.msra.mxu0 0
    %147 = vmatprep.subr.bf16.mxu0 0
    %148 = vmatpush1.bf16.msra.mxu0 0
    %149 = vmatprep.subr.bf16.mxu0 0
    %150 = vmatpush1.bf16.msra.mxu0 0
    %151 = vmatprep.subr.bf16.mxu0 0
    %152 = vmatpush1.bf16.msra.mxu0 0
    %153 = vmatprep.subr.bf16.mxu0 0
    %154 = vmatpush1.bf16.msra.mxu0 0
    %155 = vmatprep.subr.bf16.mxu0 0
    %156 = vmatpush1.bf16.msra.mxu0 0
    %157 = vmatprep.subr.bf16.mxu0 0
    %158 = vmatpush1.bf16.msra.mxu0 %v139
    %159 = vmatprep.subr.bf16.mxu0 0
    %160 = vmatpush1.bf16.msra.mxu0 %v138
    %161 = vmatprep.subr.bf16.mxu0 0
    %162 = vmatpush2.bf16.msra.mxu0 0
    %163 = vmatprep.subr.bf16.mxu0 0
    %164 = vmatpush2.bf16.msra.mxu0 0
    %165 = vmatprep.subr.bf16.mxu0 0
    %166 = vmatpush2.bf16.msra.mxu0 0
    %167 = vmatprep.subr.bf16.mxu0 0
    %168 = vmatpush2.bf16.msra.mxu0 0
    %169 = vmatprep.subr.bf16.mxu0 0
    %170 = vmatpush2.bf16.msra.mxu0 0
    %171 = vmatprep.subr.bf16.mxu0 0
    %172 = vmatpush2.bf16.msra.mxu0 0
    %173 = vmatprep.subr.bf16.mxu0 0
    %174 = vmatpush2.bf16.msra.mxu0 0
    %175 = vmatprep.subr.bf16.mxu0 0
    %176 = vmatpush2.bf16.msra.mxu0 0
    %177 = vmatprep.mubr.bf16.mxu0 0
    %178 = vmatmul.mubr.bf16.gmra.mxu0 %v143
    %v179 = vpop.f32.mrf.mxu0
    %v180 = vadd.f32 %v128, %v179
    %v181 = vpop.f32.mrf.mxu0
    %v182 = vpop.f32.mrf.mxu0
    %v183 = vadd.f32 %v128, %v182
    %v184 = vpop.f32.mrf.mxu0
    %185 = vdwg.mxu0
    %v186 = vld [vmem:[%s3] sm:$0xf]
    %v187 = vld [vmem:[%s3 + $0x4] sm:$0xf]
    %v188 = vld [vmem:[%s3 + $0x8] sm:$0xf]
    %v189 = vld [vmem:[%s3 + $0xc] sm:$0xf]
    %v190 = vld [vmem:[%s4] sm:$0x1]
    %v192 = vlaneseq
    %v193 = vshrl.u32 %v192, 7
    %v194 = vsub.s32 0, %v193
    %v195 = vrot.slane %v190, %v194
    %v201 = vunpack.c.l.b16 %v186
    %v202 = vunpack.c.l.b16 %v187
    %v203 = vunpack.c.l.b16 %v188
    %v204 = vunpack.c.l.b16 %v189
    %v205 = vpack.c.b16 %v202, %v201
    %v206 = vpack.c.b16 %v204, %v203
    %209 = vmatprep.subr.bf16.mxu0 0
    %210 = vmatpush1.bf16.msra.mxu0 0
    %211 = vmatprep.subr.bf16.mxu0 0
    %212 = vmatpush1.bf16.msra.mxu0 0
    %213 = vmatprep.subr.bf16.mxu0 0
    %214 = vmatpush1.bf16.msra.mxu0 0
    %215 = vmatprep.subr.bf16.mxu0 0
    %216 = vmatpush1.bf16.msra.mxu0 0
    %217 = vmatprep.subr.bf16.mxu0 0
    %218 = vmatpush1.bf16.msra.mxu0 0
    %219 = vmatprep.subr.bf16.mxu0 0
    %220 = vmatpush1.bf16.msra.mxu0 0
    %221 = vmatprep.subr.bf16.mxu0 0
    %222 = vmatpush1.bf16.msra.mxu0 %v206
    %223 = vmatprep.subr.bf16.mxu0 0
    %224 = vmatpush1.bf16.msra.mxu0 %v205
    %225 = vmatprep.subr.bf16.mxu0 0
    %226 = vmatpush2.bf16.msra.mxu0 0
    %227 = vmatprep.subr.bf16.mxu0 0
    %228 = vmatpush2.bf16.msra.mxu0 0
    %229 = vmatprep.subr.bf16.mxu0 0
    %230 = vmatpush2.bf16.msra.mxu0 0
    %231 = vmatprep.subr.bf16.mxu0 0
    %232 = vmatpush2.bf16.msra.mxu0 0
    %233 = vmatprep.subr.bf16.mxu0 0
    %234 = vmatpush2.bf16.msra.mxu0 0
    %235 = vmatprep.subr.bf16.mxu0 0
    %236 = vmatpush2.bf16.msra.mxu0 0
    %237 = vmatprep.subr.bf16.mxu0 0
    %238 = vmatpush2.bf16.msra.mxu0 0
    %239 = vmatprep.subr.bf16.mxu0 0
    %240 = vmatpush2.bf16.msra.mxu0 0
    %241 = vmatprep.mubr.bf16.mxu0 0
    %242 = vmatmul.mubr.bf16.gmra.mxu0 %v143
    %v243 = vpop.f32.mrf.mxu0
    %v244 = vadd.f32 %v195, %v243
    %v245 = vpop.f32.mrf.mxu0
    %v246 = vpop.f32.mrf.mxu0
    %v247 = vadd.f32 %v195, %v246
    %v248 = vpop.f32.mrf.mxu0
    %249 = vdwg.mxu0
    %v250 = vld [vmem:[%s5] sm:$0xf]
    %v251 = vld [vmem:[%s5 + $0x4] sm:$0xf]
    %v252 = vld [vmem:[%s5 + $0x8] sm:$0xf]
    %v253 = vld [vmem:[%s5 + $0xc] sm:$0xf]
    %v254 = vld [vmem:[%s6] sm:$0x1]
    %v256 = vlaneseq
    %v257 = vshrl.u32 %v256, 7
    %v258 = vsub.s32 0, %v257
    %v259 = vrot.slane %v254, %v258
    %v265 = vunpack.c.l.b16 %v250
    %v266 = vunpack.c.l.b16 %v251
    %v267 = vunpack.c.l.b16 %v252
    %v268 = vunpack.c.l.b16 %v253
    %v269 = vpack.c.b16 %v266, %v265
    %v270 = vpack.c.b16 %v268, %v267
    %273 = vmatprep.subr.bf16.mxu0 0
    %274 = vmatpush1.bf16.msra.mxu0 0
    %275 = vmatprep.subr.bf16.mxu0 0
    %276 = vmatpush1.bf16.msra.mxu0 0
    %277 = vmatprep.subr.bf16.mxu0 0
    %278 = vmatpush1.bf16.msra.mxu0 0
    %279 = vmatprep.subr.bf16.mxu0 0
    %280 = vmatpush1.bf16.msra.mxu0 0
    %281 = vmatprep.subr.bf16.mxu0 0
    %282 = vmatpush1.bf16.msra.mxu0 0
    %283 = vmatprep.subr.bf16.mxu0 0
    %284 = vmatpush1.bf16.msra.mxu0 0
    %285 = vmatprep.subr.bf16.mxu0 0
    %286 = vmatpush1.bf16.msra.mxu0 %v270
    %287 = vmatprep.subr.bf16.mxu0 0
    %288 = vmatpush1.bf16.msra.mxu0 %v269
    %289 = vmatprep.subr.bf16.mxu0 0
    %290 = vmatpush2.bf16.msra.mxu0 0
    %291 = vmatprep.subr.bf16.mxu0 0
    %292 = vmatpush2.bf16.msra.mxu0 0
    %293 = vmatprep.subr.bf16.mxu0 0
    %294 = vmatpush2.bf16.msra.mxu0 0
    %295 = vmatprep.subr.bf16.mxu0 0
    %296 = vmatpush2.bf16.msra.mxu0 0
    %297 = vmatprep.subr.bf16.mxu0 0
    %298 = vmatpush2.bf16.msra.mxu0 0
    %299 = vmatprep.subr.bf16.mxu0 0
    %300 = vmatpush2.bf16.msra.mxu0 0
    %301 = vmatprep.subr.bf16.mxu0 0
    %302 = vmatpush2.bf16.msra.mxu0 0
    %303 = vmatprep.subr.bf16.mxu0 0
    %304 = vmatpush2.bf16.msra.mxu0 0
    %305 = vmatprep.mubr.bf16.mxu0 0
    %306 = vmatmul.mubr.bf16.gmra.mxu0 %v143
    %v307 = vpop.f32.mrf.mxu0
    %v308 = vadd.f32 %v259, %v307
    %v309 = vpop.f32.mrf.mxu0
    %v310 = vpop.f32.mrf.mxu0
    %v311 = vadd.f32 %v259, %v310
    %v312 = vpop.f32.mrf.mxu0
    %313 = vdwg.mxu0
    %v314 = vpack.c.bf16 %v183, %v180
    %v315 = vpack.c.bf16 %v247, %v244
    %v316 = vpack.c.bf16 %v311, %v308
    %s317 = scalar_lea.vmem %s1, 16
    %v318 = vld [vmem:[%s317] sm:$0xf]
    %v319 = vld [vmem:[%s317 + $0x4] sm:$0xf]
    %v320 = vld [vmem:[%s317 + $0x8] sm:$0xf]
    %v321 = vld [vmem:[%s317 + $0xc] sm:$0xf]
    %s322 = scalar_lea.vmem %s2, 1
    %v323 = vld [vmem:[%s322] sm:$0x1]
    %v325 = vlaneseq
    %v326 = vshrl.u32 %v325, 7
    %v327 = vsub.s32 0, %v326
    %v328 = vrot.slane %v323, %v327
    %v334 = vunpack.c.l.b16 %v318
    %v335 = vunpack.c.l.b16 %v319
    %v336 = vunpack.c.l.b16 %v320
    %v337 = vunpack.c.l.b16 %v321
    %v338 = vpack.c.b16 %v335, %v334
    %v339 = vpack.c.b16 %v337, %v336
    %342 = vmatprep.subr.bf16.mxu0 0
    %343 = vmatpush1.bf16.msra.mxu0 0
    %344 = vmatprep.subr.bf16.mxu0 0
    %345 = vmatpush1.bf16.msra.mxu0 0
    %346 = vmatprep.subr.bf16.mxu0 0
    %347 = vmatpush1.bf16.msra.mxu0 0
    %348 = vmatprep.subr.bf16.mxu0 0
    %349 = vmatpush1.bf16.msra.mxu0 0
    %350 = vmatprep.subr.bf16.mxu0 0
    %351 = vmatpush1.bf16.msra.mxu0 0
    %352 = vmatprep.subr.bf16.mxu0 0
    %353 = vmatpush1.bf16.msra.mxu0 0
    %354 = vmatprep.subr.bf16.mxu0 0
    %355 = vmatpush1.bf16.msra.mxu0 %v339
    %356 = vmatprep.subr.bf16.mxu0 0
    %357 = vmatpush1.bf16.msra.mxu0 %v338
    %358 = vmatprep.subr.bf16.mxu0 0
    %359 = vmatpush2.bf16.msra.mxu0 0
    %360 = vmatprep.subr.bf16.mxu0 0
    %361 = vmatpush2.bf16.msra.mxu0 0
    %362 = vmatprep.subr.bf16.mxu0 0
    %363 = vmatpush2.bf16.msra.mxu0 0
    %364 = vmatprep.subr.bf16.mxu0 0
    %365 = vmatpush2.bf16.msra.mxu0 0
    %366 = vmatprep.subr.bf16.mxu0 0
    %367 = vmatpush2.bf16.msra.mxu0 0
    %368 = vmatprep.subr.bf16.mxu0 0
    %369 = vmatpush2.bf16.msra.mxu0 0
    %370 = vmatprep.subr.bf16.mxu0 0
    %371 = vmatpush2.bf16.msra.mxu0 0
    %372 = vmatprep.subr.bf16.mxu0 0
    %373 = vmatpush2.bf16.msra.mxu0 0
    %374 = vmatprep.mubr.bf16.mxu0 0
    %375 = vmatmul.mubr.bf16.gmra.mxu0 %v143
    %v376 = vpop.f32.mrf.mxu0
    %v377 = vadd.f32 %v328, %v376
    %v378 = vpop.f32.mrf.mxu0
    %v379 = vpop.f32.mrf.mxu0
    %v380 = vadd.f32 %v328, %v379
    %v381 = vpop.f32.mrf.mxu0
    %382 = vdwg.mxu0
    %s383 = scalar_lea.vmem %s3, 16
    %v384 = vld [vmem:[%s383] sm:$0xf]
    %v385 = vld [vmem:[%s383 + $0x4] sm:$0xf]
    %v386 = vld [vmem:[%s383 + $0x8] sm:$0xf]
    %v387 = vld [vmem:[%s383 + $0xc] sm:$0xf]
    %s388 = scalar_lea.vmem %s4, 1
    %v389 = vld [vmem:[%s388] sm:$0x1]
    %v391 = vlaneseq
    %v392 = vshrl.u32 %v391, 7
    %v393 = vsub.s32 0, %v392
    %v394 = vrot.slane %v389, %v393
    %v400 = vunpack.c.l.b16 %v384
    %v401 = vunpack.c.l.b16 %v385
    %v402 = vunpack.c.l.b16 %v386
    %v403 = vunpack.c.l.b16 %v387
    %v404 = vpack.c.b16 %v401, %v400
    %v405 = vpack.c.b16 %v403, %v402
    %408 = vmatprep.subr.bf16.mxu0 0
    %409 = vmatpush1.bf16.msra.mxu0 0
    %410 = vmatprep.subr.bf16.mxu0 0
    %411 = vmatpush1.bf16.msra.mxu0 0
    %412 = vmatprep.subr.bf16.mxu0 0
    %413 = vmatpush1.bf16.msra.mxu0 0
    %414 = vmatprep.subr.bf16.mxu0 0
    %415 = vmatpush1.bf16.msra.mxu0 0
    %416 = vmatprep.subr.bf16.mxu0 0
    %417 = vmatpush1.bf16.msra.mxu0 0
    %418 = vmatprep.subr.bf16.mxu0 0
    %419 = vmatpush1.bf16.msra.mxu0 0
    %420 = vmatprep.subr.bf16.mxu0 0
    %421 = vmatpush1.bf16.msra.mxu0 %v405
    %422 = vmatprep.subr.bf16.mxu0 0
    %423 = vmatpush1.bf16.msra.mxu0 %v404
    %424 = vmatprep.subr.bf16.mxu0 0
    %425 = vmatpush2.bf16.msra.mxu0 0
    %426 = vmatprep.subr.bf16.mxu0 0
    %427 = vmatpush2.bf16.msra.mxu0 0
    %428 = vmatprep.subr.bf16.mxu0 0
    %429 = vmatpush2.bf16.msra.mxu0 0
    %430 = vmatprep.subr.bf16.mxu0 0
    %431 = vmatpush2.bf16.msra.mxu0 0
    %432 = vmatprep.subr.bf16.mxu0 0
    %433 = vmatpush2.bf16.msra.mxu0 0
    %434 = vmatprep.subr.bf16.mxu0 0
    %435 = vmatpush2.bf16.msra.mxu0 0
    %436 = vmatprep.subr.bf16.mxu0 0
    %437 = vmatpush2.bf16.msra.mxu0 0
    %438 = vmatprep.subr.bf16.mxu0 0
    %439 = vmatpush2.bf16.msra.mxu0 0
    %440 = vmatprep.mubr.bf16.mxu0 0
    %441 = vmatmul.mubr.bf16.gmra.mxu0 %v143
    %v442 = vpop.f32.mrf.mxu0
    %v443 = vadd.f32 %v394, %v442
    %v444 = vpop.f32.mrf.mxu0
    %v445 = vpop.f32.mrf.mxu0
    %v446 = vadd.f32 %v394, %v445
    %v447 = vpop.f32.mrf.mxu0
    %448 = vdwg.mxu0
    %s449 = scalar_lea.vmem %s5, 16
    %v450 = vld [vmem:[%s449] sm:$0xf]
    %v451 = vld [vmem:[%s449 + $0x4] sm:$0xf]
    %v452 = vld [vmem:[%s449 + $0x8] sm:$0xf]
    %v453 = vld [vmem:[%s449 + $0xc] sm:$0xf]
    %s454 = scalar_lea.vmem %s6, 1
    %v455 = vld [vmem:[%s454] sm:$0x1]
    %v457 = vlaneseq
    %v458 = vshrl.u32 %v457, 7
    %v459 = vsub.s32 0, %v458
    %v460 = vrot.slane %v455, %v459
    %v466 = vunpack.c.l.b16 %v450
    %v467 = vunpack.c.l.b16 %v451
    %v468 = vunpack.c.l.b16 %v452
    %v469 = vunpack.c.l.b16 %v453
    %v470 = vpack.c.b16 %v467, %v466
    %v471 = vpack.c.b16 %v469, %v468
    %474 = vmatprep.subr.bf16.mxu0 0
    %475 = vmatpush1.bf16.msra.mxu0 0
    %476 = vmatprep.subr.bf16.mxu0 0
    %477 = vmatpush1.bf16.msra.mxu0 0
    %478 = vmatprep.subr.bf16.mxu0 0
    %479 = vmatpush1.bf16.msra.mxu0 0
    %480 = vmatprep.subr.bf16.mxu0 0
    %481 = vmatpush1.bf16.msra.mxu0 0
    %482 = vmatprep.subr.bf16.mxu0 0
    %483 = vmatpush1.bf16.msra.mxu0 0
    %484 = vmatprep.subr.bf16.mxu0 0
    %485 = vmatpush1.bf16.msra.mxu0 0
    %486 = vmatprep.subr.bf16.mxu0 0
    %487 = vmatpush1.bf16.msra.mxu0 %v471
    %488 = vmatprep.subr.bf16.mxu0 0
    %489 = vmatpush1.bf16.msra.mxu0 %v470
    %490 = vmatprep.subr.bf16.mxu0 0
    %491 = vmatpush2.bf16.msra.mxu0 0
    %492 = vmatprep.subr.bf16.mxu0 0
    %493 = vmatpush2.bf16.msra.mxu0 0
    %494 = vmatprep.subr.bf16.mxu0 0
    %495 = vmatpush2.bf16.msra.mxu0 0
    %496 = vmatprep.subr.bf16.mxu0 0
    %497 = vmatpush2.bf16.msra.mxu0 0
    %498 = vmatprep.subr.bf16.mxu0 0
    %499 = vmatpush2.bf16.msra.mxu0 0
    %500 = vmatprep.subr.bf16.mxu0 0
    %501 = vmatpush2.bf16.msra.mxu0 0
    %502 = vmatprep.subr.bf16.mxu0 0
    %503 = vmatpush2.bf16.msra.mxu0 0
    %504 = vmatprep.subr.bf16.mxu0 0
    %505 = vmatpush2.bf16.msra.mxu0 0
    %506 = vmatprep.mubr.bf16.mxu0 0
    %507 = vmatmul.mubr.bf16.gmra.mxu0 %v143
    %v508 = vpop.f32.mrf.mxu0
    %v509 = vadd.f32 %v460, %v508
    %v510 = vpop.f32.mrf.mxu0
    %v511 = vpop.f32.mrf.mxu0
    %v512 = vadd.f32 %v460, %v511
    %v513 = vpop.f32.mrf.mxu0
    %514 = vdwg.mxu0
    %v515 = vpack.c.bf16 %v380, %v377
    %v516 = vpack.c.bf16 %v446, %v443
    %v517 = vpack.c.bf16 %v512, %v509
    %vm518 = vcmask 130048
    %v520 = vsel %vm518, %v314, 0
    %v523 = vsel %vm518, %v315, 0
    %525 = vmatprep.subr.bf16.mxu0 0
    %526 = vmatpush1.bf16.xpose.msra.mxu0 0
    %527 = vmatprep.subr.bf16.mxu0 0
    %528 = vmatpush1.bf16.xpose.msra.mxu0 0
    %529 = vmatprep.subr.bf16.mxu0 0
    %530 = vmatpush1.bf16.xpose.msra.mxu0 0
    %531 = vmatprep.subr.bf16.mxu0 0
    %532 = vmatpush1.bf16.xpose.msra.mxu0 0
    %533 = vmatprep.subr.bf16.mxu0 0
    %534 = vmatpush1.bf16.xpose.msra.mxu0 0
    %535 = vmatprep.subr.bf16.mxu0 0
    %536 = vmatpush1.bf16.xpose.msra.mxu0 0
    %537 = vmatprep.subr.bf16.mxu0 0
    %538 = vmatpush1.bf16.xpose.msra.mxu0 0
    %539 = vmatprep.subr.bf16.mxu0 0
    %540 = vmatpush1.bf16.xpose.msra.mxu0 %v523
    %541 = vmatprep.subr.bf16.mxu0 0
    %542 = vmatpush2.bf16.xpose.msra.mxu0 0
    %543 = vmatprep.subr.bf16.mxu0 0
    %544 = vmatpush2.bf16.xpose.msra.mxu0 0
    %545 = vmatprep.subr.bf16.mxu0 0
    %546 = vmatpush2.bf16.xpose.msra.mxu0 0
    %547 = vmatprep.subr.bf16.mxu0 0
    %548 = vmatpush2.bf16.xpose.msra.mxu0 0
    %549 = vmatprep.subr.bf16.mxu0 0
    %550 = vmatpush2.bf16.xpose.msra.mxu0 0
    %551 = vmatprep.subr.bf16.mxu0 0
    %552 = vmatpush2.bf16.xpose.msra.mxu0 0
    %553 = vmatprep.subr.bf16.mxu0 0
    %554 = vmatpush2.bf16.xpose.msra.mxu0 0
    %555 = vmatprep.subr.bf16.mxu0 0
    %556 = vmatpush2.bf16.xpose.msra.mxu0 0
    %557 = vmatprep.mubr.bf16.mxu0 0
    %558 = vmatmul.mubr.bf16.gmra.mxu0 %v520
    %v559 = vpop.f32.mrf.mxu0
    %v560 = vadd.f32 0.0, %v559
    %v561 = vpop.f32.mrf.mxu0
    %v562 = vpop.f32.mrf.mxu0
    %v563 = vpop.f32.mrf.mxu0
    %564 = vdwg.mxu0
    %vm565 = vcmask 64512
    %v566 = vsel %vm565, %v560, -inf
    %567 = vmax.xlane.f32.xlu0 %v566
    %v568 = vpop.xlane.xlu0 %567
    %v569 = vsub.f32 %v560, %v568
    %v570 = vmul.f32 %v569, 1.442695
    %v571 = vpow.pop %v570
    %v572 = vsel %vm565, %v571, 0.0
    %573 = vadd.xlane.f32.xlu0 %v572
    %v574 = vpop.xlane.xlu0 %573
    %v575 = vrcp.pop %v574
    %v576 = vmul.f32 %v571, %v575
    %v577 = vpack.c.bf16 %v576, %v576
    %v579 = vsel %vm565, %v577, 0
    %vm581 = vcmask 1043456
    %v583 = vsel %vm581, %v316, 0
    %585 = vmatprep.subr.bf16.mxu0 0
    %586 = vmatpush1.bf16.msra.mxu0 0
    %587 = vmatprep.subr.bf16.mxu0 0
    %588 = vmatpush1.bf16.msra.mxu0 0
    %589 = vmatprep.subr.bf16.mxu0 0
    %590 = vmatpush1.bf16.msra.mxu0 0
    %591 = vmatprep.subr.bf16.mxu0 0
    %592 = vmatpush1.bf16.msra.mxu0 0
    %593 = vmatprep.subr.bf16.mxu0 0
    %594 = vmatpush1.bf16.msra.mxu0 0
    %595 = vmatprep.subr.bf16.mxu0 0
    %596 = vmatpush1.bf16.msra.mxu0 0
    %597 = vmatprep.subr.bf16.mxu0 0
    %598 = vmatpush1.bf16.msra.mxu0 0
    %599 = vmatprep.subr.bf16.mxu0 0
    %600 = vmatpush1.bf16.msra.mxu0 %v583
    %601 = vmatprep.subr.bf16.mxu0 0
    %602 = vmatpush2.bf16.msra.mxu0 0
    %603 = vmatprep.subr.bf16.mxu0 0
    %604 = vmatpush2.bf16.msra.mxu0 0
    %605 = vmatprep.subr.bf16.mxu0 0
    %606 = vmatpush2.bf16.msra.mxu0 0
    %607 = vmatprep.subr.bf16.mxu0 0
    %608 = vmatpush2.bf16.msra.mxu0 0
    %609 = vmatprep.subr.bf16.mxu0 0
    %610 = vmatpush2.bf16.msra.mxu0 0
    %611 = vmatprep.subr.bf16.mxu0 0
    %612 = vmatpush2.bf16.msra.mxu0 0
    %613 = vmatprep.subr.bf16.mxu0 0
    %614 = vmatpush2.bf16.msra.mxu0 0
    %615 = vmatprep.subr.bf16.mxu0 0
    %616 = vmatpush2.bf16.msra.mxu0 0
    %617 = vmatprep.mubr.bf16.mxu0 0
    %618 = vmatmul.mubr.bf16.gmra.mxu0 %v579
    %v619 = vpop.f32.mrf.mxu0
    %v620 = vadd.f32 0.0, %v619
    %v621 = vpop.f32.mrf.mxu0
    %v622 = vpop.f32.mrf.mxu0
    %v623 = vpop.f32.mrf.mxu0
    %624 = vdwg.mxu0
    %v625 = vpack.c.bf16 %v620, %v620
    %v626 = vld [vmem:[%s7] sm:$0xf]
    %v627 = vld [vmem:[%s7 + $0x4] sm:$0xf]
    %v629 = vsel %vm518, %v515, 0
    %v632 = vsel %vm518, %v516, 0
    %634 = vmatprep.subr.bf16.mxu0 0
    %635 = vmatpush1.bf16.xpose.msra.mxu0 0
    %636 = vmatprep.subr.bf16.mxu0 0
    %637 = vmatpush1.bf16.xpose.msra.mxu0 0
    %638 = vmatprep.subr.bf16.mxu0 0
    %639 = vmatpush1.bf16.xpose.msra.mxu0 0
    %640 = vmatprep.subr.bf16.mxu0 0
    %641 = vmatpush1.bf16.xpose.msra.mxu0 0
    %642 = vmatprep.subr.bf16.mxu0 0
    %643 = vmatpush1.bf16.xpose.msra.mxu0 0
    %644 = vmatprep.subr.bf16.mxu0 0
    %645 = vmatpush1.bf16.xpose.msra.mxu0 0
    %646 = vmatprep.subr.bf16.mxu0 0
    %647 = vmatpush1.bf16.xpose.msra.mxu0 0
    %648 = vmatprep.subr.bf16.mxu0 0
    %649 = vmatpush1.bf16.xpose.msra.mxu0 %v632
    %650 = vmatprep.subr.bf16.mxu0 0
    %651 = vmatpush2.bf16.xpose.msra.mxu0 0
    %652 = vmatprep.subr.bf16.mxu0 0
    %653 = vmatpush2.bf16.xpose.msra.mxu0 0
    %654 = vmatprep.subr.bf16.mxu0 0
    %655 = vmatpush2.bf16.xpose.msra.mxu0 0
    %656 = vmatprep.subr.bf16.mxu0 0
    %657 = vmatpush2.bf16.xpose.msra.mxu0 0
    %658 = vmatprep.subr.bf16.mxu0 0
    %659 = vmatpush2.bf16.xpose.msra.mxu0 0
    %660 = vmatprep.subr.bf16.mxu0 0
    %661 = vmatpush2.bf16.xpose.msra.mxu0 0
    %662 = vmatprep.subr.bf16.mxu0 0
    %663 = vmatpush2.bf16.xpose.msra.mxu0 0
    %664 = vmatprep.subr.bf16.mxu0 0
    %665 = vmatpush2.bf16.xpose.msra.mxu0 0
    %666 = vmatprep.mubr.bf16.mxu0 0
    %667 = vmatmul.mubr.bf16.gmra.mxu0 %v629
    %v668 = vpop.f32.mrf.mxu0
    %v669 = vadd.f32 0.0, %v668
    %v670 = vpop.f32.mrf.mxu0
    %v671 = vpop.f32.mrf.mxu0
    %v672 = vpop.f32.mrf.mxu0
    %673 = vdwg.mxu0
    %v674 = vsel %vm565, %v669, -inf
    %675 = vmax.xlane.f32.xlu0 %v674
    %v676 = vpop.xlane.xlu0 %675
    %v677 = vsub.f32 %v669, %v676
    %v678 = vmul.f32 %v677, 1.442695
    %v679 = vpow.pop %v678
    %v680 = vsel %vm565, %v679, 0.0
    %681 = vadd.xlane.f32.xlu0 %v680
    %v682 = vpop.xlane.xlu0 %681
    %v683 = vrcp.pop %v682
    %v684 = vmul.f32 %v679, %v683
    %v685 = vpack.c.bf16 %v684, %v684
    %v687 = vsel %vm565, %v685, 0
    %v690 = vsel %vm581, %v517, 0
    %692 = vmatprep.subr.bf16.mxu0 0
    %693 = vmatpush1.bf16.msra.mxu0 0
    %694 = vmatprep.subr.bf16.mxu0 0
    %695 = vmatpush1.bf16.msra.mxu0 0
    %696 = vmatprep.subr.bf16.mxu0 0
    %697 = vmatpush1.bf16.msra.mxu0 0
    %698 = vmatprep.subr.bf16.mxu0 0
    %699 = vmatpush1.bf16.msra.mxu0 0
    %700 = vmatprep.subr.bf16.mxu0 0
    %701 = vmatpush1.bf16.msra.mxu0 0
    %702 = vmatprep.subr.bf16.mxu0 0
    %703 = vmatpush1.bf16.msra.mxu0 0
    %704 = vmatprep.subr.bf16.mxu0 0
    %705 = vmatpush1.bf16.msra.mxu0 0
    %706 = vmatprep.subr.bf16.mxu0 0
    %707 = vmatpush1.bf16.msra.mxu0 %v690
    %708 = vmatprep.subr.bf16.mxu0 0
    %709 = vmatpush2.bf16.msra.mxu0 0
    %710 = vmatprep.subr.bf16.mxu0 0
    %711 = vmatpush2.bf16.msra.mxu0 0
    %712 = vmatprep.subr.bf16.mxu0 0
    %713 = vmatpush2.bf16.msra.mxu0 0
    %714 = vmatprep.subr.bf16.mxu0 0
    %715 = vmatpush2.bf16.msra.mxu0 0
    %716 = vmatprep.subr.bf16.mxu0 0
    %717 = vmatpush2.bf16.msra.mxu0 0
    %718 = vmatprep.subr.bf16.mxu0 0
    %719 = vmatpush2.bf16.msra.mxu0 0
    %720 = vmatprep.subr.bf16.mxu0 0
    %721 = vmatpush2.bf16.msra.mxu0 0
    %722 = vmatprep.subr.bf16.mxu0 0
    %723 = vmatpush2.bf16.msra.mxu0 0
    %724 = vmatprep.mubr.bf16.mxu0 0
    %725 = vmatmul.mubr.bf16.gmra.mxu0 %v687
    %v726 = vpop.f32.mrf.mxu0
    %v727 = vadd.f32 0.0, %v726
    %v728 = vpop.f32.mrf.mxu0
    %v729 = vpop.f32.mrf.mxu0
    %v730 = vpop.f32.mrf.mxu0
    %731 = vdwg.mxu0
    %v732 = vpack.c.bf16 %v727, %v727
    %s733 = scalar_lea.vmem %s7, 8
    %v734 = vld [vmem:[%s733] sm:$0xf]
    %v735 = vld [vmem:[%s733 + $0x4] sm:$0xf]
    %v738 = vunpack.c.l.b16 %v734
    %v739 = vunpack.c.l.b16 %v735
    %v740 = vpack.c.b16 %v739, %v738
    %v743 = vsel %vm518, %v732, 0
    %745 = vmatprep.subr.bf16.mxu0 0
    %746 = vmatpush1.bf16.msra.mxu0 0
    %747 = vmatprep.subr.bf16.mxu0 0
    %748 = vmatpush1.bf16.msra.mxu0 0
    %749 = vmatprep.subr.bf16.mxu0 0
    %750 = vmatpush1.bf16.msra.mxu0 0
    %751 = vmatprep.subr.bf16.mxu0 0
    %752 = vmatpush1.bf16.msra.mxu0 0
    %753 = vmatprep.subr.bf16.mxu0 0
    %754 = vmatpush1.bf16.msra.mxu0 0
    %755 = vmatprep.subr.bf16.mxu0 0
    %756 = vmatpush1.bf16.msra.mxu0 0
    %757 = vmatprep.subr.bf16.mxu0 0
    %758 = vmatpush1.bf16.msra.mxu0 0
    %759 = vmatprep.subr.bf16.mxu0 0
    %760 = vmatpush1.bf16.msra.mxu0 %v740
    %761 = vmatprep.subr.bf16.mxu0 0
    %762 = vmatpush2.bf16.msra.mxu0 0
    %763 = vmatprep.subr.bf16.mxu0 0
    %764 = vmatpush2.bf16.msra.mxu0 0
    %765 = vmatprep.subr.bf16.mxu0 0
    %766 = vmatpush2.bf16.msra.mxu0 0
    %767 = vmatprep.subr.bf16.mxu0 0
    %768 = vmatpush2.bf16.msra.mxu0 0
    %769 = vmatprep.subr.bf16.mxu0 0
    %770 = vmatpush2.bf16.msra.mxu0 0
    %771 = vmatprep.subr.bf16.mxu0 0
    %772 = vmatpush2.bf16.msra.mxu0 0
    %773 = vmatprep.subr.bf16.mxu0 0
    %774 = vmatpush2.bf16.msra.mxu0 0
    %775 = vmatprep.subr.bf16.mxu0 0
    %776 = vmatpush2.bf16.msra.mxu0 0
    %777 = vmatprep.mubr.bf16.mxu0 0
    %778 = vmatmul.mubr.bf16.gmra.mxu0 %v743
    %v779 = vpop.f32.mrf.mxu0
    %v780 = vadd.f32 0.0, %v779
    %v781 = vpop.f32.mrf.mxu0
    %v782 = vpop.f32.mrf.mxu0
    %v783 = vpop.f32.mrf.mxu0
    %784 = vdwg.mxu0
    %v787 = vunpack.c.l.b16 %v626
    %v788 = vunpack.c.l.b16 %v627
    %v789 = vpack.c.b16 %v788, %v787
    %v792 = vsel %vm518, %v625, 0
    %794 = vmatprep.subr.bf16.mxu0 0
    %795 = vmatpush1.bf16.msra.mxu0 0
    %796 = vmatprep.subr.bf16.mxu0 0
    %797 = vmatpush1.bf16.msra.mxu0 0
    %798 = vmatprep.subr.bf16.mxu0 0
    %799 = vmatpush1.bf16.msra.mxu0 0
    %800 = vmatprep.subr.bf16.mxu0 0
    %801 = vmatpush1.bf16.msra.mxu0 0
    %802 = vmatprep.subr.bf16.mxu0 0
    %803 = vmatpush1.bf16.msra.mxu0 0
    %804 = vmatprep.subr.bf16.mxu0 0
    %805 = vmatpush1.bf16.msra.mxu0 0
    %806 = vmatprep.subr.bf16.mxu0 0
    %807 = vmatpush1.bf16.msra.mxu0 0
    %808 = vmatprep.subr.bf16.mxu0 0
    %809 = vmatpush1.bf16.msra.mxu0 %v789
    %810 = vmatprep.subr.bf16.mxu0 0
    %811 = vmatpush2.bf16.msra.mxu0 0
    %812 = vmatprep.subr.bf16.mxu0 0
    %813 = vmatpush2.bf16.msra.mxu0 0
    %814 = vmatprep.subr.bf16.mxu0 0
    %815 = vmatpush2.bf16.msra.mxu0 0
    %816 = vmatprep.subr.bf16.mxu0 0
    %817 = vmatpush2.bf16.msra.mxu0 0
    %818 = vmatprep.subr.bf16.mxu0 0
    %819 = vmatpush2.bf16.msra.mxu0 0
    %820 = vmatprep.subr.bf16.mxu0 0
    %821 = vmatpush2.bf16.msra.mxu0 0
    %822 = vmatprep.subr.bf16.mxu0 0
    %823 = vmatpush2.bf16.msra.mxu0 0
    %824 = vmatprep.subr.bf16.mxu0 0
    %825 = vmatpush2.bf16.msra.mxu0 0
    %826 = vmatprep.mubr.bf16.mxu0 0
    %827 = vmatmul.mubr.bf16.gmra.mxu0 %v792
    %v828 = vpop.f32.mrf.mxu0
    %v829 = vadd.f32 %v780, %v828
    %v830 = vpop.f32.mrf.mxu0
    %v831 = vpop.f32.mrf.mxu0
    %v832 = vpop.f32.mrf.mxu0
    %833 = vdwg.mxu0
    %v835 = vrot.slane %v314, 4
    %v837 = vrot.slane %v315, 4
    %v839 = vsel %vm518, %v835, 0
    %v842 = vsel %vm518, %v837, 0
    %844 = vmatprep.subr.bf16.mxu0 0
    %845 = vmatpush1.bf16.xpose.msra.mxu0 0
    %846 = vmatprep.subr.bf16.mxu0 0
    %847 = vmatpush1.bf16.xpose.msra.mxu0 0
    %848 = vmatprep.subr.bf16.mxu0 0
    %849 = vmatpush1.bf16.xpose.msra.mxu0 0
    %850 = vmatprep.subr.bf16.mxu0 0
    %851 = vmatpush1.bf16.xpose.msra.mxu0 0
    %852 = vmatprep.subr.bf16.mxu0 0
    %853 = vmatpush1.bf16.xpose.msra.mxu0 0
    %854 = vmatprep.subr.bf16.mxu0 0
    %855 = vmatpush1.bf16.xpose.msra.mxu0 0
    %856 = vmatprep.subr.bf16.mxu0 0
    %857 = vmatpush1.bf16.xpose.msra.mxu0 0
    %858 = vmatprep.subr.bf16.mxu0 0
    %859 = vmatpush1.bf16.xpose.msra.mxu0 %v842
    %860 = vmatprep.subr.bf16.mxu0 0
    %861 = vmatpush2.bf16.xpose.msra.mxu0 0
    %862 = vmatprep.subr.bf16.mxu0 0
    %863 = vmatpush2.bf16.xpose.msra.mxu0 0
    %864 = vmatprep.subr.bf16.mxu0 0
    %865 = vmatpush2.bf16.xpose.msra.mxu0 0
    %866 = vmatprep.subr.bf16.mxu0 0
    %867 = vmatpush2.bf16.xpose.msra.mxu0 0
    %868 = vmatprep.subr.bf16.mxu0 0
    %869 = vmatpush2.bf16.xpose.msra.mxu0 0
    %870 = vmatprep.subr.bf16.mxu0 0
    %871 = vmatpush2.bf16.xpose.msra.mxu0 0
    %872 = vmatprep.subr.bf16.mxu0 0
    %873 = vmatpush2.bf16.xpose.msra.mxu0 0
    %874 = vmatprep.subr.bf16.mxu0 0
    %875 = vmatpush2.bf16.xpose.msra.mxu0 0
    %876 = vmatprep.mubr.bf16.mxu0 0
    %877 = vmatmul.mubr.bf16.gmra.mxu0 %v839
    %v878 = vpop.f32.mrf.mxu0
    %v879 = vadd.f32 0.0, %v878
    %v880 = vpop.f32.mrf.mxu0
    %v881 = vpop.f32.mrf.mxu0
    %v882 = vpop.f32.mrf.mxu0
    %883 = vdwg.mxu0
    %v884 = vsel %vm565, %v879, -inf
    %885 = vmax.xlane.f32.xlu0 %v884
    %v886 = vpop.xlane.xlu0 %885
    %v887 = vsub.f32 %v879, %v886
    %v888 = vmul.f32 %v887, 1.442695
    %v889 = vpow.pop %v888
    %v890 = vsel %vm565, %v889, 0.0
    %891 = vadd.xlane.f32.xlu0 %v890
    %v892 = vpop.xlane.xlu0 %891
    %v893 = vrcp.pop %v892
    %v894 = vmul.f32 %v889, %v893
    %v895 = vpack.c.bf16 %v894, %v894
    %v897 = vrot.slane %v316, 4
    %v899 = vsel %vm565, %v895, 0
    %v902 = vsel %vm581, %v897, 0
    %904 = vmatprep.subr.bf16.mxu0 0
    %905 = vmatpush1.bf16.msra.mxu0 0
    %906 = vmatprep.subr.bf16.mxu0 0
    %907 = vmatpush1.bf16.msra.mxu0 0
    %908 = vmatprep.subr.bf16.mxu0 0
    %909 = vmatpush1.bf16.msra.mxu0 0
    %910 = vmatprep.subr.bf16.mxu0 0
    %911 = vmatpush1.bf16.msra.mxu0 0
    %912 = vmatprep.subr.bf16.mxu0 0
    %913 = vmatpush1.bf16.msra.mxu0 0
    %914 = vmatprep.subr.bf16.mxu0 0
    %915 = vmatpush1.bf16.msra.mxu0 0
    %916 = vmatprep.subr.bf16.mxu0 0
    %917 = vmatpush1.bf16.msra.mxu0 0
    %918 = vmatprep.subr.bf16.mxu0 0
    %919 = vmatpush1.bf16.msra.mxu0 %v902
    %920 = vmatprep.subr.bf16.mxu0 0
    %921 = vmatpush2.bf16.msra.mxu0 0
    %922 = vmatprep.subr.bf16.mxu0 0
    %923 = vmatpush2.bf16.msra.mxu0 0
    %924 = vmatprep.subr.bf16.mxu0 0
    %925 = vmatpush2.bf16.msra.mxu0 0
    %926 = vmatprep.subr.bf16.mxu0 0
    %927 = vmatpush2.bf16.msra.mxu0 0
    %928 = vmatprep.subr.bf16.mxu0 0
    %929 = vmatpush2.bf16.msra.mxu0 0
    %930 = vmatprep.subr.bf16.mxu0 0
    %931 = vmatpush2.bf16.msra.mxu0 0
    %932 = vmatprep.subr.bf16.mxu0 0
    %933 = vmatpush2.bf16.msra.mxu0 0
    %934 = vmatprep.subr.bf16.mxu0 0
    %935 = vmatpush2.bf16.msra.mxu0 0
    %936 = vmatprep.mubr.bf16.mxu0 0
    %937 = vmatmul.mubr.bf16.gmra.mxu0 %v899
    %v938 = vpop.f32.mrf.mxu0
    %v939 = vadd.f32 0.0, %v938
    %v940 = vpop.f32.mrf.mxu0
    %v941 = vpop.f32.mrf.mxu0
    %v942 = vpop.f32.mrf.mxu0
    %943 = vdwg.mxu0
    %v944 = vpack.c.bf16 %v939, %v939
    %v945 = vld [vmem:[%s7] sm:$0xf]
    %v946 = vld [vmem:[%s7 + $0x4] sm:$0xf]
    %v948 = vrot.slane %v515, 4
    %v950 = vrot.slane %v516, 4
    %v952 = vsel %vm518, %v948, 0
    %v955 = vsel %vm518, %v950, 0
    %957 = vmatprep.subr.bf16.mxu0 0
    %958 = vmatpush1.bf16.xpose.msra.mxu0 0
    %959 = vmatprep.subr.bf16.mxu0 0
    %960 = vmatpush1.bf16.xpose.msra.mxu0 0
    %961 = vmatprep.subr.bf16.mxu0 0
    %962 = vmatpush1.bf16.xpose.msra.mxu0 0
    %963 = vmatprep.subr.bf16.mxu0 0
    %964 = vmatpush1.bf16.xpose.msra.mxu0 0
    %965 = vmatprep.subr.bf16.mxu0 0
    %966 = vmatpush1.bf16.xpose.msra.mxu0 0
    %967 = vmatprep.subr.bf16.mxu0 0
    %968 = vmatpush1.bf16.xpose.msra.mxu0 0
    %969 = vmatprep.subr.bf16.mxu0 0
    %970 = vmatpush1.bf16.xpose.msra.mxu0 0
    %971 = vmatprep.subr.bf16.mxu0 0
    %972 = vmatpush1.bf16.xpose.msra.mxu0 %v955
    %973 = vmatprep.subr.bf16.mxu0 0
    %974 = vmatpush2.bf16.xpose.msra.mxu0 0
    %975 = vmatprep.subr.bf16.mxu0 0
    %976 = vmatpush2.bf16.xpose.msra.mxu0 0
    %977 = vmatprep.subr.bf16.mxu0 0
    %978 = vmatpush2.bf16.xpose.msra.mxu0 0
    %979 = vmatprep.subr.bf16.mxu0 0
    %980 = vmatpush2.bf16.xpose.msra.mxu0 0
    %981 = vmatprep.subr.bf16.mxu0 0
    %982 = vmatpush2.bf16.xpose.msra.mxu0 0
    %983 = vmatprep.subr.bf16.mxu0 0
    %984 = vmatpush2.bf16.xpose.msra.mxu0 0
    %985 = vmatprep.subr.bf16.mxu0 0
    %986 = vmatpush2.bf16.xpose.msra.mxu0 0
    %987 = vmatprep.subr.bf16.mxu0 0
    %988 = vmatpush2.bf16.xpose.msra.mxu0 0
    %989 = vmatprep.mubr.bf16.mxu0 0
    %990 = vmatmul.mubr.bf16.gmra.mxu0 %v952
    %v991 = vpop.f32.mrf.mxu0
    %v992 = vadd.f32 0.0, %v991
    %v993 = vpop.f32.mrf.mxu0
    %v994 = vpop.f32.mrf.mxu0
    %v995 = vpop.f32.mrf.mxu0
    %996 = vdwg.mxu0
    %v997 = vsel %vm565, %v992, -inf
    %998 = vmax.xlane.f32.xlu0 %v997
    %v999 = vpop.xlane.xlu0 %998
    %v1000 = vsub.f32 %v992, %v999
    %v1001 = vmul.f32 %v1000, 1.442695
    %v1002 = vpow.pop %v1001
    %v1003 = vsel %vm565, %v1002, 0.0
    %1004 = vadd.xlane.f32.xlu0 %v1003
    %v1005 = vpop.xlane.xlu0 %1004
    %v1006 = vrcp.pop %v1005
    %v1007 = vmul.f32 %v1002, %v1006
    %v1008 = vpack.c.bf16 %v1007, %v1007
    %v1010 = vrot.slane %v517, 4
    %v1012 = vsel %vm565, %v1008, 0
    %v1015 = vsel %vm581, %v1010, 0
    %1017 = vmatprep.subr.bf16.mxu0 0
    %1018 = vmatpush1.bf16.msra.mxu0 0
    %1019 = vmatprep.subr.bf16.mxu0 0
    %1020 = vmatpush1.bf16.msra.mxu0 0
    %1021 = vmatprep.subr.bf16.mxu0 0
    %1022 = vmatpush1.bf16.msra.mxu0 0
    %1023 = vmatprep.subr.bf16.mxu0 0
    %1024 = vmatpush1.bf16.msra.mxu0 0
    %1025 = vmatprep.subr.bf16.mxu0 0
    %1026 = vmatpush1.bf16.msra.mxu0 0
    %1027 = vmatprep.subr.bf16.mxu0 0
    %1028 = vmatpush1.bf16.msra.mxu0 0
    %1029 = vmatprep.subr.bf16.mxu0 0
    %1030 = vmatpush1.bf16.msra.mxu0 0
    %1031 = vmatprep.subr.bf16.mxu0 0
    %1032 = vmatpush1.bf16.msra.mxu0 %v1015
    %1033 = vmatprep.subr.bf16.mxu0 0
    %1034 = vmatpush2.bf16.msra.mxu0 0
    %1035 = vmatprep.subr.bf16.mxu0 0
    %1036 = vmatpush2.bf16.msra.mxu0 0
    %1037 = vmatprep.subr.bf16.mxu0 0
    %1038 = vmatpush2.bf16.msra.mxu0 0
    %1039 = vmatprep.subr.bf16.mxu0 0
    %1040 = vmatpush2.bf16.msra.mxu0 0
    %1041 = vmatprep.subr.bf16.mxu0 0
    %1042 = vmatpush2.bf16.msra.mxu0 0
    %1043 = vmatprep.subr.bf16.mxu0 0
    %1044 = vmatpush2.bf16.msra.mxu0 0
    %1045 = vmatprep.subr.bf16.mxu0 0
    %1046 = vmatpush2.bf16.msra.mxu0 0
    %1047 = vmatprep.subr.bf16.mxu0 0
    %1048 = vmatpush2.bf16.msra.mxu0 0
    %1049 = vmatprep.mubr.bf16.mxu0 0
    %1050 = vmatmul.mubr.bf16.gmra.mxu0 %v1012
    %v1051 = vpop.f32.mrf.mxu0
    %v1052 = vadd.f32 0.0, %v1051
    %v1053 = vpop.f32.mrf.mxu0
    %v1054 = vpop.f32.mrf.mxu0
    %v1055 = vpop.f32.mrf.mxu0
    %1056 = vdwg.mxu0
    %v1057 = vpack.c.bf16 %v1052, %v1052
    %v1058 = vld [vmem:[%s733] sm:$0xf]
    %v1059 = vld [vmem:[%s733 + $0x4] sm:$0xf]
    %v1062 = vunpack.c.l.b16 %v1058
    %v1063 = vunpack.c.l.b16 %v1059
    %v1064 = vpack.c.b16 %v1063, %v1062
    %v1067 = vsel %vm518, %v1057, 0
    %1069 = vmatprep.subr.bf16.mxu0 0
    %1070 = vmatpush1.bf16.msra.mxu0 0
    %1071 = vmatprep.subr.bf16.mxu0 0
    %1072 = vmatpush1.bf16.msra.mxu0 0
    %1073 = vmatprep.subr.bf16.mxu0 0
    %1074 = vmatpush1.bf16.msra.mxu0 0
    %1075 = vmatprep.subr.bf16.mxu0 0
    %1076 = vmatpush1.bf16.msra.mxu0 0
    %1077 = vmatprep.subr.bf16.mxu0 0
    %1078 = vmatpush1.bf16.msra.mxu0 0
    %1079 = vmatprep.subr.bf16.mxu0 0
    %1080 = vmatpush1.bf16.msra.mxu0 0
    %1081 = vmatprep.subr.bf16.mxu0 0
    %1082 = vmatpush1.bf16.msra.mxu0 0
    %1083 = vmatprep.subr.bf16.mxu0 0
    %1084 = vmatpush1.bf16.msra.mxu0 %v1064
    %1085 = vmatprep.subr.bf16.mxu0 0
    %1086 = vmatpush2.bf16.msra.mxu0 0
    %1087 = vmatprep.subr.bf16.mxu0 0
    %1088 = vmatpush2.bf16.msra.mxu0 0
    %1089 = vmatprep.subr.bf16.mxu0 0
    %1090 = vmatpush2.bf16.msra.mxu0 0
    %1091 = vmatprep.subr.bf16.mxu0 0
    %1092 = vmatpush2.bf16.msra.mxu0 0
    %1093 = vmatprep.subr.bf16.mxu0 0
    %1094 = vmatpush2.bf16.msra.mxu0 0
    %1095 = vmatprep.subr.bf16.mxu0 0
    %1096 = vmatpush2.bf16.msra.mxu0 0
    %1097 = vmatprep.subr.bf16.mxu0 0
    %1098 = vmatpush2.bf16.msra.mxu0 0
    %1099 = vmatprep.subr.bf16.mxu0 0
    %1100 = vmatpush2.bf16.msra.mxu0 0
    %1101 = vmatprep.mubr.bf16.mxu0 0
    %1102 = vmatmul.mubr.bf16.gmra.mxu0 %v1067
    %v1103 = vpop.f32.mrf.mxu0
    %v1104 = vadd.f32 0.0, %v1103
    %v1105 = vpop.f32.mrf.mxu0
    %v1106 = vpop.f32.mrf.mxu0
    %v1107 = vpop.f32.mrf.mxu0
    %1108 = vdwg.mxu0
    %v1111 = vunpack.c.l.b16 %v945
    %v1112 = vunpack.c.l.b16 %v946
    %v1113 = vpack.c.b16 %v1112, %v1111
    %v1116 = vsel %vm518, %v944, 0
    %1118 = vmatprep.subr.bf16.mxu0 0
    %1119 = vmatpush1.bf16.msra.mxu0 0
    %1120 = vmatprep.subr.bf16.mxu0 0
    %1121 = vmatpush1.bf16.msra.mxu0 0
    %1122 = vmatprep.subr.bf16.mxu0 0
    %1123 = vmatpush1.bf16.msra.mxu0 0
    %1124 = vmatprep.subr.bf16.mxu0 0
    %1125 = vmatpush1.bf16.msra.mxu0 0
    %1126 = vmatprep.subr.bf16.mxu0 0
    %1127 = vmatpush1.bf16.msra.mxu0 0
    %1128 = vmatprep.subr.bf16.mxu0 0
    %1129 = vmatpush1.bf16.msra.mxu0 0
    %1130 = vmatprep.subr.bf16.mxu0 0
    %1131 = vmatpush1.bf16.msra.mxu0 0
    %1132 = vmatprep.subr.bf16.mxu0 0
    %1133 = vmatpush1.bf16.msra.mxu0 %v1113
    %1134 = vmatprep.subr.bf16.mxu0 0
    %1135 = vmatpush2.bf16.msra.mxu0 0
    %1136 = vmatprep.subr.bf16.mxu0 0
    %1137 = vmatpush2.bf16.msra.mxu0 0
    %1138 = vmatprep.subr.bf16.mxu0 0
    %1139 = vmatpush2.bf16.msra.mxu0 0
    %1140 = vmatprep.subr.bf16.mxu0 0
    %1141 = vmatpush2.bf16.msra.mxu0 0
    %1142 = vmatprep.subr.bf16.mxu0 0
    %1143 = vmatpush2.bf16.msra.mxu0 0
    %1144 = vmatprep.subr.bf16.mxu0 0
    %1145 = vmatpush2.bf16.msra.mxu0 0
    %1146 = vmatprep.subr.bf16.mxu0 0
    %1147 = vmatpush2.bf16.msra.mxu0 0
    %1148 = vmatprep.subr.bf16.mxu0 0
    %1149 = vmatpush2.bf16.msra.mxu0 0
    %1150 = vmatprep.mubr.bf16.mxu0 0
    %1151 = vmatmul.mubr.bf16.gmra.mxu0 %v1116
    %v1152 = vpop.f32.mrf.mxu0
    %v1153 = vadd.f32 %v1104, %v1152
    %v1154 = vpop.f32.mrf.mxu0
    %v1155 = vpop.f32.mrf.mxu0
    %v1156 = vpop.f32.mrf.mxu0
    %1157 = vdwg.mxu0
    %v1158 = vld [vmem:[%s8] sm:$0x1]
    %v1160 = vlaneseq
    %v1161 = vshrl.u32 %v1160, 7
    %v1162 = vsub.s32 0, %v1161
    %v1163 = vrot.slane %v1158, %v1162
    %v1165 = vadd.f32 %v829, %v1163
    %v1166 = vadd.f32 %v1153, %v1163
    %v1167 = vadd.f32 %v1165, %v116
    %v1168 = vadd.f32 %v1166, %v117
    %v1169 = vld [vmem:[%s9] sm:$0x1]
    %v1170 = vld [vmem:[%s10] sm:$0x1]
    %v1171 = vsel %vm74, %v1167, 0.0
    %1172 = vadd.xlane.f32.xlu0 %v1171
    %v1173 = vpop.xlane.xlu0 %1172
    %v1174 = vsel %vm74, %v1168, 0.0
    %1175 = vadd.xlane.f32.xlu0 %v1174
    %v1176 = vpop.xlane.xlu0 %1175
    %v1177 = vmul.f32 %v1173, %v81
    %v1178 = vmul.f32 %v1176, %v81
    %v1179 = vsub.f32 %v1167, %v1177
    %v1180 = vsub.f32 %v1168, %v1178
    %v1181 = vmul.f32 %v1179, %v1179
    %v1182 = vmul.f32 %v1180, %v1180
    %v1183 = vsel %vm74, %v1181, 0.0
    %1184 = vadd.xlane.f32.xlu0 %v1183
    %v1185 = vpop.xlane.xlu0 %1184
    %v1186 = vsel %vm74, %v1182, 0.0
    %1187 = vadd.xlane.f32.xlu0 %v1186
    %v1188 = vpop.xlane.xlu0 %1187
    %v1189 = vmul.f32 %v1185, %v81
    %v1190 = vmul.f32 %v1188, %v81
    %v1191 = vadd.f32 %v1189, 1e-12
    %v1192 = vadd.f32 %v1190, 1e-12
    %v1193 = vrsqrt.pop %v1191
    %v1194 = vrsqrt.pop %v1192
    %v1195 = vmul.f32 %v1179, %v1193
    %v1196 = vmul.f32 %v1180, %v1194
    %v1198 = vlaneseq
    %v1199 = vshrl.u32 %v1198, 7
    %v1200 = vsub.s32 0, %v1199
    %v1201 = vrot.slane %v1169, %v1200
    %v1203 = vmul.f32 %v1195, %v1201
    %v1204 = vmul.f32 %v1196, %v1201
    %v1206 = vlaneseq
    %v1207 = vshrl.u32 %v1206, 7
    %v1208 = vsub.s32 0, %v1207
    %v1209 = vrot.slane %v1170, %v1208
    %v1211 = vadd.f32 %v1203, %v1209
    %v1212 = vadd.f32 %v1204, %v1209
    %v1213 = vpack.c.bf16 %v1212, %v1211
    %v1214 = vld [vmem:[%s11] sm:$0xf]
    %v1215 = vld [vmem:[%s11 + $0x4] sm:$0xf]
    %v1216 = vld [vmem:[%s11 + $0x8] sm:$0xf]
    %v1217 = vld [vmem:[%s11 + $0xc] sm:$0xf]
    %v1218 = vld [vmem:[%s12] sm:$0x1]
    %v1220 = vlaneseq
    %v1221 = vshrl.u32 %v1220, 7
    %v1222 = vsub.s32 0, %v1221
    %v1223 = vrot.slane %v1218, %v1222
    %v1229 = vunpack.c.l.b16 %v1214
    %v1230 = vunpack.c.l.b16 %v1215
    %v1231 = vunpack.c.l.b16 %v1216
    %v1232 = vunpack.c.l.b16 %v1217
    %v1233 = vpack.c.b16 %v1230, %v1229
    %v1234 = vpack.c.b16 %v1232, %v1231
    %v1238 = vsel %vm74, %v1213, 0
    %1240 = vmatprep.subr.bf16.mxu0 0
    %1241 = vmatpush1.bf16.msra.mxu0 0
    %1242 = vmatprep.subr.bf16.mxu0 0
    %1243 = vmatpush1.bf16.msra.mxu0 0
    %1244 = vmatprep.subr.bf16.mxu0 0
    %1245 = vmatpush1.bf16.msra.mxu0 0
    %1246 = vmatprep.subr.bf16.mxu0 0
    %1247 = vmatpush1.bf16.msra.mxu0 0
    %1248 = vmatprep.subr.bf16.mxu0 0
    %1249 = vmatpush1.bf16.msra.mxu0 0
    %1250 = vmatprep.subr.bf16.mxu0 0
    %1251 = vmatpush1.bf16.msra.mxu0 0
    %1252 = vmatprep.subr.bf16.mxu0 0
    %1253 = vmatpush1.bf16.msra.mxu0 %v1234
    %1254 = vmatprep.subr.bf16.mxu0 0
    %1255 = vmatpush1.bf16.msra.mxu0 %v1233
    %1256 = vmatprep.subr.bf16.mxu0 0
    %1257 = vmatpush2.bf16.msra.mxu0 0
    %1258 = vmatprep.subr.bf16.mxu0 0
    %1259 = vmatpush2.bf16.msra.mxu0 0
    %1260 = vmatprep.subr.bf16.mxu0 0
    %1261 = vmatpush2.bf16.msra.mxu0 0
    %1262 = vmatprep.subr.bf16.mxu0 0
    %1263 = vmatpush2.bf16.msra.mxu0 0
    %1264 = vmatprep.subr.bf16.mxu0 0
    %1265 = vmatpush2.bf16.msra.mxu0 0
    %1266 = vmatprep.subr.bf16.mxu0 0
    %1267 = vmatpush2.bf16.msra.mxu0 0
    %1268 = vmatprep.subr.bf16.mxu0 0
    %1269 = vmatpush2.bf16.msra.mxu0 0
    %1270 = vmatprep.subr.bf16.mxu0 0
    %1271 = vmatpush2.bf16.msra.mxu0 0
    %1272 = vmatprep.mubr.bf16.mxu0 0
    %1273 = vmatmul.mubr.bf16.gmra.mxu0 %v1238
    %v1274 = vpop.f32.mrf.mxu0
    %v1275 = vadd.f32 %v1223, %v1274
    %v1276 = vpop.f32.mrf.mxu0
    %v1277 = vpop.f32.mrf.mxu0
    %v1278 = vadd.f32 %v1223, %v1277
    %v1279 = vpop.f32.mrf.mxu0
    %1280 = vdwg.mxu0
    %v1281 = vmul.f32 %v1275, 0.5
    %v1282 = vmul.f32 %v1278, 0.5
    %v1283 = vmul.f32 %v1275, 0.70710677
    %v1284 = vmul.f32 %v1278, 0.70710677
    %vm1285 = vcmp.ge.f32.partialorder %v1283, 0.0
    %vm1286 = vcmp.ge.f32.partialorder %v1284, 0.0
    %v1287 = vsel %vm1285, 1.0, -1.0
    %v1288 = vsel %vm1286, 1.0, -1.0
    %v1289 = vand.u32 2147483647, %v1283
    %v1290 = vand.u32 2147483647, %v1284
    %v1291 = vmul.f32 %v1289, 0.3275911
    %v1292 = vmul.f32 %v1290, 0.3275911
    %v1293 = vadd.f32 %v1291, 1.0
    %v1294 = vadd.f32 %v1292, 1.0
    %v1295 = vrcp.pop %v1293
    %v1296 = vrcp.pop %v1294
    %v1297 = vmul.f32 %v1295, 1.0614054
    %v1298 = vmul.f32 %v1296, 1.0614054
    %v1299 = vadd.f32 %v1297, -1.4531521
    %v1300 = vadd.f32 %v1298, -1.4531521
    %v1301 = vmul.f32 %v1299, %v1295
    %v1302 = vmul.f32 %v1300, %v1296
    %v1303 = vadd.f32 %v1301, 1.4214138
    %v1304 = vadd.f32 %v1302, 1.4214138
    %v1305 = vmul.f32 %v1303, %v1295
    %v1306 = vmul.f32 %v1304, %v1296
    %v1307 = vadd.f32 %v1305, -0.28449672
    %v1308 = vadd.f32 %v1306, -0.28449672
    %v1309 = vmul.f32 %v1307, %v1295
    %v1310 = vmul.f32 %v1308, %v1296
    %v1311 = vadd.f32 %v1309, 0.2548296
    %v1312 = vadd.f32 %v1310, 0.2548296
    %v1313 = vmul.f32 %v1311, %v1295
    %v1314 = vmul.f32 %v1312, %v1296
    %v1315 = vsub.f32 0.0, %v1289
    %v1316 = vsub.f32 0.0, %v1290
    %v1317 = vmul.f32 %v1315, %v1289
    %v1318 = vmul.f32 %v1316, %v1290
    %v1319 = vmul.f32 %v1317, 1.442695
    %v1320 = vpow.pop %v1319
    %v1321 = vmul.f32 %v1318, 1.442695
    %v1322 = vpow.pop %v1321
    %v1323 = vmul.f32 %v1313, %v1320
    %v1324 = vmul.f32 %v1314, %v1322
    %v1325 = vsub.f32 1.0, %v1323
    %v1326 = vsub.f32 1.0, %v1324
    %v1327 = vmul.f32 %v1287, %v1325
    %v1328 = vmul.f32 %v1288, %v1326
    %v1329 = vadd.f32 %v1327, 1.0
    %v1330 = vadd.f32 %v1328, 1.0
    %v1331 = vmul.f32 %v1281, %v1329
    %v1332 = vmul.f32 %v1282, %v1330
    %v1333 = vpack.c.bf16 %v1332, %v1331
    %v1334 = vld [vmem:[%s13] sm:$0xf]
    %v1335 = vld [vmem:[%s13 + $0x4] sm:$0xf]
    %v1336 = vld [vmem:[%s13 + $0x8] sm:$0xf]
    %v1337 = vld [vmem:[%s13 + $0xc] sm:$0xf]
    %v1338 = vld [vmem:[%s13 + $0x10] sm:$0xf]
    %v1339 = vld [vmem:[%s13 + $0x14] sm:$0xf]
    %v1340 = vld [vmem:[%s13 + $0x18] sm:$0xf]
    %v1341 = vld [vmem:[%s13 + $0x1c] sm:$0xf]
    %v1342 = vld [vmem:[%s14] sm:$0x1]
    %v1344 = vlaneseq
    %v1345 = vshrl.u32 %v1344, 7
    %v1346 = vsub.s32 0, %v1345
    %v1347 = vrot.slane %v1342, %v1346
    %v1357 = vunpack.c.l.b16 %v1334
    %v1358 = vunpack.c.l.b16 %v1335
    %v1359 = vunpack.c.l.b16 %v1336
    %v1360 = vunpack.c.l.b16 %v1337
    %v1361 = vunpack.c.l.b16 %v1338
    %v1362 = vunpack.c.l.b16 %v1339
    %v1363 = vunpack.c.l.b16 %v1340
    %v1364 = vunpack.c.l.b16 %v1341
    %v1365 = vpack.c.b16 %v1358, %v1357
    %v1366 = vpack.c.b16 %v1360, %v1359
    %v1367 = vpack.c.b16 %v1362, %v1361
    %v1368 = vpack.c.b16 %v1364, %v1363
    %vm1373 = vcmask 523264
    %v1375 = vsel %vm1373, %v1333, 0
    %1377 = vmatprep.subr.bf16.mxu0 0
    %1378 = vmatpush1.bf16.msra.mxu0 0
    %1379 = vmatprep.subr.bf16.mxu0 0
    %1380 = vmatpush1.bf16.msra.mxu0 0
    %1381 = vmatprep.subr.bf16.mxu0 0
    %1382 = vmatpush1.bf16.msra.mxu0 0
    %1383 = vmatprep.subr.bf16.mxu0 0
    %1384 = vmatpush1.bf16.msra.mxu0 0
    %1385 = vmatprep.subr.bf16.mxu0 0
    %1386 = vmatpush1.bf16.msra.mxu0 %v1368
    %1387 = vmatprep.subr.bf16.mxu0 0
    %1388 = vmatpush1.bf16.msra.mxu0 %v1367
    %1389 = vmatprep.subr.bf16.mxu0 0
    %1390 = vmatpush1.bf16.msra.mxu0 %v1366
    %1391 = vmatprep.subr.bf16.mxu0 0
    %1392 = vmatpush1.bf16.msra.mxu0 %v1365
    %1393 = vmatprep.subr.bf16.mxu0 0
    %1394 = vmatpush2.bf16.msra.mxu0 0
    %1395 = vmatprep.subr.bf16.mxu0 0
    %1396 = vmatpush2.bf16.msra.mxu0 0
    %1397 = vmatprep.subr.bf16.mxu0 0
    %1398 = vmatpush2.bf16.msra.mxu0 0
    %1399 = vmatprep.subr.bf16.mxu0 0
    %1400 = vmatpush2.bf16.msra.mxu0 0
    %1401 = vmatprep.subr.bf16.mxu0 0
    %1402 = vmatpush2.bf16.msra.mxu0 0
    %1403 = vmatprep.subr.bf16.mxu0 0
    %1404 = vmatpush2.bf16.msra.mxu0 0
    %1405 = vmatprep.subr.bf16.mxu0 0
    %1406 = vmatpush2.bf16.msra.mxu0 0
    %1407 = vmatprep.subr.bf16.mxu0 0
    %1408 = vmatpush2.bf16.msra.mxu0 0
    %1409 = vmatprep.mubr.bf16.mxu0 0
    %1410 = vmatmul.mubr.bf16.gmra.mxu0 %v1375
    %v1411 = vpop.f32.mrf.mxu0
    %v1412 = vadd.f32 %v1347, %v1411
    %v1413 = vpop.f32.mrf.mxu0
    %v1414 = vpop.f32.mrf.mxu0
    %v1415 = vadd.f32 %v1347, %v1414
    %v1416 = vpop.f32.mrf.mxu0
    %1417 = vdwg.mxu0
    %v1418 = vadd.f32 %v1412, %v1211
    %v1419 = vadd.f32 %v1415, %v1212
    %v1420 = vld [vmem:[%s15] sm:$0x1]
    %v1421 = vld [vmem:[%s16] sm:$0x1]
    %v1422 = vsel %vm74, %v1418, 0.0
    %1423 = vadd.xlane.f32.xlu0 %v1422
    %v1424 = vpop.xlane.xlu0 %1423
    %v1425 = vsel %vm74, %v1419, 0.0
    %1426 = vadd.xlane.f32.xlu0 %v1425
    %v1427 = vpop.xlane.xlu0 %1426
    %v1428 = vmul.f32 %v1424, %v81
    %v1429 = vmul.f32 %v1427, %v81
    %v1430 = vsub.f32 %v1418, %v1428
    %v1431 = vsub.f32 %v1419, %v1429
    %v1432 = vmul.f32 %v1430, %v1430
    %v1433 = vmul.f32 %v1431, %v1431
    %v1434 = vsel %vm74, %v1432, 0.0
    %1435 = vadd.xlane.f32.xlu0 %v1434
    %v1436 = vpop.xlane.xlu0 %1435
    %v1437 = vsel %vm74, %v1433, 0.0
    %1438 = vadd.xlane.f32.xlu0 %v1437
    %v1439 = vpop.xlane.xlu0 %1438
    %v1440 = vmul.f32 %v1436, %v81
    %v1441 = vmul.f32 %v1439, %v81
    %v1442 = vadd.f32 %v1440, 1e-12
    %v1443 = vadd.f32 %v1441, 1e-12
    %v1444 = vrsqrt.pop %v1442
    %v1445 = vrsqrt.pop %v1443
    %v1446 = vmul.f32 %v1430, %v1444
    %v1447 = vmul.f32 %v1431, %v1445
    %v1449 = vlaneseq
    %v1450 = vshrl.u32 %v1449, 7
    %v1451 = vsub.s32 0, %v1450
    %v1452 = vrot.slane %v1420, %v1451
    %v1454 = vmul.f32 %v1446, %v1452
    %v1455 = vmul.f32 %v1447, %v1452
    %v1457 = vlaneseq
    %v1458 = vshrl.u32 %v1457, 7
    %v1459 = vsub.s32 0, %v1458
    %v1460 = vrot.slane %v1421, %v1459
    %v1462 = vadd.f32 %v1454, %v1460
    %v1463 = vadd.f32 %v1455, %v1460
    %v1465 = vrot.slane %v1463, 7
    %vm1467 = vcmask 1040384
    %v1468 = vsel %vm1467, %v1462, %v1465
    %v1469 = vpack.c.bf16 %v1468, %v1468
    %v1470 = vpack.c.bf16 %v1463, %v1462
    %s1471 = scalar_lea.vmem %s1, 32
    %v1472 = vld [vmem:[%s1471] sm:$0xf]
    %v1473 = vld [vmem:[%s1471 + $0x4] sm:$0xf]
    %v1474 = vld [vmem:[%s1471 + $0x8] sm:$0xf]
    %v1475 = vld [vmem:[%s1471 + $0xc] sm:$0xf]
    %s1476 = scalar_lea.vmem %s2, 2
    %v1477 = vld [vmem:[%s1476] sm:$0x1]
    %v1479 = vlaneseq
    %v1480 = vshrl.u32 %v1479, 7
    %v1481 = vsub.s32 0, %v1480
    %v1482 = vrot.slane %v1477, %v1481
    %v1488 = vunpack.c.l.b16 %v1472
    %v1489 = vunpack.c.l.b16 %v1473
    %v1490 = vunpack.c.l.b16 %v1474
    %v1491 = vunpack.c.l.b16 %v1475
    %v1492 = vpack.c.b16 %v1489, %v1488
    %v1493 = vpack.c.b16 %v1491, %v1490
    %v1497 = vsel %vm74, %v1469, 0
    %1499 = vmatprep.subr.bf16.mxu0 0
    %1500 = vmatpush1.bf16.msra.mxu0 0
    %1501 = vmatprep.subr.bf16.mxu0 0
    %1502 = vmatpush1.bf16.msra.mxu0 0
    %1503 = vmatprep.subr.bf16.mxu0 0
    %1504 = vmatpush1.bf16.msra.mxu0 0
    %1505 = vmatprep.subr.bf16.mxu0 0
    %1506 = vmatpush1.bf16.msra.mxu0 0
    %1507 = vmatprep.subr.bf16.mxu0 0
    %1508 = vmatpush1.bf16.msra.mxu0 0
    %1509 = vmatprep.subr.bf16.mxu0 0
    %1510 = vmatpush1.bf16.msra.mxu0 0
    %1511 = vmatprep.subr.bf16.mxu0 0
    %1512 = vmatpush1.bf16.msra.mxu0 %v1493
    %1513 = vmatprep.subr.bf16.mxu0 0
    %1514 = vmatpush1.bf16.msra.mxu0 %v1492
    %1515 = vmatprep.subr.bf16.mxu0 0
    %1516 = vmatpush2.bf16.msra.mxu0 0
    %1517 = vmatprep.subr.bf16.mxu0 0
    %1518 = vmatpush2.bf16.msra.mxu0 0
    %1519 = vmatprep.subr.bf16.mxu0 0
    %1520 = vmatpush2.bf16.msra.mxu0 0
    %1521 = vmatprep.subr.bf16.mxu0 0
    %1522 = vmatpush2.bf16.msra.mxu0 0
    %1523 = vmatprep.subr.bf16.mxu0 0
    %1524 = vmatpush2.bf16.msra.mxu0 0
    %1525 = vmatprep.subr.bf16.mxu0 0
    %1526 = vmatpush2.bf16.msra.mxu0 0
    %1527 = vmatprep.subr.bf16.mxu0 0
    %1528 = vmatpush2.bf16.msra.mxu0 0
    %1529 = vmatprep.subr.bf16.mxu0 0
    %1530 = vmatpush2.bf16.msra.mxu0 0
    %1531 = vmatprep.mubr.bf16.mxu0 0
    %1532 = vmatmul.mubr.bf16.gmra.mxu0 %v1497
    %v1533 = vpop.f32.mrf.mxu0
    %v1534 = vadd.f32 %v1482, %v1533
    %v1535 = vpop.f32.mrf.mxu0
    %v1536 = vpop.f32.mrf.mxu0
    %v1537 = vpop.f32.mrf.mxu0
    %1538 = vdwg.mxu0
    %s1539 = scalar_lea.vmem %s3, 32
    %v1540 = vld [vmem:[%s1539] sm:$0xf]
    %v1541 = vld [vmem:[%s1539 + $0x4] sm:$0xf]
    %v1542 = vld [vmem:[%s1539 + $0x8] sm:$0xf]
    %v1543 = vld [vmem:[%s1539 + $0xc] sm:$0xf]
    %s1544 = scalar_lea.vmem %s4, 2
    %v1545 = vld [vmem:[%s1544] sm:$0x1]
    %v1547 = vlaneseq
    %v1548 = vshrl.u32 %v1547, 7
    %v1549 = vsub.s32 0, %v1548
    %v1550 = vrot.slane %v1545, %v1549
    %v1556 = vunpack.c.l.b16 %v1540
    %v1557 = vunpack.c.l.b16 %v1541
    %v1558 = vunpack.c.l.b16 %v1542
    %v1559 = vunpack.c.l.b16 %v1543
    %v1560 = vpack.c.b16 %v1557, %v1556
    %v1561 = vpack.c.b16 %v1559, %v1558
    %v1565 = vsel %vm74, %v1470, 0
    %1567 = vmatprep.subr.bf16.mxu0 0
    %1568 = vmatpush1.bf16.msra.mxu0 0
    %1569 = vmatprep.subr.bf16.mxu0 0
    %1570 = vmatpush1.bf16.msra.mxu0 0
    %1571 = vmatprep.subr.bf16.mxu0 0
    %1572 = vmatpush1.bf16.msra.mxu0 0
    %1573 = vmatprep.subr.bf16.mxu0 0
    %1574 = vmatpush1.bf16.msra.mxu0 0
    %1575 = vmatprep.subr.bf16.mxu0 0
    %1576 = vmatpush1.bf16.msra.mxu0 0
    %1577 = vmatprep.subr.bf16.mxu0 0
    %1578 = vmatpush1.bf16.msra.mxu0 0
    %1579 = vmatprep.subr.bf16.mxu0 0
    %1580 = vmatpush1.bf16.msra.mxu0 %v1561
    %1581 = vmatprep.subr.bf16.mxu0 0
    %1582 = vmatpush1.bf16.msra.mxu0 %v1560
    %1583 = vmatprep.subr.bf16.mxu0 0
    %1584 = vmatpush2.bf16.msra.mxu0 0
    %1585 = vmatprep.subr.bf16.mxu0 0
    %1586 = vmatpush2.bf16.msra.mxu0 0
    %1587 = vmatprep.subr.bf16.mxu0 0
    %1588 = vmatpush2.bf16.msra.mxu0 0
    %1589 = vmatprep.subr.bf16.mxu0 0
    %1590 = vmatpush2.bf16.msra.mxu0 0
    %1591 = vmatprep.subr.bf16.mxu0 0
    %1592 = vmatpush2.bf16.msra.mxu0 0
    %1593 = vmatprep.subr.bf16.mxu0 0
    %1594 = vmatpush2.bf16.msra.mxu0 0
    %1595 = vmatprep.subr.bf16.mxu0 0
    %1596 = vmatpush2.bf16.msra.mxu0 0
    %1597 = vmatprep.subr.bf16.mxu0 0
    %1598 = vmatpush2.bf16.msra.mxu0 0
    %1599 = vmatprep.mubr.bf16.mxu0 0
    %1600 = vmatmul.mubr.bf16.gmra.mxu0 %v1565
    %v1601 = vpop.f32.mrf.mxu0
    %v1602 = vadd.f32 %v1550, %v1601
    %v1603 = vpop.f32.mrf.mxu0
    %v1604 = vpop.f32.mrf.mxu0
    %v1605 = vadd.f32 %v1550, %v1604
    %v1606 = vpop.f32.mrf.mxu0
    %1607 = vdwg.mxu0
    %s1608 = scalar_lea.vmem %s5, 32
    %v1609 = vld [vmem:[%s1608] sm:$0xf]
    %v1610 = vld [vmem:[%s1608 + $0x4] sm:$0xf]
    %v1611 = vld [vmem:[%s1608 + $0x8] sm:$0xf]
    %v1612 = vld [vmem:[%s1608 + $0xc] sm:$0xf]
    %s1613 = scalar_lea.vmem %s6, 2
    %v1614 = vld [vmem:[%s1613] sm:$0x1]
    %v1616 = vlaneseq
    %v1617 = vshrl.u32 %v1616, 7
    %v1618 = vsub.s32 0, %v1617
    %v1619 = vrot.slane %v1614, %v1618
    %v1625 = vunpack.c.l.b16 %v1609
    %v1626 = vunpack.c.l.b16 %v1610
    %v1627 = vunpack.c.l.b16 %v1611
    %v1628 = vunpack.c.l.b16 %v1612
    %v1629 = vpack.c.b16 %v1626, %v1625
    %v1630 = vpack.c.b16 %v1628, %v1627
    %1633 = vmatprep.subr.bf16.mxu0 0
    %1634 = vmatpush1.bf16.msra.mxu0 0
    %1635 = vmatprep.subr.bf16.mxu0 0
    %1636 = vmatpush1.bf16.msra.mxu0 0
    %1637 = vmatprep.subr.bf16.mxu0 0
    %1638 = vmatpush1.bf16.msra.mxu0 0
    %1639 = vmatprep.subr.bf16.mxu0 0
    %1640 = vmatpush1.bf16.msra.mxu0 0
    %1641 = vmatprep.subr.bf16.mxu0 0
    %1642 = vmatpush1.bf16.msra.mxu0 0
    %1643 = vmatprep.subr.bf16.mxu0 0
    %1644 = vmatpush1.bf16.msra.mxu0 0
    %1645 = vmatprep.subr.bf16.mxu0 0
    %1646 = vmatpush1.bf16.msra.mxu0 %v1630
    %1647 = vmatprep.subr.bf16.mxu0 0
    %1648 = vmatpush1.bf16.msra.mxu0 %v1629
    %1649 = vmatprep.subr.bf16.mxu0 0
    %1650 = vmatpush2.bf16.msra.mxu0 0
    %1651 = vmatprep.subr.bf16.mxu0 0
    %1652 = vmatpush2.bf16.msra.mxu0 0
    %1653 = vmatprep.subr.bf16.mxu0 0
    %1654 = vmatpush2.bf16.msra.mxu0 0
    %1655 = vmatprep.subr.bf16.mxu0 0
    %1656 = vmatpush2.bf16.msra.mxu0 0
    %1657 = vmatprep.subr.bf16.mxu0 0
    %1658 = vmatpush2.bf16.msra.mxu0 0
    %1659 = vmatprep.subr.bf16.mxu0 0
    %1660 = vmatpush2.bf16.msra.mxu0 0
    %1661 = vmatprep.subr.bf16.mxu0 0
    %1662 = vmatpush2.bf16.msra.mxu0 0
    %1663 = vmatprep.subr.bf16.mxu0 0
    %1664 = vmatpush2.bf16.msra.mxu0 0
    %1665 = vmatprep.mubr.bf16.mxu0 0
    %1666 = vmatmul.mubr.bf16.gmra.mxu0 %v1565
    %v1667 = vpop.f32.mrf.mxu0
    %v1668 = vadd.f32 %v1619, %v1667
    %v1669 = vpop.f32.mrf.mxu0
    %v1670 = vpop.f32.mrf.mxu0
    %v1671 = vadd.f32 %v1619, %v1670
    %v1672 = vpop.f32.mrf.mxu0
    %1673 = vdwg.mxu0
    %v1674 = vpack.c.bf16 %v1534, %v1534
    %v1675 = vpack.c.bf16 %v1605, %v1602
    %v1676 = vpack.c.bf16 %v1671, %v1668
    %s1677 = scalar_lea.vmem %s1, 48
    %v1678 = vld [vmem:[%s1677] sm:$0xf]
    %v1679 = vld [vmem:[%s1677 + $0x4] sm:$0xf]
    %v1680 = vld [vmem:[%s1677 + $0x8] sm:$0xf]
    %v1681 = vld [vmem:[%s1677 + $0xc] sm:$0xf]
    %s1682 = scalar_lea.vmem %s2, 3
    %v1683 = vld [vmem:[%s1682] sm:$0x1]
    %v1685 = vlaneseq
    %v1686 = vshrl.u32 %v1685, 7
    %v1687 = vsub.s32 0, %v1686
    %v1688 = vrot.slane %v1683, %v1687
    %v1694 = vunpack.c.l.b16 %v1678
    %v1695 = vunpack.c.l.b16 %v1679
    %v1696 = vunpack.c.l.b16 %v1680
    %v1697 = vunpack.c.l.b16 %v1681
    %v1698 = vpack.c.b16 %v1695, %v1694
    %v1699 = vpack.c.b16 %v1697, %v1696
    %1702 = vmatprep.subr.bf16.mxu0 0
    %1703 = vmatpush1.bf16.msra.mxu0 0
    %1704 = vmatprep.subr.bf16.mxu0 0
    %1705 = vmatpush1.bf16.msra.mxu0 0
    %1706 = vmatprep.subr.bf16.mxu0 0
    %1707 = vmatpush1.bf16.msra.mxu0 0
    %1708 = vmatprep.subr.bf16.mxu0 0
    %1709 = vmatpush1.bf16.msra.mxu0 0
    %1710 = vmatprep.subr.bf16.mxu0 0
    %1711 = vmatpush1.bf16.msra.mxu0 0
    %1712 = vmatprep.subr.bf16.mxu0 0
    %1713 = vmatpush1.bf16.msra.mxu0 0
    %1714 = vmatprep.subr.bf16.mxu0 0
    %1715 = vmatpush1.bf16.msra.mxu0 %v1699
    %1716 = vmatprep.subr.bf16.mxu0 0
    %1717 = vmatpush1.bf16.msra.mxu0 %v1698
    %1718 = vmatprep.subr.bf16.mxu0 0
    %1719 = vmatpush2.bf16.msra.mxu0 0
    %1720 = vmatprep.subr.bf16.mxu0 0
    %1721 = vmatpush2.bf16.msra.mxu0 0
    %1722 = vmatprep.subr.bf16.mxu0 0
    %1723 = vmatpush2.bf16.msra.mxu0 0
    %1724 = vmatprep.subr.bf16.mxu0 0
    %1725 = vmatpush2.bf16.msra.mxu0 0
    %1726 = vmatprep.subr.bf16.mxu0 0
    %1727 = vmatpush2.bf16.msra.mxu0 0
    %1728 = vmatprep.subr.bf16.mxu0 0
    %1729 = vmatpush2.bf16.msra.mxu0 0
    %1730 = vmatprep.subr.bf16.mxu0 0
    %1731 = vmatpush2.bf16.msra.mxu0 0
    %1732 = vmatprep.subr.bf16.mxu0 0
    %1733 = vmatpush2.bf16.msra.mxu0 0
    %1734 = vmatprep.mubr.bf16.mxu0 0
    %1735 = vmatmul.mubr.bf16.gmra.mxu0 %v1497
    %v1736 = vpop.f32.mrf.mxu0
    %v1737 = vadd.f32 %v1688, %v1736
    %v1738 = vpop.f32.mrf.mxu0
    %v1739 = vpop.f32.mrf.mxu0
    %v1740 = vpop.f32.mrf.mxu0
    %1741 = vdwg.mxu0
    %s1742 = scalar_lea.vmem %s3, 48
    %v1743 = vld [vmem:[%s1742] sm:$0xf]
    %v1744 = vld [vmem:[%s1742 + $0x4] sm:$0xf]
    %v1745 = vld [vmem:[%s1742 + $0x8] sm:$0xf]
    %v1746 = vld [vmem:[%s1742 + $0xc] sm:$0xf]
    %s1747 = scalar_lea.vmem %s4, 3
    %v1748 = vld [vmem:[%s1747] sm:$0x1]
    %v1750 = vlaneseq
    %v1751 = vshrl.u32 %v1750, 7
    %v1752 = vsub.s32 0, %v1751
    %v1753 = vrot.slane %v1748, %v1752
    %v1759 = vunpack.c.l.b16 %v1743
    %v1760 = vunpack.c.l.b16 %v1744
    %v1761 = vunpack.c.l.b16 %v1745
    %v1762 = vunpack.c.l.b16 %v1746
    %v1763 = vpack.c.b16 %v1760, %v1759
    %v1764 = vpack.c.b16 %v1762, %v1761
    %1767 = vmatprep.subr.bf16.mxu0 0
    %1768 = vmatpush1.bf16.msra.mxu0 0
    %1769 = vmatprep.subr.bf16.mxu0 0
    %1770 = vmatpush1.bf16.msra.mxu0 0
    %1771 = vmatprep.subr.bf16.mxu0 0
    %1772 = vmatpush1.bf16.msra.mxu0 0
    %1773 = vmatprep.subr.bf16.mxu0 0
    %1774 = vmatpush1.bf16.msra.mxu0 0
    %1775 = vmatprep.subr.bf16.mxu0 0
    %1776 = vmatpush1.bf16.msra.mxu0 0
    %1777 = vmatprep.subr.bf16.mxu0 0
    %1778 = vmatpush1.bf16.msra.mxu0 0
    %1779 = vmatprep.subr.bf16.mxu0 0
    %1780 = vmatpush1.bf16.msra.mxu0 %v1764
    %1781 = vmatprep.subr.bf16.mxu0 0
    %1782 = vmatpush1.bf16.msra.mxu0 %v1763
    %1783 = vmatprep.subr.bf16.mxu0 0
    %1784 = vmatpush2.bf16.msra.mxu0 0
    %1785 = vmatprep.subr.bf16.mxu0 0
    %1786 = vmatpush2.bf16.msra.mxu0 0
    %1787 = vmatprep.subr.bf16.mxu0 0
    %1788 = vmatpush2.bf16.msra.mxu0 0
    %1789 = vmatprep.subr.bf16.mxu0 0
    %1790 = vmatpush2.bf16.msra.mxu0 0
    %1791 = vmatprep.subr.bf16.mxu0 0
    %1792 = vmatpush2.bf16.msra.mxu0 0
    %1793 = vmatprep.subr.bf16.mxu0 0
    %1794 = vmatpush2.bf16.msra.mxu0 0
    %1795 = vmatprep.subr.bf16.mxu0 0
    %1796 = vmatpush2.bf16.msra.mxu0 0
    %1797 = vmatprep.subr.bf16.mxu0 0
    %1798 = vmatpush2.bf16.msra.mxu0 0
    %1799 = vmatprep.mubr.bf16.mxu0 0
    %1800 = vmatmul.mubr.bf16.gmra.mxu0 %v1565
    %v1801 = vpop.f32.mrf.mxu0
    %v1802 = vadd.f32 %v1753, %v1801
    %v1803 = vpop.f32.mrf.mxu0
    %v1804 = vpop.f32.mrf.mxu0
    %v1805 = vadd.f32 %v1753, %v1804
    %v1806 = vpop.f32.mrf.mxu0
    %1807 = vdwg.mxu0
    %s1808 = scalar_lea.vmem %s5, 48
    %v1809 = vld [vmem:[%s1808] sm:$0xf]
    %v1810 = vld [vmem:[%s1808 + $0x4] sm:$0xf]
    %v1811 = vld [vmem:[%s1808 + $0x8] sm:$0xf]
    %v1812 = vld [vmem:[%s1808 + $0xc] sm:$0xf]
    %s1813 = scalar_lea.vmem %s6, 3
    %v1814 = vld [vmem:[%s1813] sm:$0x1]
    %v1816 = vlaneseq
    %v1817 = vshrl.u32 %v1816, 7
    %v1818 = vsub.s32 0, %v1817
    %v1819 = vrot.slane %v1814, %v1818
    %v1825 = vunpack.c.l.b16 %v1809
    %v1826 = vunpack.c.l.b16 %v1810
    %v1827 = vunpack.c.l.b16 %v1811
    %v1828 = vunpack.c.l.b16 %v1812
    %v1829 = vpack.c.b16 %v1826, %v1825
    %v1830 = vpack.c.b16 %v1828, %v1827
    %1833 = vmatprep.subr.bf16.mxu0 0
    %1834 = vmatpush1.bf16.msra.mxu0 0
    %1835 = vmatprep.subr.bf16.mxu0 0
    %1836 = vmatpush1.bf16.msra.mxu0 0
    %1837 = vmatprep.subr.bf16.mxu0 0
    %1838 = vmatpush1.bf16.msra.mxu0 0
    %1839 = vmatprep.subr.bf16.mxu0 0
    %1840 = vmatpush1.bf16.msra.mxu0 0
    %1841 = vmatprep.subr.bf16.mxu0 0
    %1842 = vmatpush1.bf16.msra.mxu0 0
    %1843 = vmatprep.subr.bf16.mxu0 0
    %1844 = vmatpush1.bf16.msra.mxu0 0
    %1845 = vmatprep.subr.bf16.mxu0 0
    %1846 = vmatpush1.bf16.msra.mxu0 %v1830
    %1847 = vmatprep.subr.bf16.mxu0 0
    %1848 = vmatpush1.bf16.msra.mxu0 %v1829
    %1849 = vmatprep.subr.bf16.mxu0 0
    %1850 = vmatpush2.bf16.msra.mxu0 0
    %1851 = vmatprep.subr.bf16.mxu0 0
    %1852 = vmatpush2.bf16.msra.mxu0 0
    %1853 = vmatprep.subr.bf16.mxu0 0
    %1854 = vmatpush2.bf16.msra.mxu0 0
    %1855 = vmatprep.subr.bf16.mxu0 0
    %1856 = vmatpush2.bf16.msra.mxu0 0
    %1857 = vmatprep.subr.bf16.mxu0 0
    %1858 = vmatpush2.bf16.msra.mxu0 0
    %1859 = vmatprep.subr.bf16.mxu0 0
    %1860 = vmatpush2.bf16.msra.mxu0 0
    %1861 = vmatprep.subr.bf16.mxu0 0
    %1862 = vmatpush2.bf16.msra.mxu0 0
    %1863 = vmatprep.subr.bf16.mxu0 0
    %1864 = vmatpush2.bf16.msra.mxu0 0
    %1865 = vmatprep.mubr.bf16.mxu0 0
    %1866 = vmatmul.mubr.bf16.gmra.mxu0 %v1565
    %v1867 = vpop.f32.mrf.mxu0
    %v1868 = vadd.f32 %v1819, %v1867
    %v1869 = vpop.f32.mrf.mxu0
    %v1870 = vpop.f32.mrf.mxu0
    %v1871 = vadd.f32 %v1819, %v1870
    %v1872 = vpop.f32.mrf.mxu0
    %1873 = vdwg.mxu0
    %v1874 = vpack.c.bf16 %v1737, %v1737
    %v1875 = vpack.c.bf16 %v1805, %v1802
    %v1876 = vpack.c.bf16 %v1871, %v1868
    %v1878 = vsel %vm518, %v1674, 0
    %v1881 = vsel %vm518, %v1675, 0
    %1883 = vmatprep.subr.bf16.mxu0 0
    %1884 = vmatpush1.bf16.xpose.msra.mxu0 0
    %1885 = vmatprep.subr.bf16.mxu0 0
    %1886 = vmatpush1.bf16.xpose.msra.mxu0 0
    %1887 = vmatprep.subr.bf16.mxu0 0
    %1888 = vmatpush1.bf16.xpose.msra.mxu0 0
    %1889 = vmatprep.subr.bf16.mxu0 0
    %1890 = vmatpush1.bf16.xpose.msra.mxu0 0
    %1891 = vmatprep.subr.bf16.mxu0 0
    %1892 = vmatpush1.bf16.xpose.msra.mxu0 0
    %1893 = vmatprep.subr.bf16.mxu0 0
    %1894 = vmatpush1.bf16.xpose.msra.mxu0 0
    %1895 = vmatprep.subr.bf16.mxu0 0
    %1896 = vmatpush1.bf16.xpose.msra.mxu0 0
    %1897 = vmatprep.subr.bf16.mxu0 0
    %1898 = vmatpush1.bf16.xpose.msra.mxu0 %v1881
    %1899 = vmatprep.subr.bf16.mxu0 0
    %1900 = vmatpush2.bf16.xpose.msra.mxu0 0
    %1901 = vmatprep.subr.bf16.mxu0 0
    %1902 = vmatpush2.bf16.xpose.msra.mxu0 0
    %1903 = vmatprep.subr.bf16.mxu0 0
    %1904 = vmatpush2.bf16.xpose.msra.mxu0 0
    %1905 = vmatprep.subr.bf16.mxu0 0
    %1906 = vmatpush2.bf16.xpose.msra.mxu0 0
    %1907 = vmatprep.subr.bf16.mxu0 0
    %1908 = vmatpush2.bf16.xpose.msra.mxu0 0
    %1909 = vmatprep.subr.bf16.mxu0 0
    %1910 = vmatpush2.bf16.xpose.msra.mxu0 0
    %1911 = vmatprep.subr.bf16.mxu0 0
    %1912 = vmatpush2.bf16.xpose.msra.mxu0 0
    %1913 = vmatprep.subr.bf16.mxu0 0
    %1914 = vmatpush2.bf16.xpose.msra.mxu0 0
    %1915 = vmatprep.mubr.bf16.mxu0 0
    %1916 = vmatmul.mubr.bf16.gmra.mxu0 %v1878
    %v1917 = vpop.f32.mrf.mxu0
    %v1918 = vadd.f32 0.0, %v1917
    %v1919 = vpop.f32.mrf.mxu0
    %v1920 = vpop.f32.mrf.mxu0
    %v1921 = vpop.f32.mrf.mxu0
    %1922 = vdwg.mxu0
    %vm1923 = vcmask 57344
    %v1924 = vsel %vm1923, %v1918, -inf
    %1925 = vmax.xlane.f32.xlu0 %v1924
    %v1926 = vpop.xlane.xlu0 %1925
    %v1927 = vsub.f32 %v1918, %v1926
    %v1928 = vmul.f32 %v1927, 1.442695
    %v1929 = vpow.pop %v1928
    %v1930 = vsel %vm1923, %v1929, 0.0
    %1931 = vadd.xlane.f32.xlu0 %v1930
    %v1932 = vpop.xlane.xlu0 %1931
    %v1933 = vrcp.pop %v1932
    %v1934 = vmul.f32 %v1929, %v1933
    %v1935 = vpack.c.bf16 %v1934, %v1934
    %v1937 = vsel %vm565, %v1935, 0
    %v1940 = vsel %vm581, %v1676, 0
    %1942 = vmatprep.subr.bf16.mxu0 0
    %1943 = vmatpush1.bf16.msra.mxu0 0
    %1944 = vmatprep.subr.bf16.mxu0 0
    %1945 = vmatpush1.bf16.msra.mxu0 0
    %1946 = vmatprep.subr.bf16.mxu0 0
    %1947 = vmatpush1.bf16.msra.mxu0 0
    %1948 = vmatprep.subr.bf16.mxu0 0
    %1949 = vmatpush1.bf16.msra.mxu0 0
    %1950 = vmatprep.subr.bf16.mxu0 0
    %1951 = vmatpush1.bf16.msra.mxu0 0
    %1952 = vmatprep.subr.bf16.mxu0 0
    %1953 = vmatpush1.bf16.msra.mxu0 0
    %1954 = vmatprep.subr.bf16.mxu0 0
    %1955 = vmatpush1.bf16.msra.mxu0 0
    %1956 = vmatprep.subr.bf16.mxu0 0
    %1957 = vmatpush1.bf16.msra.mxu0 %v1940
    %1958 = vmatprep.subr.bf16.mxu0 0
    %1959 = vmatpush2.bf16.msra.mxu0 0
    %1960 = vmatprep.subr.bf16.mxu0 0
    %1961 = vmatpush2.bf16.msra.mxu0 0
    %1962 = vmatprep.subr.bf16.mxu0 0
    %1963 = vmatpush2.bf16.msra.mxu0 0
    %1964 = vmatprep.subr.bf16.mxu0 0
    %1965 = vmatpush2.bf16.msra.mxu0 0
    %1966 = vmatprep.subr.bf16.mxu0 0
    %1967 = vmatpush2.bf16.msra.mxu0 0
    %1968 = vmatprep.subr.bf16.mxu0 0
    %1969 = vmatpush2.bf16.msra.mxu0 0
    %1970 = vmatprep.subr.bf16.mxu0 0
    %1971 = vmatpush2.bf16.msra.mxu0 0
    %1972 = vmatprep.subr.bf16.mxu0 0
    %1973 = vmatpush2.bf16.msra.mxu0 0
    %1974 = vmatprep.mubr.bf16.mxu0 0
    %1975 = vmatmul.mubr.bf16.gmra.mxu0 %v1937
    %v1976 = vpop.f32.mrf.mxu0
    %v1977 = vadd.f32 0.0, %v1976
    %v1978 = vpop.f32.mrf.mxu0
    %v1979 = vpop.f32.mrf.mxu0
    %v1980 = vpop.f32.mrf.mxu0
    %1981 = vdwg.mxu0
    %v1982 = vpack.c.bf16 %v1977, %v1977
    %s1983 = scalar_lea.vmem %s7, 16
    %v1984 = vld [vmem:[%s1983] sm:$0xf]
    %v1985 = vld [vmem:[%s1983 + $0x4] sm:$0xf]
    %v1987 = vsel %vm518, %v1874, 0
    %v1990 = vsel %vm518, %v1875, 0
    %1992 = vmatprep.subr.bf16.mxu0 0
    %1993 = vmatpush1.bf16.xpose.msra.mxu0 0
    %1994 = vmatprep.subr.bf16.mxu0 0
    %1995 = vmatpush1.bf16.xpose.msra.mxu0 0
    %1996 = vmatprep.subr.bf16.mxu0 0
    %1997 = vmatpush1.bf16.xpose.msra.mxu0 0
    %1998 = vmatprep.subr.bf16.mxu0 0
    %1999 = vmatpush1.bf16.xpose.msra.mxu0 0
    %2000 = vmatprep.subr.bf16.mxu0 0
    %2001 = vmatpush1.bf16.xpose.msra.mxu0 0
    %2002 = vmatprep.subr.bf16.mxu0 0
    %2003 = vmatpush1.bf16.xpose.msra.mxu0 0
    %2004 = vmatprep.subr.bf16.mxu0 0
    %2005 = vmatpush1.bf16.xpose.msra.mxu0 0
    %2006 = vmatprep.subr.bf16.mxu0 0
    %2007 = vmatpush1.bf16.xpose.msra.mxu0 %v1990
    %2008 = vmatprep.subr.bf16.mxu0 0
    %2009 = vmatpush2.bf16.xpose.msra.mxu0 0
    %2010 = vmatprep.subr.bf16.mxu0 0
    %2011 = vmatpush2.bf16.xpose.msra.mxu0 0
    %2012 = vmatprep.subr.bf16.mxu0 0
    %2013 = vmatpush2.bf16.xpose.msra.mxu0 0
    %2014 = vmatprep.subr.bf16.mxu0 0
    %2015 = vmatpush2.bf16.xpose.msra.mxu0 0
    %2016 = vmatprep.subr.bf16.mxu0 0
    %2017 = vmatpush2.bf16.xpose.msra.mxu0 0
    %2018 = vmatprep.subr.bf16.mxu0 0
    %2019 = vmatpush2.bf16.xpose.msra.mxu0 0
    %2020 = vmatprep.subr.bf16.mxu0 0
    %2021 = vmatpush2.bf16.xpose.msra.mxu0 0
    %2022 = vmatprep.subr.bf16.mxu0 0
    %2023 = vmatpush2.bf16.xpose.msra.mxu0 0
    %2024 = vmatprep.mubr.bf16.mxu0 0
    %2025 = vmatmul.mubr.bf16.gmra.mxu0 %v1987
    %v2026 = vpop.f32.mrf.mxu0
    %v2027 = vadd.f32 0.0, %v2026
    %v2028 = vpop.f32.mrf.mxu0
    %v2029 = vpop.f32.mrf.mxu0
    %v2030 = vpop.f32.mrf.mxu0
    %2031 = vdwg.mxu0
    %v2032 = vsel %vm1923, %v2027, -inf
    %2033 = vmax.xlane.f32.xlu0 %v2032
    %v2034 = vpop.xlane.xlu0 %2033
    %v2035 = vsub.f32 %v2027, %v2034
    %v2036 = vmul.f32 %v2035, 1.442695
    %v2037 = vpow.pop %v2036
    %v2038 = vsel %vm1923, %v2037, 0.0
    %2039 = vadd.xlane.f32.xlu0 %v2038
    %v2040 = vpop.xlane.xlu0 %2039
    %v2041 = vrcp.pop %v2040
    %v2042 = vmul.f32 %v2037, %v2041
    %v2043 = vpack.c.bf16 %v2042, %v2042
    %v2045 = vsel %vm565, %v2043, 0
    %v2048 = vsel %vm581, %v1876, 0
    %2050 = vmatprep.subr.bf16.mxu0 0
    %2051 = vmatpush1.bf16.msra.mxu0 0
    %2052 = vmatprep.subr.bf16.mxu0 0
    %2053 = vmatpush1.bf16.msra.mxu0 0
    %2054 = vmatprep.subr.bf16.mxu0 0
    %2055 = vmatpush1.bf16.msra.mxu0 0
    %2056 = vmatprep.subr.bf16.mxu0 0
    %2057 = vmatpush1.bf16.msra.mxu0 0
    %2058 = vmatprep.subr.bf16.mxu0 0
    %2059 = vmatpush1.bf16.msra.mxu0 0
    %2060 = vmatprep.subr.bf16.mxu0 0
    %2061 = vmatpush1.bf16.msra.mxu0 0
    %2062 = vmatprep.subr.bf16.mxu0 0
    %2063 = vmatpush1.bf16.msra.mxu0 0
    %2064 = vmatprep.subr.bf16.mxu0 0
    %2065 = vmatpush1.bf16.msra.mxu0 %v2048
    %2066 = vmatprep.subr.bf16.mxu0 0
    %2067 = vmatpush2.bf16.msra.mxu0 0
    %2068 = vmatprep.subr.bf16.mxu0 0
    %2069 = vmatpush2.bf16.msra.mxu0 0
    %2070 = vmatprep.subr.bf16.mxu0 0
    %2071 = vmatpush2.bf16.msra.mxu0 0
    %2072 = vmatprep.subr.bf16.mxu0 0
    %2073 = vmatpush2.bf16.msra.mxu0 0
    %2074 = vmatprep.subr.bf16.mxu0 0
    %2075 = vmatpush2.bf16.msra.mxu0 0
    %2076 = vmatprep.subr.bf16.mxu0 0
    %2077 = vmatpush2.bf16.msra.mxu0 0
    %2078 = vmatprep.subr.bf16.mxu0 0
    %2079 = vmatpush2.bf16.msra.mxu0 0
    %2080 = vmatprep.subr.bf16.mxu0 0
    %2081 = vmatpush2.bf16.msra.mxu0 0
    %2082 = vmatprep.mubr.bf16.mxu0 0
    %2083 = vmatmul.mubr.bf16.gmra.mxu0 %v2045
    %v2084 = vpop.f32.mrf.mxu0
    %v2085 = vadd.f32 0.0, %v2084
    %v2086 = vpop.f32.mrf.mxu0
    %v2087 = vpop.f32.mrf.mxu0
    %v2088 = vpop.f32.mrf.mxu0
    %2089 = vdwg.mxu0
    %v2090 = vpack.c.bf16 %v2085, %v2085
    %s2091 = scalar_lea.vmem %s7, 24
    %v2092 = vld [vmem:[%s2091] sm:$0xf]
    %v2093 = vld [vmem:[%s2091 + $0x4] sm:$0xf]
    %v2096 = vunpack.c.l.b16 %v2092
    %v2097 = vunpack.c.l.b16 %v2093
    %v2098 = vpack.c.b16 %v2097, %v2096
    %v2101 = vsel %vm518, %v2090, 0
    %2103 = vmatprep.subr.bf16.mxu0 0
    %2104 = vmatpush1.bf16.msra.mxu0 0
    %2105 = vmatprep.subr.bf16.mxu0 0
    %2106 = vmatpush1.bf16.msra.mxu0 0
    %2107 = vmatprep.subr.bf16.mxu0 0
    %2108 = vmatpush1.bf16.msra.mxu0 0
    %2109 = vmatprep.subr.bf16.mxu0 0
    %2110 = vmatpush1.bf16.msra.mxu0 0
    %2111 = vmatprep.subr.bf16.mxu0 0
    %2112 = vmatpush1.bf16.msra.mxu0 0
    %2113 = vmatprep.subr.bf16.mxu0 0
    %2114 = vmatpush1.bf16.msra.mxu0 0
    %2115 = vmatprep.subr.bf16.mxu0 0
    %2116 = vmatpush1.bf16.msra.mxu0 0
    %2117 = vmatprep.subr.bf16.mxu0 0
    %2118 = vmatpush1.bf16.msra.mxu0 %v2098
    %2119 = vmatprep.subr.bf16.mxu0 0
    %2120 = vmatpush2.bf16.msra.mxu0 0
    %2121 = vmatprep.subr.bf16.mxu0 0
    %2122 = vmatpush2.bf16.msra.mxu0 0
    %2123 = vmatprep.subr.bf16.mxu0 0
    %2124 = vmatpush2.bf16.msra.mxu0 0
    %2125 = vmatprep.subr.bf16.mxu0 0
    %2126 = vmatpush2.bf16.msra.mxu0 0
    %2127 = vmatprep.subr.bf16.mxu0 0
    %2128 = vmatpush2.bf16.msra.mxu0 0
    %2129 = vmatprep.subr.bf16.mxu0 0
    %2130 = vmatpush2.bf16.msra.mxu0 0
    %2131 = vmatprep.subr.bf16.mxu0 0
    %2132 = vmatpush2.bf16.msra.mxu0 0
    %2133 = vmatprep.subr.bf16.mxu0 0
    %2134 = vmatpush2.bf16.msra.mxu0 0
    %2135 = vmatprep.mubr.bf16.mxu0 0
    %2136 = vmatmul.mubr.bf16.gmra.mxu0 %v2101
    %v2137 = vpop.f32.mrf.mxu0
    %v2138 = vadd.f32 0.0, %v2137
    %v2139 = vpop.f32.mrf.mxu0
    %v2140 = vpop.f32.mrf.mxu0
    %v2141 = vpop.f32.mrf.mxu0
    %2142 = vdwg.mxu0
    %v2145 = vunpack.c.l.b16 %v1984
    %v2146 = vunpack.c.l.b16 %v1985
    %v2147 = vpack.c.b16 %v2146, %v2145
    %v2150 = vsel %vm518, %v1982, 0
    %2152 = vmatprep.subr.bf16.mxu0 0
    %2153 = vmatpush1.bf16.msra.mxu0 0
    %2154 = vmatprep.subr.bf16.mxu0 0
    %2155 = vmatpush1.bf16.msra.mxu0 0
    %2156 = vmatprep.subr.bf16.mxu0 0
    %2157 = vmatpush1.bf16.msra.mxu0 0
    %2158 = vmatprep.subr.bf16.mxu0 0
    %2159 = vmatpush1.bf16.msra.mxu0 0
    %2160 = vmatprep.subr.bf16.mxu0 0
    %2161 = vmatpush1.bf16.msra.mxu0 0
    %2162 = vmatprep.subr.bf16.mxu0 0
    %2163 = vmatpush1.bf16.msra.mxu0 0
    %2164 = vmatprep.subr.bf16.mxu0 0
    %2165 = vmatpush1.bf16.msra.mxu0 0
    %2166 = vmatprep.subr.bf16.mxu0 0
    %2167 = vmatpush1.bf16.msra.mxu0 %v2147
    %2168 = vmatprep.subr.bf16.mxu0 0
    %2169 = vmatpush2.bf16.msra.mxu0 0
    %2170 = vmatprep.subr.bf16.mxu0 0
    %2171 = vmatpush2.bf16.msra.mxu0 0
    %2172 = vmatprep.subr.bf16.mxu0 0
    %2173 = vmatpush2.bf16.msra.mxu0 0
    %2174 = vmatprep.subr.bf16.mxu0 0
    %2175 = vmatpush2.bf16.msra.mxu0 0
    %2176 = vmatprep.subr.bf16.mxu0 0
    %2177 = vmatpush2.bf16.msra.mxu0 0
    %2178 = vmatprep.subr.bf16.mxu0 0
    %2179 = vmatpush2.bf16.msra.mxu0 0
    %2180 = vmatprep.subr.bf16.mxu0 0
    %2181 = vmatpush2.bf16.msra.mxu0 0
    %2182 = vmatprep.subr.bf16.mxu0 0
    %2183 = vmatpush2.bf16.msra.mxu0 0
    %2184 = vmatprep.mubr.bf16.mxu0 0
    %2185 = vmatmul.mubr.bf16.gmra.mxu0 %v2150
    %v2186 = vpop.f32.mrf.mxu0
    %v2187 = vadd.f32 %v2138, %v2186
    %v2188 = vpop.f32.mrf.mxu0
    %v2189 = vpop.f32.mrf.mxu0
    %v2190 = vpop.f32.mrf.mxu0
    %2191 = vdwg.mxu0
    %v2192 = vshrl.u32 %v1674, 16
    %v2195 = vrot.slane %v1675, 4
    %v2197 = vsel %vm518, %v2192, 0
    %v2200 = vsel %vm518, %v2195, 0
    %2202 = vmatprep.subr.bf16.mxu0 0
    %2203 = vmatpush1.bf16.xpose.msra.mxu0 0
    %2204 = vmatprep.subr.bf16.mxu0 0
    %2205 = vmatpush1.bf16.xpose.msra.mxu0 0
    %2206 = vmatprep.subr.bf16.mxu0 0
    %2207 = vmatpush1.bf16.xpose.msra.mxu0 0
    %2208 = vmatprep.subr.bf16.mxu0 0
    %2209 = vmatpush1.bf16.xpose.msra.mxu0 0
    %2210 = vmatprep.subr.bf16.mxu0 0
    %2211 = vmatpush1.bf16.xpose.msra.mxu0 0
    %2212 = vmatprep.subr.bf16.mxu0 0
    %2213 = vmatpush1.bf16.xpose.msra.mxu0 0
    %2214 = vmatprep.subr.bf16.mxu0 0
    %2215 = vmatpush1.bf16.xpose.msra.mxu0 0
    %2216 = vmatprep.subr.bf16.mxu0 0
    %2217 = vmatpush1.bf16.xpose.msra.mxu0 %v2200
    %2218 = vmatprep.subr.bf16.mxu0 0
    %2219 = vmatpush2.bf16.xpose.msra.mxu0 0
    %2220 = vmatprep.subr.bf16.mxu0 0
    %2221 = vmatpush2.bf16.xpose.msra.mxu0 0
    %2222 = vmatprep.subr.bf16.mxu0 0
    %2223 = vmatpush2.bf16.xpose.msra.mxu0 0
    %2224 = vmatprep.subr.bf16.mxu0 0
    %2225 = vmatpush2.bf16.xpose.msra.mxu0 0
    %2226 = vmatprep.subr.bf16.mxu0 0
    %2227 = vmatpush2.bf16.xpose.msra.mxu0 0
    %2228 = vmatprep.subr.bf16.mxu0 0
    %2229 = vmatpush2.bf16.xpose.msra.mxu0 0
    %2230 = vmatprep.subr.bf16.mxu0 0
    %2231 = vmatpush2.bf16.xpose.msra.mxu0 0
    %2232 = vmatprep.subr.bf16.mxu0 0
    %2233 = vmatpush2.bf16.xpose.msra.mxu0 0
    %2234 = vmatprep.mubr.bf16.mxu0 0
    %2235 = vmatmul.mubr.bf16.gmra.mxu0 %v2197
    %v2236 = vpop.f32.mrf.mxu0
    %v2237 = vadd.f32 0.0, %v2236
    %v2238 = vpop.f32.mrf.mxu0
    %v2239 = vpop.f32.mrf.mxu0
    %v2240 = vpop.f32.mrf.mxu0
    %2241 = vdwg.mxu0
    %v2242 = vsel %vm1923, %v2237, -inf
    %2243 = vmax.xlane.f32.xlu0 %v2242
    %v2244 = vpop.xlane.xlu0 %2243
    %v2245 = vsub.f32 %v2237, %v2244
    %v2246 = vmul.f32 %v2245, 1.442695
    %v2247 = vpow.pop %v2246
    %v2248 = vsel %vm1923, %v2247, 0.0
    %2249 = vadd.xlane.f32.xlu0 %v2248
    %v2250 = vpop.xlane.xlu0 %2249
    %v2251 = vrcp.pop %v2250
    %v2252 = vmul.f32 %v2247, %v2251
    %v2253 = vpack.c.bf16 %v2252, %v2252
    %v2255 = vrot.slane %v1676, 4
    %v2257 = vsel %vm565, %v2253, 0
    %v2260 = vsel %vm581, %v2255, 0
    %2262 = vmatprep.subr.bf16.mxu0 0
    %2263 = vmatpush1.bf16.msra.mxu0 0
    %2264 = vmatprep.subr.bf16.mxu0 0
    %2265 = vmatpush1.bf16.msra.mxu0 0
    %2266 = vmatprep.subr.bf16.mxu0 0
    %2267 = vmatpush1.bf16.msra.mxu0 0
    %2268 = vmatprep.subr.bf16.mxu0 0
    %2269 = vmatpush1.bf16.msra.mxu0 0
    %2270 = vmatprep.subr.bf16.mxu0 0
    %2271 = vmatpush1.bf16.msra.mxu0 0
    %2272 = vmatprep.subr.bf16.mxu0 0
    %2273 = vmatpush1.bf16.msra.mxu0 0
    %2274 = vmatprep.subr.bf16.mxu0 0
    %2275 = vmatpush1.bf16.msra.mxu0 0
    %2276 = vmatprep.subr.bf16.mxu0 0
    %2277 = vmatpush1.bf16.msra.mxu0 %v2260
    %2278 = vmatprep.subr.bf16.mxu0 0
    %2279 = vmatpush2.bf16.msra.mxu0 0
    %2280 = vmatprep.subr.bf16.mxu0 0
    %2281 = vmatpush2.bf16.msra.mxu0 0
    %2282 = vmatprep.subr.bf16.mxu0 0
    %2283 = vmatpush2.bf16.msra.mxu0 0
    %2284 = vmatprep.subr.bf16.mxu0 0
    %2285 = vmatpush2.bf16.msra.mxu0 0
    %2286 = vmatprep.subr.bf16.mxu0 0
    %2287 = vmatpush2.bf16.msra.mxu0 0
    %2288 = vmatprep.subr.bf16.mxu0 0
    %2289 = vmatpush2.bf16.msra.mxu0 0
    %2290 = vmatprep.subr.bf16.mxu0 0
    %2291 = vmatpush2.bf16.msra.mxu0 0
    %2292 = vmatprep.subr.bf16.mxu0 0
    %2293 = vmatpush2.bf16.msra.mxu0 0
    %2294 = vmatprep.mubr.bf16.mxu0 0
    %2295 = vmatmul.mubr.bf16.gmra.mxu0 %v2257
    %v2296 = vpop.f32.mrf.mxu0
    %v2297 = vadd.f32 0.0, %v2296
    %v2298 = vpop.f32.mrf.mxu0
    %v2299 = vpop.f32.mrf.mxu0
    %v2300 = vpop.f32.mrf.mxu0
    %2301 = vdwg.mxu0
    %v2302 = vpack.c.bf16 %v2297, %v2297
    %v2303 = vld [vmem:[%s1983] sm:$0xf]
    %v2304 = vld [vmem:[%s1983 + $0x4] sm:$0xf]
    %v2305 = vshrl.u32 %v1874, 16
    %v2308 = vrot.slane %v1875, 4
    %v2310 = vsel %vm518, %v2305, 0
    %v2313 = vsel %vm518, %v2308, 0
    %2315 = vmatprep.subr.bf16.mxu0 0
    %2316 = vmatpush1.bf16.xpose.msra.mxu0 0
    %2317 = vmatprep.subr.bf16.mxu0 0
    %2318 = vmatpush1.bf16.xpose.msra.mxu0 0
    %2319 = vmatprep.subr.bf16.mxu0 0
    %2320 = vmatpush1.bf16.xpose.msra.mxu0 0
    %2321 = vmatprep.subr.bf16.mxu0 0
    %2322 = vmatpush1.bf16.xpose.msra.mxu0 0
    %2323 = vmatprep.subr.bf16.mxu0 0
    %2324 = vmatpush1.bf16.xpose.msra.mxu0 0
    %2325 = vmatprep.subr.bf16.mxu0 0
    %2326 = vmatpush1.bf16.xpose.msra.mxu0 0
    %2327 = vmatprep.subr.bf16.mxu0 0
    %2328 = vmatpush1.bf16.xpose.msra.mxu0 0
    %2329 = vmatprep.subr.bf16.mxu0 0
    %2330 = vmatpush1.bf16.xpose.msra.mxu0 %v2313
    %2331 = vmatprep.subr.bf16.mxu0 0
    %2332 = vmatpush2.bf16.xpose.msra.mxu0 0
    %2333 = vmatprep.subr.bf16.mxu0 0
    %2334 = vmatpush2.bf16.xpose.msra.mxu0 0
    %2335 = vmatprep.subr.bf16.mxu0 0
    %2336 = vmatpush2.bf16.xpose.msra.mxu0 0
    %2337 = vmatprep.subr.bf16.mxu0 0
    %2338 = vmatpush2.bf16.xpose.msra.mxu0 0
    %2339 = vmatprep.subr.bf16.mxu0 0
    %2340 = vmatpush2.bf16.xpose.msra.mxu0 0
    %2341 = vmatprep.subr.bf16.mxu0 0
    %2342 = vmatpush2.bf16.xpose.msra.mxu0 0
    %2343 = vmatprep.subr.bf16.mxu0 0
    %2344 = vmatpush2.bf16.xpose.msra.mxu0 0
    %2345 = vmatprep.subr.bf16.mxu0 0
    %2346 = vmatpush2.bf16.xpose.msra.mxu0 0
    %2347 = vmatprep.mubr.bf16.mxu0 0
    %2348 = vmatmul.mubr.bf16.gmra.mxu0 %v2310
    %v2349 = vpop.f32.mrf.mxu0
    %v2350 = vadd.f32 0.0, %v2349
    %v2351 = vpop.f32.mrf.mxu0
    %v2352 = vpop.f32.mrf.mxu0
    %v2353 = vpop.f32.mrf.mxu0
    %2354 = vdwg.mxu0
    %v2355 = vsel %vm1923, %v2350, -inf
    %2356 = vmax.xlane.f32.xlu0 %v2355
    %v2357 = vpop.xlane.xlu0 %2356
    %v2358 = vsub.f32 %v2350, %v2357
    %v2359 = vmul.f32 %v2358, 1.442695
    %v2360 = vpow.pop %v2359
    %v2361 = vsel %vm1923, %v2360, 0.0
    %2362 = vadd.xlane.f32.xlu0 %v2361
    %v2363 = vpop.xlane.xlu0 %2362
    %v2364 = vrcp.pop %v2363
    %v2365 = vmul.f32 %v2360, %v2364
    %v2366 = vpack.c.bf16 %v2365, %v2365
    %v2368 = vrot.slane %v1876, 4
    %v2370 = vsel %vm565, %v2366, 0
    %v2373 = vsel %vm581, %v2368, 0
    %2375 = vmatprep.subr.bf16.mxu0 0
    %2376 = vmatpush1.bf16.msra.mxu0 0
    %2377 = vmatprep.subr.bf16.mxu0 0
    %2378 = vmatpush1.bf16.msra.mxu0 0
    %2379 = vmatprep.subr.bf16.mxu0 0
    %2380 = vmatpush1.bf16.msra.mxu0 0
    %2381 = vmatprep.subr.bf16.mxu0 0
    %2382 = vmatpush1.bf16.msra.mxu0 0
    %2383 = vmatprep.subr.bf16.mxu0 0
    %2384 = vmatpush1.bf16.msra.mxu0 0
    %2385 = vmatprep.subr.bf16.mxu0 0
    %2386 = vmatpush1.bf16.msra.mxu0 0
    %2387 = vmatprep.subr.bf16.mxu0 0
    %2388 = vmatpush1.bf16.msra.mxu0 0
    %2389 = vmatprep.subr.bf16.mxu0 0
    %2390 = vmatpush1.bf16.msra.mxu0 %v2373
    %2391 = vmatprep.subr.bf16.mxu0 0
    %2392 = vmatpush2.bf16.msra.mxu0 0
    %2393 = vmatprep.subr.bf16.mxu0 0
    %2394 = vmatpush2.bf16.msra.mxu0 0
    %2395 = vmatprep.subr.bf16.mxu0 0
    %2396 = vmatpush2.bf16.msra.mxu0 0
    %2397 = vmatprep.subr.bf16.mxu0 0
    %2398 = vmatpush2.bf16.msra.mxu0 0
    %2399 = vmatprep.subr.bf16.mxu0 0
    %2400 = vmatpush2.bf16.msra.mxu0 0
    %2401 = vmatprep.subr.bf16.mxu0 0
    %2402 = vmatpush2.bf16.msra.mxu0 0
    %2403 = vmatprep.subr.bf16.mxu0 0
    %2404 = vmatpush2.bf16.msra.mxu0 0
    %2405 = vmatprep.subr.bf16.mxu0 0
    %2406 = vmatpush2.bf16.msra.mxu0 0
    %2407 = vmatprep.mubr.bf16.mxu0 0
    %2408 = vmatmul.mubr.bf16.gmra.mxu0 %v2370
    %v2409 = vpop.f32.mrf.mxu0
    %v2410 = vadd.f32 0.0, %v2409
    %v2411 = vpop.f32.mrf.mxu0
    %v2412 = vpop.f32.mrf.mxu0
    %v2413 = vpop.f32.mrf.mxu0
    %2414 = vdwg.mxu0
    %v2415 = vpack.c.bf16 %v2410, %v2410
    %v2416 = vld [vmem:[%s2091] sm:$0xf]
    %v2417 = vld [vmem:[%s2091 + $0x4] sm:$0xf]
    %v2420 = vunpack.c.l.b16 %v2416
    %v2421 = vunpack.c.l.b16 %v2417
    %v2422 = vpack.c.b16 %v2421, %v2420
    %v2425 = vsel %vm518, %v2415, 0
    %2427 = vmatprep.subr.bf16.mxu0 0
    %2428 = vmatpush1.bf16.msra.mxu0 0
    %2429 = vmatprep.subr.bf16.mxu0 0
    %2430 = vmatpush1.bf16.msra.mxu0 0
    %2431 = vmatprep.subr.bf16.mxu0 0
    %2432 = vmatpush1.bf16.msra.mxu0 0
    %2433 = vmatprep.subr.bf16.mxu0 0
    %2434 = vmatpush1.bf16.msra.mxu0 0
    %2435 = vmatprep.subr.bf16.mxu0 0
    %2436 = vmatpush1.bf16.msra.mxu0 0
    %2437 = vmatprep.subr.bf16.mxu0 0
    %2438 = vmatpush1.bf16.msra.mxu0 0
    %2439 = vmatprep.subr.bf16.mxu0 0
    %2440 = vmatpush1.bf16.msra.mxu0 0
    %2441 = vmatprep.subr.bf16.mxu0 0
    %2442 = vmatpush1.bf16.msra.mxu0 %v2422
    %2443 = vmatprep.subr.bf16.mxu0 0
    %2444 = vmatpush2.bf16.msra.mxu0 0
    %2445 = vmatprep.subr.bf16.mxu0 0
    %2446 = vmatpush2.bf16.msra.mxu0 0
    %2447 = vmatprep.subr.bf16.mxu0 0
    %2448 = vmatpush2.bf16.msra.mxu0 0
    %2449 = vmatprep.subr.bf16.mxu0 0
    %2450 = vmatpush2.bf16.msra.mxu0 0
    %2451 = vmatprep.subr.bf16.mxu0 0
    %2452 = vmatpush2.bf16.msra.mxu0 0
    %2453 = vmatprep.subr.bf16.mxu0 0
    %2454 = vmatpush2.bf16.msra.mxu0 0
    %2455 = vmatprep.subr.bf16.mxu0 0
    %2456 = vmatpush2.bf16.msra.mxu0 0
    %2457 = vmatprep.subr.bf16.mxu0 0
    %2458 = vmatpush2.bf16.msra.mxu0 0
    %2459 = vmatprep.mubr.bf16.mxu0 0
    %2460 = vmatmul.mubr.bf16.gmra.mxu0 %v2425
    %v2461 = vpop.f32.mrf.mxu0
    %v2462 = vadd.f32 0.0, %v2461
    %v2463 = vpop.f32.mrf.mxu0
    %v2464 = vpop.f32.mrf.mxu0
    %v2465 = vpop.f32.mrf.mxu0
    %2466 = vdwg.mxu0
    %v2469 = vunpack.c.l.b16 %v2303
    %v2470 = vunpack.c.l.b16 %v2304
    %v2471 = vpack.c.b16 %v2470, %v2469
    %v2474 = vsel %vm518, %v2302, 0
    %2476 = vmatprep.subr.bf16.mxu0 0
    %2477 = vmatpush1.bf16.msra.mxu0 0
    %2478 = vmatprep.subr.bf16.mxu0 0
    %2479 = vmatpush1.bf16.msra.mxu0 0
    %2480 = vmatprep.subr.bf16.mxu0 0
    %2481 = vmatpush1.bf16.msra.mxu0 0
    %2482 = vmatprep.subr.bf16.mxu0 0
    %2483 = vmatpush1.bf16.msra.mxu0 0
    %2484 = vmatprep.subr.bf16.mxu0 0
    %2485 = vmatpush1.bf16.msra.mxu0 0
    %2486 = vmatprep.subr.bf16.mxu0 0
    %2487 = vmatpush1.bf16.msra.mxu0 0
    %2488 = vmatprep.subr.bf16.mxu0 0
    %2489 = vmatpush1.bf16.msra.mxu0 0
    %2490 = vmatprep.subr.bf16.mxu0 0
    %2491 = vmatpush1.bf16.msra.mxu0 %v2471
    %2492 = vmatprep.subr.bf16.mxu0 0
    %2493 = vmatpush2.bf16.msra.mxu0 0
    %2494 = vmatprep.subr.bf16.mxu0 0
    %2495 = vmatpush2.bf16.msra.mxu0 0
    %2496 = vmatprep.subr.bf16.mxu0 0
    %2497 = vmatpush2.bf16.msra.mxu0 0
    %2498 = vmatprep.subr.bf16.mxu0 0
    %2499 = vmatpush2.bf16.msra.mxu0 0
    %2500 = vmatprep.subr.bf16.mxu0 0
    %2501 = vmatpush2.bf16.msra.mxu0 0
    %2502 = vmatprep.subr.bf16.mxu0 0
    %2503 = vmatpush2.bf16.msra.mxu0 0
    %2504 = vmatprep.subr.bf16.mxu0 0
    %2505 = vmatpush2.bf16.msra.mxu0 0
    %2506 = vmatprep.subr.bf16.mxu0 0
    %2507 = vmatpush2.bf16.msra.mxu0 0
    %2508 = vmatprep.mubr.bf16.mxu0 0
    %2509 = vmatmul.mubr.bf16.gmra.mxu0 %v2474
    %v2510 = vpop.f32.mrf.mxu0
    %v2511 = vadd.f32 %v2462, %v2510
    %v2512 = vpop.f32.mrf.mxu0
    %v2513 = vpop.f32.mrf.mxu0
    %v2514 = vpop.f32.mrf.mxu0
    %2515 = vdwg.mxu0
    %v2517 = vrot.slane %v2511, 7
    %v2519 = vsel %vm1467, %v2187, %v2517
    %s2520 = scalar_lea.vmem %s8, 1
    %v2521 = vld [vmem:[%s2520] sm:$0x1]
    %v2523 = vlaneseq
    %v2524 = vshrl.u32 %v2523, 7
    %v2525 = vsub.s32 0, %v2524
    %v2526 = vrot.slane %v2521, %v2525
    %v2528 = vadd.f32 %v2519, %v2526
    %v2529 = vadd.f32 %v2528, %v1468
    %s2530 = scalar_lea.vmem %s9, 1
    %v2531 = vld [vmem:[%s2530] sm:$0x1]
    %s2532 = scalar_lea.vmem %s10, 1
    %v2533 = vld [vmem:[%s2532] sm:$0x1]
    %vm2534 = vcmask 254976
    %v2535 = vsel %vm2534, %v2529, 0.0
    %2536 = vadd.xlane.f32.xlu0 %v2535
    %v2537 = vpop.xlane.xlu0 %2536
    %v2538 = vmul.f32 %v2537, %v81
    %v2539 = vsub.f32 %v2529, %v2538
    %v2540 = vmul.f32 %v2539, %v2539
    %v2541 = vsel %vm2534, %v2540, 0.0
    %2542 = vadd.xlane.f32.xlu0 %v2541
    %v2543 = vpop.xlane.xlu0 %2542
    %v2544 = vmul.f32 %v2543, %v81
    %v2545 = vadd.f32 %v2544, 1e-12
    %v2546 = vrsqrt.pop %v2545
    %v2547 = vmul.f32 %v2539, %v2546
    %v2549 = vlaneseq
    %v2550 = vshrl.u32 %v2549, 7
    %v2551 = vsub.s32 0, %v2550
    %v2552 = vrot.slane %v2531, %v2551
    %v2554 = vmul.f32 %v2547, %v2552
    %v2556 = vlaneseq
    %v2557 = vshrl.u32 %v2556, 7
    %v2558 = vsub.s32 0, %v2557
    %v2559 = vrot.slane %v2533, %v2558
    %v2561 = vadd.f32 %v2554, %v2559
    %v2562 = vpack.c.bf16 %v2561, %v2561
    %s2563 = scalar_lea.vmem %s11, 16
    %v2564 = vld [vmem:[%s2563] sm:$0xf]
    %v2565 = vld [vmem:[%s2563 + $0x4] sm:$0xf]
    %v2566 = vld [vmem:[%s2563 + $0x8] sm:$0xf]
    %v2567 = vld [vmem:[%s2563 + $0xc] sm:$0xf]
    %s2568 = scalar_lea.vmem %s12, 1
    %v2569 = vld [vmem:[%s2568] sm:$0x1]
    %v2571 = vlaneseq
    %v2572 = vshrl.u32 %v2571, 7
    %v2573 = vsub.s32 0, %v2572
    %v2574 = vrot.slane %v2569, %v2573
    %v2580 = vunpack.c.l.b16 %v2564
    %v2581 = vunpack.c.l.b16 %v2565
    %v2582 = vunpack.c.l.b16 %v2566
    %v2583 = vunpack.c.l.b16 %v2567
    %v2584 = vpack.c.b16 %v2581, %v2580
    %v2585 = vpack.c.b16 %v2583, %v2582
    %v2589 = vsel %vm74, %v2562, 0
    %2591 = vmatprep.subr.bf16.mxu0 0
    %2592 = vmatpush1.bf16.msra.mxu0 0
    %2593 = vmatprep.subr.bf16.mxu0 0
    %2594 = vmatpush1.bf16.msra.mxu0 0
    %2595 = vmatprep.subr.bf16.mxu0 0
    %2596 = vmatpush1.bf16.msra.mxu0 0
    %2597 = vmatprep.subr.bf16.mxu0 0
    %2598 = vmatpush1.bf16.msra.mxu0 0
    %2599 = vmatprep.subr.bf16.mxu0 0
    %2600 = vmatpush1.bf16.msra.mxu0 0
    %2601 = vmatprep.subr.bf16.mxu0 0
    %2602 = vmatpush1.bf16.msra.mxu0 0
    %2603 = vmatprep.subr.bf16.mxu0 0
    %2604 = vmatpush1.bf16.msra.mxu0 %v2585
    %2605 = vmatprep.subr.bf16.mxu0 0
    %2606 = vmatpush1.bf16.msra.mxu0 %v2584
    %2607 = vmatprep.subr.bf16.mxu0 0
    %2608 = vmatpush2.bf16.msra.mxu0 0
    %2609 = vmatprep.subr.bf16.mxu0 0
    %2610 = vmatpush2.bf16.msra.mxu0 0
    %2611 = vmatprep.subr.bf16.mxu0 0
    %2612 = vmatpush2.bf16.msra.mxu0 0
    %2613 = vmatprep.subr.bf16.mxu0 0
    %2614 = vmatpush2.bf16.msra.mxu0 0
    %2615 = vmatprep.subr.bf16.mxu0 0
    %2616 = vmatpush2.bf16.msra.mxu0 0
    %2617 = vmatprep.subr.bf16.mxu0 0
    %2618 = vmatpush2.bf16.msra.mxu0 0
    %2619 = vmatprep.subr.bf16.mxu0 0
    %2620 = vmatpush2.bf16.msra.mxu0 0
    %2621 = vmatprep.subr.bf16.mxu0 0
    %2622 = vmatpush2.bf16.msra.mxu0 0
    %2623 = vmatprep.mubr.bf16.mxu0 0
    %2624 = vmatmul.mubr.bf16.gmra.mxu0 %v2589
    %v2625 = vpop.f32.mrf.mxu0
    %v2626 = vadd.f32 %v2574, %v2625
    %v2627 = vpop.f32.mrf.mxu0
    %v2628 = vpop.f32.mrf.mxu0
    %v2629 = vpop.f32.mrf.mxu0
    %2630 = vdwg.mxu0
    %v2631 = vmul.f32 %v2626, 0.5
    %v2632 = vmul.f32 %v2626, 0.70710677
    %vm2633 = vcmp.ge.f32.partialorder %v2632, 0.0
    %v2634 = vsel %vm2633, 1.0, -1.0
    %v2635 = vand.u32 2147483647, %v2632
    %v2636 = vmul.f32 %v2635, 0.3275911
    %v2637 = vadd.f32 %v2636, 1.0
    %v2638 = vrcp.pop %v2637
    %v2639 = vmul.f32 %v2638, 1.0614054
    %v2640 = vadd.f32 %v2639, -1.4531521
    %v2641 = vmul.f32 %v2640, %v2638
    %v2642 = vadd.f32 %v2641, 1.4214138
    %v2643 = vmul.f32 %v2642, %v2638
    %v2644 = vadd.f32 %v2643, -0.28449672
    %v2645 = vmul.f32 %v2644, %v2638
    %v2646 = vadd.f32 %v2645, 0.2548296
    %v2647 = vmul.f32 %v2646, %v2638
    %v2648 = vsub.f32 0.0, %v2635
    %v2649 = vmul.f32 %v2648, %v2635
    %v2650 = vmul.f32 %v2649, 1.442695
    %v2651 = vpow.pop %v2650
    %v2652 = vmul.f32 %v2647, %v2651
    %v2653 = vsub.f32 1.0, %v2652
    %v2654 = vmul.f32 %v2634, %v2653
    %v2655 = vadd.f32 %v2654, 1.0
    %v2656 = vmul.f32 %v2631, %v2655
    %v2657 = vpack.c.bf16 %v2656, %v2656
    %s2658 = scalar_lea.vmem %s13, 32
    %v2659 = vld [vmem:[%s2658] sm:$0xf]
    %v2660 = vld [vmem:[%s2658 + $0x4] sm:$0xf]
    %v2661 = vld [vmem:[%s2658 + $0x8] sm:$0xf]
    %v2662 = vld [vmem:[%s2658 + $0xc] sm:$0xf]
    %v2663 = vld [vmem:[%s2658 + $0x10] sm:$0xf]
    %v2664 = vld [vmem:[%s2658 + $0x14] sm:$0xf]
    %v2665 = vld [vmem:[%s2658 + $0x18] sm:$0xf]
    %v2666 = vld [vmem:[%s2658 + $0x1c] sm:$0xf]
    %s2667 = scalar_lea.vmem %s14, 1
    %v2668 = vld [vmem:[%s2667] sm:$0x1]
    %v2670 = vlaneseq
    %v2671 = vshrl.u32 %v2670, 7
    %v2672 = vsub.s32 0, %v2671
    %v2673 = vrot.slane %v2668, %v2672
    %v2683 = vunpack.c.l.b16 %v2659
    %v2684 = vunpack.c.l.b16 %v2660
    %v2685 = vunpack.c.l.b16 %v2661
    %v2686 = vunpack.c.l.b16 %v2662
    %v2687 = vunpack.c.l.b16 %v2663
    %v2688 = vunpack.c.l.b16 %v2664
    %v2689 = vunpack.c.l.b16 %v2665
    %v2690 = vunpack.c.l.b16 %v2666
    %v2691 = vpack.c.b16 %v2684, %v2683
    %v2692 = vpack.c.b16 %v2686, %v2685
    %v2693 = vpack.c.b16 %v2688, %v2687
    %v2694 = vpack.c.b16 %v2690, %v2689
    %v2700 = vsel %vm1373, %v2657, 0
    %2702 = vmatprep.subr.bf16.mxu0 0
    %2703 = vmatpush1.bf16.msra.mxu0 0
    %2704 = vmatprep.subr.bf16.mxu0 0
    %2705 = vmatpush1.bf16.msra.mxu0 0
    %2706 = vmatprep.subr.bf16.mxu0 0
    %2707 = vmatpush1.bf16.msra.mxu0 0
    %2708 = vmatprep.subr.bf16.mxu0 0
    %2709 = vmatpush1.bf16.msra.mxu0 0
    %2710 = vmatprep.subr.bf16.mxu0 0
    %2711 = vmatpush1.bf16.msra.mxu0 %v2694
    %2712 = vmatprep.subr.bf16.mxu0 0
    %2713 = vmatpush1.bf16.msra.mxu0 %v2693
    %2714 = vmatprep.subr.bf16.mxu0 0
    %2715 = vmatpush1.bf16.msra.mxu0 %v2692
    %2716 = vmatprep.subr.bf16.mxu0 0
    %2717 = vmatpush1.bf16.msra.mxu0 %v2691
    %2718 = vmatprep.subr.bf16.mxu0 0
    %2719 = vmatpush2.bf16.msra.mxu0 0
    %2720 = vmatprep.subr.bf16.mxu0 0
    %2721 = vmatpush2.bf16.msra.mxu0 0
    %2722 = vmatprep.subr.bf16.mxu0 0
    %2723 = vmatpush2.bf16.msra.mxu0 0
    %2724 = vmatprep.subr.bf16.mxu0 0
    %2725 = vmatpush2.bf16.msra.mxu0 0
    %2726 = vmatprep.subr.bf16.mxu0 0
    %2727 = vmatpush2.bf16.msra.mxu0 0
    %2728 = vmatprep.subr.bf16.mxu0 0
    %2729 = vmatpush2.bf16.msra.mxu0 0
    %2730 = vmatprep.subr.bf16.mxu0 0
    %2731 = vmatpush2.bf16.msra.mxu0 0
    %2732 = vmatprep.subr.bf16.mxu0 0
    %2733 = vmatpush2.bf16.msra.mxu0 0
    %2734 = vmatprep.mubr.bf16.mxu0 0
    %2735 = vmatmul.mubr.bf16.gmra.mxu0 %v2700
    %v2736 = vpop.f32.mrf.mxu0
    %v2737 = vadd.f32 %v2673, %v2736
    %v2738 = vpop.f32.mrf.mxu0
    %v2739 = vpop.f32.mrf.mxu0
    %v2740 = vpop.f32.mrf.mxu0
    %2741 = vdwg.mxu0
    %v2742 = vadd.f32 %v2737, %v2561
    %s2743 = scalar_lea.vmem %s15, 1
    %v2744 = vld [vmem:[%s2743] sm:$0x1]
    %s2745 = scalar_lea.vmem %s16, 1
    %v2746 = vld [vmem:[%s2745] sm:$0x1]
    %v2747 = vsel %vm2534, %v2742, 0.0
    %2748 = vadd.xlane.f32.xlu0 %v2747
    %v2749 = vpop.xlane.xlu0 %2748
    %v2750 = vmul.f32 %v2749, %v81
    %v2751 = vsub.f32 %v2742, %v2750
    %v2752 = vmul.f32 %v2751, %v2751
    %v2753 = vsel %vm2534, %v2752, 0.0
    %2754 = vadd.xlane.f32.xlu0 %v2753
    %v2755 = vpop.xlane.xlu0 %2754
    %v2756 = vmul.f32 %v2755, %v81
    %v2757 = vadd.f32 %v2756, 1e-12
    %v2758 = vrsqrt.pop %v2757
    %v2759 = vmul.f32 %v2751, %v2758
    %v2761 = vlaneseq
    %v2762 = vshrl.u32 %v2761, 7
    %v2763 = vsub.s32 0, %v2762
    %v2764 = vrot.slane %v2744, %v2763
    %v2766 = vmul.f32 %v2759, %v2764
    %v2768 = vlaneseq
    %v2769 = vshrl.u32 %v2768, 7
    %v2770 = vsub.s32 0, %v2769
    %v2771 = vrot.slane %v2746, %v2770
    %v2773 = vadd.f32 %v2766, %v2771
    %v2774 = vpack.c.bf16 %v2773, %v2773
    %v2775 = vld [vmem:[%s19] sm:$0xf]
    %v2776 = vld [vmem:[%s19 + $0x4] sm:$0xf]
    %v2777 = vld [vmem:[%s19 + $0x8] sm:$0xf]
    %v2778 = vld [vmem:[%s19 + $0xc] sm:$0xf]
    %v2779 = vld [vmem:[%s20] sm:$0x1]
    %v2781 = vlaneseq
    %v2782 = vshrl.u32 %v2781, 7
    %v2783 = vsub.s32 0, %v2782
    %v2784 = vrot.slane %v2779, %v2783
    %v2790 = vunpack.c.l.b16 %v2775
    %v2791 = vunpack.c.l.b16 %v2776
    %v2792 = vunpack.c.l.b16 %v2777
    %v2793 = vunpack.c.l.b16 %v2778
    %v2794 = vpack.c.b16 %v2791, %v2790
    %v2795 = vpack.c.b16 %v2793, %v2792
    %v2799 = vsel %vm74, %v2774, 0
    %2801 = vmatprep.subr.bf16.mxu0 0
    %2802 = vmatpush1.bf16.msra.mxu0 0
    %2803 = vmatprep.subr.bf16.mxu0 0
    %2804 = vmatpush1.bf16.msra.mxu0 0
    %2805 = vmatprep.subr.bf16.mxu0 0
    %2806 = vmatpush1.bf16.msra.mxu0 0
    %2807 = vmatprep.subr.bf16.mxu0 0
    %2808 = vmatpush1.bf16.msra.mxu0 0
    %2809 = vmatprep.subr.bf16.mxu0 0
    %2810 = vmatpush1.bf16.msra.mxu0 0
    %2811 = vmatprep.subr.bf16.mxu0 0
    %2812 = vmatpush1.bf16.msra.mxu0 0
    %2813 = vmatprep.subr.bf16.mxu0 0
    %2814 = vmatpush1.bf16.msra.mxu0 %v2795
    %2815 = vmatprep.subr.bf16.mxu0 0
    %2816 = vmatpush1.bf16.msra.mxu0 %v2794
    %2817 = vmatprep.subr.bf16.mxu0 0
    %2818 = vmatpush2.bf16.msra.mxu0 0
    %2819 = vmatprep.subr.bf16.mxu0 0
    %2820 = vmatpush2.bf16.msra.mxu0 0
    %2821 = vmatprep.subr.bf16.mxu0 0
    %2822 = vmatpush2.bf16.msra.mxu0 0
    %2823 = vmatprep.subr.bf16.mxu0 0
    %2824 = vmatpush2.bf16.msra.mxu0 0
    %2825 = vmatprep.subr.bf16.mxu0 0
    %2826 = vmatpush2.bf16.msra.mxu0 0
    %2827 = vmatprep.subr.bf16.mxu0 0
    %2828 = vmatpush2.bf16.msra.mxu0 0
    %2829 = vmatprep.subr.bf16.mxu0 0
    %2830 = vmatpush2.bf16.msra.mxu0 0
    %2831 = vmatprep.subr.bf16.mxu0 0
    %2832 = vmatpush2.bf16.msra.mxu0 0
    %2833 = vmatprep.mubr.bf16.mxu0 0
    %2834 = vmatmul.mubr.bf16.gmra.mxu0 %v2799
    %v2835 = vpop.f32.mrf.mxu0
    %v2836 = vadd.f32 %v2784, %v2835
    %v2837 = vpop.f32.mrf.mxu0
    %v2838 = vpop.f32.mrf.mxu0
    %v2839 = vpop.f32.mrf.mxu0
    %2840 = vdwg.mxu0
    %v2841 = vtanh.pop %v2836
    %2842 = vst.msk [vmem:[#allocation2] sm:$0x3] %vm2534, %v2841
    // Predicated region
    $region86: #{bert_forward.1} parent=1 // pred_check
      _
    $region87: #{bert_forward.1} parent=1 // pred_check_branch
      %2844 = sbr.rel (0) target = $region89
    $region88: #{bert_forward.1} parent=1 // pred_region
      %s2846 = ssub.s32 32, 32
      %2847 = vsyncadd [#allocation3], %s2846
      %s2849 = sshll.u32 [#allocation2], 4
      %s2850 = int_to_ptr.vmem [resolvable:$true] %s2849
      %2852 = dma.vmem_to_hbm [thread:$0]  %s2850, 32, %s21, [#allocation3]
    $region89: #{bert_forward.1} parent=1 // pred_fallthru
      _
    // Predicated region
    $region90: #{bert_forward.1} parent=1 // pred_check
      _
    $region91: #{bert_forward.1} parent=1 // pred_check_branch
      %2854 = sbr.rel (0) target = $region93
    $region92: #{bert_forward.1} parent=1 // pred_region
      %2855 = dma.done [#allocation3], 32
    $region93: #{bert_forward.1} parent=1 // pred_fallthru
      _
    %2856 = vsyncpa [#allocation3], 1

</llo_original>
